<compile_context>
chip_gen: v6e
topology: v6e:2x2x1
jax: 0.10.0
libtpu: 0.0.40
codegen_flags: <defaults>
</compile_context>

<pallas_src>
import math
import functools

import jax
import jax.numpy as jnp
from jax import lax
from jax.experimental import pallas as pl
from jax.experimental.pallas import tpu as pltpu


def _mha_kernel(x_ref, wq_ref, bq_ref, wk_ref, bk_ref, wv_ref, bv_ref,
                wp_ref, bp_ref, o_ref, *, num_heads, batch, seq):
    """x_ref: (B*N, E).  wq/wk/wv: (H, E, d).  b{q,k,v}: (H, 1, d).
    wp: (H, d, E).  bp: (1, E).  o_ref: (B*N, E)."""
    f32 = jnp.float32
    x = x_ref[...]                                     # (B*N, E)

    accs = [None] * batch
    for h in range(num_heads):
        # Head-h projections over all B*N rows at once (scale folded into Wq/bq).
        q = jnp.dot(x, wq_ref[h], preferred_element_type=f32) + bq_ref[h]   # (B*N, d)
        k = jnp.dot(x, wk_ref[h], preferred_element_type=f32) + bk_ref[h]
        v = jnp.dot(x, wv_ref[h], preferred_element_type=f32) + bv_ref[h]
        for b in range(batch):
            rows = slice(b * seq, (b + 1) * seq)       # sublane-aligned (seq = 8)
            q_b, k_b, v_b = q[rows], k[rows], v[rows]

            # energy = q @ k^T without an explicit transpose (contract last dims).
            energy = lax.dot_general(
                q_b, k_b,
                dimension_numbers=(((1,), (1,)), ((), ())),
                preferred_element_type=f32)            # (N, N)

            # Numerically stable softmax over keys.
            m = jnp.max(energy, axis=-1, keepdims=True)
            e = jnp.exp(energy - m)
            s = jnp.sum(e, axis=-1, keepdims=True)
            att = e * pl.reciprocal(s, approx=True)

            ctx = jnp.dot(att, v_b, preferred_element_type=f32)            # (N, d)
            # Fold the head concat into the output projection: accumulate this
            # head's contribution through its (d, E) slice of Wp.
            contrib = jnp.dot(ctx, wp_ref[h], preferred_element_type=f32)  # (N, E)
            accs[b] = contrib if accs[b] is None else accs[b] + contrib

    bp = bp_ref[...]                                   # (1, E)
    for b in range(batch):
        o_ref[b * seq:(b + 1) * seq, :] = (accs[b] + bp).astype(o_ref.dtype)


def multi_head_attention(x, params, *, num_heads):
    """x: (B, N, E) float32.  params: PyTorch-convention weights (W is (out, in))."""
    B, N, E = x.shape
    H = num_heads
    d = E // H
    f32 = jnp.float32
    inv_scale = 1.0 / math.sqrt(float(E))   # module uses emb_size ** (1/2)

    def wt(w):                              # (out, in) -> (in, out)
        return jnp.asarray(w, f32).T

    # Fold the attention scale into the query projection (free at trace time).
    wq_t = wt(params["wq"]) * inv_scale
    bq = jnp.asarray(params["bq"], f32) * inv_scale
    wk_t = wt(params["wk"]); bk = jnp.asarray(params["bk"], f32)
    wv_t = wt(params["wv"]); bv = jnp.asarray(params["bv"], f32)
    wp_t = wt(params["wp"]); bp = jnp.asarray(params["bp"], f32)

    # Pre-split per-head weights: head index on the leading (free) axis.
    wq_h = wq_t.reshape(E, H, d).transpose(1, 0, 2)    # (H, E, d)
    wk_h = wk_t.reshape(E, H, d).transpose(1, 0, 2)
    wv_h = wv_t.reshape(E, H, d).transpose(1, 0, 2)
    bq_h = bq.reshape(H, 1, d)
    bk_h = bk.reshape(H, 1, d)
    bv_h = bv.reshape(H, 1, d)
    wp_h = wp_t.reshape(H, d, E)                       # head h uses rows h*d:(h+1)*d
    bp2 = bp.reshape(1, E)

    x_flat = x.reshape(B * N, E).astype(f32)

    kernel = functools.partial(_mha_kernel, num_heads=H, batch=B, seq=N)

    out_flat = pl.pallas_call(
        kernel,
        out_shape=jax.ShapeDtypeStruct((B * N, E), f32),
        grid_spec=pltpu.PrefetchScalarGridSpec(
            num_scalar_prefetch=0,
            grid=(1,),                                  # single invocation: whole problem fits in VMEM
            in_specs=[
                pl.BlockSpec((B * N, E), lambda i: (0, 0)),
                pl.BlockSpec((H, E, d), lambda i: (0, 0, 0)),
                pl.BlockSpec((H, 1, d), lambda i: (0, 0, 0)),
                pl.BlockSpec((H, E, d), lambda i: (0, 0, 0)),
                pl.BlockSpec((H, 1, d), lambda i: (0, 0, 0)),
                pl.BlockSpec((H, E, d), lambda i: (0, 0, 0)),
                pl.BlockSpec((H, 1, d), lambda i: (0, 0, 0)),
                pl.BlockSpec((H, d, E), lambda i: (0, 0, 0)),
                pl.BlockSpec((1, E), lambda i: (0, 0)),
            ],
            out_specs=pl.BlockSpec((B * N, E), lambda i: (0, 0)),
        ),
        compiler_params=pltpu.CompilerParams(
            dimension_semantics=("arbitrary",)),
    )(x_flat, wq_h, bq_h, wk_h, bk_h, wv_h, bv_h, wp_h, bp2)

    return out_flat.reshape(B, N, E)


def reference_mha(x, params, *, num_heads):
    """Pure-JAX reference mirroring the PyTorch forward (eval mode, mask=None)."""
    B, N, E = x.shape
    d = E // num_heads

    def lin(x, w, b):
        return jnp.einsum("bne,oe->bno", x, w) + b

    q = lin(x, params["wq"], params["bq"]).reshape(B, N, num_heads, d).transpose(0, 2, 1, 3)
    k = lin(x, params["wk"], params["bk"]).reshape(B, N, num_heads, d).transpose(0, 2, 1, 3)
    v = lin(x, params["wv"], params["bv"]).reshape(B, N, num_heads, d).transpose(0, 2, 1, 3)

    energy = jnp.einsum("bhqd,bhkd->bhqk", q, k)
    att = jax.nn.softmax(energy / (E ** 0.5), axis=-1)
    out = jnp.einsum("bhal,bhlv->bhav", att, v)
    out = out.transpose(0, 2, 1, 3).reshape(B, N, E)
    return lin(out, params["wp"], params["bp"])


if __name__ == "__main__":
    # Small shapes consistent with the module: batch=2, seq=8, emb=32, heads=4.
    B, N, E, H = 2, 8, 32, 4

    key = jax.random.PRNGKey(0)
    keys = jax.random.split(key, 10)
    scale = 1.0 / math.sqrt(E)

    params = {
        "wq": jax.random.uniform(keys[0], (E, E), jnp.float32, -scale, scale),
        "bq": jax.random.uniform(keys[1], (E,),   jnp.float32, -scale, scale),
        "wk": jax.random.uniform(keys[2], (E, E), jnp.float32, -scale, scale),
        "bk": jax.random.uniform(keys[3], (E,),   jnp.float32, -scale, scale),
        "wv": jax.random.uniform(keys[4], (E, E), jnp.float32, -scale, scale),
        "bv": jax.random.uniform(keys[5], (E,),   jnp.float32, -scale, scale),
        "wp": jax.random.uniform(keys[6], (E, E), jnp.float32, -scale, scale),
        "bp": jax.random.uniform(keys[7], (E,),   jnp.float32, -scale, scale),
    }
    x = jax.random.normal(keys[8], (B, N, E), jnp.float32)

    out = multi_head_attention(x, params, num_heads=H)
    out = jax.block_until_ready(out)

    ref = reference_mha(x, params, num_heads=H)
    assert out.shape == (B, N, E)
    # Tolerance leaves headroom for the approximate (EUP) softmax reciprocal;
    # structural errors (wrong transpose / head split) would be O(0.1) or more.
    assert jnp.allclose(out, ref, atol=2e-3, rtol=2e-3), \
        f"max err {jnp.max(jnp.abs(out - ref))}"

    print("KERNEL_OK")
</pallas_src>

<mosaic_0001>
module attributes {stable_mosaic.version = 11 : i64} {
  func.func @_mha_kernel(%arg0: i32, %arg1: memref<16x32xf32, #tpu.memory_space<vmem>>, %arg2: memref<4x32x8xf32, #tpu.memory_space<vmem>>, %arg3: memref<4x1x8xf32, #tpu.memory_space<vmem>>, %arg4: memref<4x32x8xf32, #tpu.memory_space<vmem>>, %arg5: memref<4x1x8xf32, #tpu.memory_space<vmem>>, %arg6: memref<4x32x8xf32, #tpu.memory_space<vmem>>, %arg7: memref<4x1x8xf32, #tpu.memory_space<vmem>>, %arg8: memref<4x8x32xf32, #tpu.memory_space<vmem>>, %arg9: memref<1x32xf32, #tpu.memory_space<vmem>>, %arg10: memref<16x32xf32, #tpu.memory_space<vmem>>) attributes {dimension_semantics = [#tpu.dimension_semantics<arbitrary>], iteration_bounds = array<i64: 1>, scalar_prefetch = 0 : i64, scratch_operands = 0 : i64, tpu.core_type = #tpu.core_type<tc>, window_params = [{pipeline_mode = #tpu.pipeline_mode<synchronous>, transform_indices = @transform_0, window_bounds = array<i64: 16, 32>}, {pipeline_mode = #tpu.pipeline_mode<synchronous>, transform_indices = @transform_1, window_bounds = array<i64: 4, 32, 8>}, {pipeline_mode = #tpu.pipeline_mode<synchronous>, transform_indices = @transform_2, window_bounds = array<i64: 4, 1, 8>}, {pipeline_mode = #tpu.pipeline_mode<synchronous>, transform_indices = @transform_3, window_bounds = array<i64: 4, 32, 8>}, {pipeline_mode = #tpu.pipeline_mode<synchronous>, transform_indices = @transform_4, window_bounds = array<i64: 4, 1, 8>}, {pipeline_mode = #tpu.pipeline_mode<synchronous>, transform_indices = @transform_5, window_bounds = array<i64: 4, 32, 8>}, {pipeline_mode = #tpu.pipeline_mode<synchronous>, transform_indices = @transform_6, window_bounds = array<i64: 4, 1, 8>}, {pipeline_mode = #tpu.pipeline_mode<synchronous>, transform_indices = @transform_7, window_bounds = array<i64: 4, 8, 32>}, {pipeline_mode = #tpu.pipeline_mode<synchronous>, transform_indices = @transform_8, window_bounds = array<i64: 1, 32>}, {pipeline_mode = #tpu.pipeline_mode<synchronous>, transform_indices = @transform_9, window_bounds = array<i64: 16, 32>}]} {
    %c0 = arith.constant 0 : index
    %c0_0 = arith.constant 0 : index
    %0 = vector.load %arg1[%c0, %c0_0] : memref<16x32xf32, #tpu.memory_space<vmem>>, vector<16x32xf32>
    %c0_1 = arith.constant 0 : index
    %c0_2 = arith.constant 0 : index
    %c0_3 = arith.constant 0 : index
    %1 = vector.load %arg2[%c0_1, %c0_2, %c0_3] : memref<4x32x8xf32, #tpu.memory_space<vmem>>, vector<1x32x8xf32>
    %2 = vector.shape_cast %1 : vector<1x32x8xf32> to vector<32x8xf32>
    %cst = arith.constant dense<0.000000e+00> : vector<16x8xf32>
    %3 = tpu.matmul %0, %2, %cst {dimension_numbers = #tpu.dot_dimension_numbers<[1], [0], [0], [1], [0, 0, 1, 1], [], []>} : vector<16x32xf32>, vector<32x8xf32>, vector<16x8xf32> -> vector<16x8xf32>
    %c0_4 = arith.constant 0 : index
    %c0_5 = arith.constant 0 : index
    %c0_6 = arith.constant 0 : index
    %4 = vector.load %arg3[%c0_4, %c0_5, %c0_6] : memref<4x1x8xf32, #tpu.memory_space<vmem>>, vector<1x1x8xf32>
    %5 = vector.shape_cast %4 : vector<1x1x8xf32> to vector<1x8xf32>
    %6 = vector.broadcast %5 : vector<1x8xf32> to vector<16x8xf32>
    %7 = arith.addf %3, %6 : vector<16x8xf32>
    %c0_7 = arith.constant 0 : index
    %c0_8 = arith.constant 0 : index
    %c0_9 = arith.constant 0 : index
    %8 = vector.load %arg4[%c0_7, %c0_8, %c0_9] : memref<4x32x8xf32, #tpu.memory_space<vmem>>, vector<1x32x8xf32>
    %9 = vector.shape_cast %8 : vector<1x32x8xf32> to vector<32x8xf32>
    %cst_10 = arith.constant dense<0.000000e+00> : vector<16x8xf32>
    %10 = tpu.matmul %0, %9, %cst_10 {dimension_numbers = #tpu.dot_dimension_numbers<[1], [0], [0], [1], [0, 0, 1, 1], [], []>} : vector<16x32xf32>, vector<32x8xf32>, vector<16x8xf32> -> vector<16x8xf32>
    %c0_11 = arith.constant 0 : index
    %c0_12 = arith.constant 0 : index
    %c0_13 = arith.constant 0 : index
    %11 = vector.load %arg5[%c0_11, %c0_12, %c0_13] : memref<4x1x8xf32, #tpu.memory_space<vmem>>, vector<1x1x8xf32>
    %12 = vector.shape_cast %11 : vector<1x1x8xf32> to vector<1x8xf32>
    %13 = vector.broadcast %12 : vector<1x8xf32> to vector<16x8xf32>
    %14 = arith.addf %10, %13 : vector<16x8xf32>
    %c0_14 = arith.constant 0 : index
    %c0_15 = arith.constant 0 : index
    %c0_16 = arith.constant 0 : index
    %15 = vector.load %arg6[%c0_14, %c0_15, %c0_16] : memref<4x32x8xf32, #tpu.memory_space<vmem>>, vector<1x32x8xf32>
    %16 = vector.shape_cast %15 : vector<1x32x8xf32> to vector<32x8xf32>
    %cst_17 = arith.constant dense<0.000000e+00> : vector<16x8xf32>
    %17 = tpu.matmul %0, %16, %cst_17 {dimension_numbers = #tpu.dot_dimension_numbers<[1], [0], [0], [1], [0, 0, 1, 1], [], []>} : vector<16x32xf32>, vector<32x8xf32>, vector<16x8xf32> -> vector<16x8xf32>
    %c0_18 = arith.constant 0 : index
    %c0_19 = arith.constant 0 : index
    %c0_20 = arith.constant 0 : index
    %18 = vector.load %arg7[%c0_18, %c0_19, %c0_20] : memref<4x1x8xf32, #tpu.memory_space<vmem>>, vector<1x1x8xf32>
    %19 = vector.shape_cast %18 : vector<1x1x8xf32> to vector<1x8xf32>
    %20 = vector.broadcast %19 : vector<1x8xf32> to vector<16x8xf32>
    %21 = arith.addf %17, %20 : vector<16x8xf32>
    %22 = vector.extract_strided_slice %7 {offsets = [0, 0], sizes = [8, 8], strides = [1, 1]} : vector<16x8xf32> to vector<8x8xf32>
    %23 = vector.extract_strided_slice %14 {offsets = [0, 0], sizes = [8, 8], strides = [1, 1]} : vector<16x8xf32> to vector<8x8xf32>
    %24 = vector.extract_strided_slice %21 {offsets = [0, 0], sizes = [8, 8], strides = [1, 1]} : vector<16x8xf32> to vector<8x8xf32>
    %cst_21 = arith.constant dense<0.000000e+00> : vector<8x8xf32>
    %25 = tpu.matmul %22, %23, %cst_21 {dimension_numbers = #tpu.dot_dimension_numbers<[1], [1], [0], [0], [0, 0, 1, 0], [], []>} : vector<8x8xf32>, vector<8x8xf32>, vector<8x8xf32> -> vector<8x8xf32>
    %cst_22 = arith.constant dense<0xFF800000> : vector<8xf32>
    %26 = vector.multi_reduction <maximumf>, %25, %cst_22 [1] : vector<8x8xf32> to vector<8xf32>
    %27 = vector.shape_cast %26 : vector<8xf32> to vector<8x1xf32>
    %28 = vector.broadcast %27 : vector<8x1xf32> to vector<8x8xf32>
    %29 = arith.subf %25, %28 : vector<8x8xf32>
    %30 = math.exp %29 : vector<8x8xf32>
    %cst_23 = arith.constant dense<0.000000e+00> : vector<8xf32>
    %31 = vector.multi_reduction <add>, %30, %cst_23 [1] : vector<8x8xf32> to vector<8xf32>
    %32 = vector.shape_cast %31 : vector<8xf32> to vector<8x1xf32>
    %33 = tpu.reciprocal %32 {approx = true} : vector<8x1xf32> -> vector<8x1xf32>
    %34 = vector.broadcast %33 : vector<8x1xf32> to vector<8x8xf32>
    %35 = arith.mulf %30, %34 : vector<8x8xf32>
    %cst_24 = arith.constant dense<0.000000e+00> : vector<8x8xf32>
    %36 = tpu.matmul %35, %24, %cst_24 {dimension_numbers = #tpu.dot_dimension_numbers<[1], [0], [0], [1], [0, 0, 1, 1], [], []>} : vector<8x8xf32>, vector<8x8xf32>, vector<8x8xf32> -> vector<8x8xf32>
    %c0_25 = arith.constant 0 : index
    %c0_26 = arith.constant 0 : index
    %c0_27 = arith.constant 0 : index
    %37 = vector.load %arg8[%c0_25, %c0_26, %c0_27] : memref<4x8x32xf32, #tpu.memory_space<vmem>>, vector<1x8x32xf32>
    %38 = vector.shape_cast %37 : vector<1x8x32xf32> to vector<8x32xf32>
    %cst_28 = arith.constant dense<0.000000e+00> : vector<8x32xf32>
    %39 = tpu.matmul %36, %38, %cst_28 {dimension_numbers = #tpu.dot_dimension_numbers<[1], [0], [0], [1], [0, 0, 1, 1], [], []>} : vector<8x8xf32>, vector<8x32xf32>, vector<8x32xf32> -> vector<8x32xf32>
    %40 = vector.extract_strided_slice %7 {offsets = [8, 0], sizes = [8, 8], strides = [1, 1]} : vector<16x8xf32> to vector<8x8xf32>
    %41 = vector.extract_strided_slice %14 {offsets = [8, 0], sizes = [8, 8], strides = [1, 1]} : vector<16x8xf32> to vector<8x8xf32>
    %42 = vector.extract_strided_slice %21 {offsets = [8, 0], sizes = [8, 8], strides = [1, 1]} : vector<16x8xf32> to vector<8x8xf32>
    %cst_29 = arith.constant dense<0.000000e+00> : vector<8x8xf32>
    %43 = tpu.matmul %40, %41, %cst_29 {dimension_numbers = #tpu.dot_dimension_numbers<[1], [1], [0], [0], [0, 0, 1, 0], [], []>} : vector<8x8xf32>, vector<8x8xf32>, vector<8x8xf32> -> vector<8x8xf32>
    %cst_30 = arith.constant dense<0xFF800000> : vector<8xf32>
    %44 = vector.multi_reduction <maximumf>, %43, %cst_30 [1] : vector<8x8xf32> to vector<8xf32>
    %45 = vector.shape_cast %44 : vector<8xf32> to vector<8x1xf32>
    %46 = vector.broadcast %45 : vector<8x1xf32> to vector<8x8xf32>
    %47 = arith.subf %43, %46 : vector<8x8xf32>
    %48 = math.exp %47 : vector<8x8xf32>
    %cst_31 = arith.constant dense<0.000000e+00> : vector<8xf32>
    %49 = vector.multi_reduction <add>, %48, %cst_31 [1] : vector<8x8xf32> to vector<8xf32>
    %50 = vector.shape_cast %49 : vector<8xf32> to vector<8x1xf32>
    %51 = tpu.reciprocal %50 {approx = true} : vector<8x1xf32> -> vector<8x1xf32>
    %52 = vector.broadcast %51 : vector<8x1xf32> to vector<8x8xf32>
    %53 = arith.mulf %48, %52 : vector<8x8xf32>
    %cst_32 = arith.constant dense<0.000000e+00> : vector<8x8xf32>
    %54 = tpu.matmul %53, %42, %cst_32 {dimension_numbers = #tpu.dot_dimension_numbers<[1], [0], [0], [1], [0, 0, 1, 1], [], []>} : vector<8x8xf32>, vector<8x8xf32>, vector<8x8xf32> -> vector<8x8xf32>
    %c0_33 = arith.constant 0 : index
    %c0_34 = arith.constant 0 : index
    %c0_35 = arith.constant 0 : index
    %55 = vector.load %arg8[%c0_33, %c0_34, %c0_35] : memref<4x8x32xf32, #tpu.memory_space<vmem>>, vector<1x8x32xf32>
    %56 = vector.shape_cast %55 : vector<1x8x32xf32> to vector<8x32xf32>
    %cst_36 = arith.constant dense<0.000000e+00> : vector<8x32xf32>
    %57 = tpu.matmul %54, %56, %cst_36 {dimension_numbers = #tpu.dot_dimension_numbers<[1], [0], [0], [1], [0, 0, 1, 1], [], []>} : vector<8x8xf32>, vector<8x32xf32>, vector<8x32xf32> -> vector<8x32xf32>
    %c1 = arith.constant 1 : index
    %c0_37 = arith.constant 0 : index
    %c0_38 = arith.constant 0 : index
    %58 = vector.load %arg2[%c1, %c0_37, %c0_38] : memref<4x32x8xf32, #tpu.memory_space<vmem>>, vector<1x32x8xf32>
    %59 = vector.shape_cast %58 : vector<1x32x8xf32> to vector<32x8xf32>
    %cst_39 = arith.constant dense<0.000000e+00> : vector<16x8xf32>
    %60 = tpu.matmul %0, %59, %cst_39 {dimension_numbers = #tpu.dot_dimension_numbers<[1], [0], [0], [1], [0, 0, 1, 1], [], []>} : vector<16x32xf32>, vector<32x8xf32>, vector<16x8xf32> -> vector<16x8xf32>
    %c1_40 = arith.constant 1 : index
    %c0_41 = arith.constant 0 : index
    %c0_42 = arith.constant 0 : index
    %61 = vector.load %arg3[%c1_40, %c0_41, %c0_42] : memref<4x1x8xf32, #tpu.memory_space<vmem>>, vector<1x1x8xf32>
    %62 = vector.shape_cast %61 : vector<1x1x8xf32> to vector<1x8xf32>
    %63 = vector.broadcast %62 : vector<1x8xf32> to vector<16x8xf32>
    %64 = arith.addf %60, %63 : vector<16x8xf32>
    %c1_43 = arith.constant 1 : index
    %c0_44 = arith.constant 0 : index
    %c0_45 = arith.constant 0 : index
    %65 = vector.load %arg4[%c1_43, %c0_44, %c0_45] : memref<4x32x8xf32, #tpu.memory_space<vmem>>, vector<1x32x8xf32>
    %66 = vector.shape_cast %65 : vector<1x32x8xf32> to vector<32x8xf32>
    %cst_46 = arith.constant dense<0.000000e+00> : vector<16x8xf32>
    %67 = tpu.matmul %0, %66, %cst_46 {dimension_numbers = #tpu.dot_dimension_numbers<[1], [0], [0], [1], [0, 0, 1, 1], [], []>} : vector<16x32xf32>, vector<32x8xf32>, vector<16x8xf32> -> vector<16x8xf32>
    %c1_47 = arith.constant 1 : index
    %c0_48 = arith.constant 0 : index
    %c0_49 = arith.constant 0 : index
    %68 = vector.load %arg5[%c1_47, %c0_48, %c0_49] : memref<4x1x8xf32, #tpu.memory_space<vmem>>, vector<1x1x8xf32>
    %69 = vector.shape_cast %68 : vector<1x1x8xf32> to vector<1x8xf32>
    %70 = vector.broadcast %69 : vector<1x8xf32> to vector<16x8xf32>
    %71 = arith.addf %67, %70 : vector<16x8xf32>
    %c1_50 = arith.constant 1 : index
    %c0_51 = arith.constant 0 : index
    %c0_52 = arith.constant 0 : index
    %72 = vector.load %arg6[%c1_50, %c0_51, %c0_52] : memref<4x32x8xf32, #tpu.memory_space<vmem>>, vector<1x32x8xf32>
    %73 = vector.shape_cast %72 : vector<1x32x8xf32> to vector<32x8xf32>
    %cst_53 = arith.constant dense<0.000000e+00> : vector<16x8xf32>
    %74 = tpu.matmul %0, %73, %cst_53 {dimension_numbers = #tpu.dot_dimension_numbers<[1], [0], [0], [1], [0, 0, 1, 1], [], []>} : vector<16x32xf32>, vector<32x8xf32>, vector<16x8xf32> -> vector<16x8xf32>
    %c1_54 = arith.constant 1 : index
    %c0_55 = arith.constant 0 : index
    %c0_56 = arith.constant 0 : index
    %75 = vector.load %arg7[%c1_54, %c0_55, %c0_56] : memref<4x1x8xf32, #tpu.memory_space<vmem>>, vector<1x1x8xf32>
    %76 = vector.shape_cast %75 : vector<1x1x8xf32> to vector<1x8xf32>
    %77 = vector.broadcast %76 : vector<1x8xf32> to vector<16x8xf32>
    %78 = arith.addf %74, %77 : vector<16x8xf32>
    %79 = vector.extract_strided_slice %64 {offsets = [0, 0], sizes = [8, 8], strides = [1, 1]} : vector<16x8xf32> to vector<8x8xf32>
    %80 = vector.extract_strided_slice %71 {offsets = [0, 0], sizes = [8, 8], strides = [1, 1]} : vector<16x8xf32> to vector<8x8xf32>
    %81 = vector.extract_strided_slice %78 {offsets = [0, 0], sizes = [8, 8], strides = [1, 1]} : vector<16x8xf32> to vector<8x8xf32>
    %cst_57 = arith.constant dense<0.000000e+00> : vector<8x8xf32>
    %82 = tpu.matmul %79, %80, %cst_57 {dimension_numbers = #tpu.dot_dimension_numbers<[1], [1], [0], [0], [0, 0, 1, 0], [], []>} : vector<8x8xf32>, vector<8x8xf32>, vector<8x8xf32> -> vector<8x8xf32>
    %cst_58 = arith.constant dense<0xFF800000> : vector<8xf32>
    %83 = vector.multi_reduction <maximumf>, %82, %cst_58 [1] : vector<8x8xf32> to vector<8xf32>
    %84 = vector.shape_cast %83 : vector<8xf32> to vector<8x1xf32>
    %85 = vector.broadcast %84 : vector<8x1xf32> to vector<8x8xf32>
    %86 = arith.subf %82, %85 : vector<8x8xf32>
    %87 = math.exp %86 : vector<8x8xf32>
    %cst_59 = arith.constant dense<0.000000e+00> : vector<8xf32>
    %88 = vector.multi_reduction <add>, %87, %cst_59 [1] : vector<8x8xf32> to vector<8xf32>
    %89 = vector.shape_cast %88 : vector<8xf32> to vector<8x1xf32>
    %90 = tpu.reciprocal %89 {approx = true} : vector<8x1xf32> -> vector<8x1xf32>
    %91 = vector.broadcast %90 : vector<8x1xf32> to vector<8x8xf32>
    %92 = arith.mulf %87, %91 : vector<8x8xf32>
    %cst_60 = arith.constant dense<0.000000e+00> : vector<8x8xf32>
    %93 = tpu.matmul %92, %81, %cst_60 {dimension_numbers = #tpu.dot_dimension_numbers<[1], [0], [0], [1], [0, 0, 1, 1], [], []>} : vector<8x8xf32>, vector<8x8xf32>, vector<8x8xf32> -> vector<8x8xf32>
    %c1_61 = arith.constant 1 : index
    %c0_62 = arith.constant 0 : index
    %c0_63 = arith.constant 0 : index
    %94 = vector.load %arg8[%c1_61, %c0_62, %c0_63] : memref<4x8x32xf32, #tpu.memory_space<vmem>>, vector<1x8x32xf32>
    %95 = vector.shape_cast %94 : vector<1x8x32xf32> to vector<8x32xf32>
    %cst_64 = arith.constant dense<0.000000e+00> : vector<8x32xf32>
    %96 = tpu.matmul %93, %95, %cst_64 {dimension_numbers = #tpu.dot_dimension_numbers<[1], [0], [0], [1], [0, 0, 1, 1], [], []>} : vector<8x8xf32>, vector<8x32xf32>, vector<8x32xf32> -> vector<8x32xf32>
    %97 = arith.addf %39, %96 : vector<8x32xf32>
    %98 = vector.extract_strided_slice %64 {offsets = [8, 0], sizes = [8, 8], strides = [1, 1]} : vector<16x8xf32> to vector<8x8xf32>
    %99 = vector.extract_strided_slice %71 {offsets = [8, 0], sizes = [8, 8], strides = [1, 1]} : vector<16x8xf32> to vector<8x8xf32>
    %100 = vector.extract_strided_slice %78 {offsets = [8, 0], sizes = [8, 8], strides = [1, 1]} : vector<16x8xf32> to vector<8x8xf32>
    %cst_65 = arith.constant dense<0.000000e+00> : vector<8x8xf32>
    %101 = tpu.matmul %98, %99, %cst_65 {dimension_numbers = #tpu.dot_dimension_numbers<[1], [1], [0], [0], [0, 0, 1, 0], [], []>} : vector<8x8xf32>, vector<8x8xf32>, vector<8x8xf32> -> vector<8x8xf32>
    %cst_66 = arith.constant dense<0xFF800000> : vector<8xf32>
    %102 = vector.multi_reduction <maximumf>, %101, %cst_66 [1] : vector<8x8xf32> to vector<8xf32>
    %103 = vector.shape_cast %102 : vector<8xf32> to vector<8x1xf32>
    %104 = vector.broadcast %103 : vector<8x1xf32> to vector<8x8xf32>
    %105 = arith.subf %101, %104 : vector<8x8xf32>
    %106 = math.exp %105 : vector<8x8xf32>
    %cst_67 = arith.constant dense<0.000000e+00> : vector<8xf32>
    %107 = vector.multi_reduction <add>, %106, %cst_67 [1] : vector<8x8xf32> to vector<8xf32>
    %108 = vector.shape_cast %107 : vector<8xf32> to vector<8x1xf32>
    %109 = tpu.reciprocal %108 {approx = true} : vector<8x1xf32> -> vector<8x1xf32>
    %110 = vector.broadcast %109 : vector<8x1xf32> to vector<8x8xf32>
    %111 = arith.mulf %106, %110 : vector<8x8xf32>
    %cst_68 = arith.constant dense<0.000000e+00> : vector<8x8xf32>
    %112 = tpu.matmul %111, %100, %cst_68 {dimension_numbers = #tpu.dot_dimension_numbers<[1], [0], [0], [1], [0, 0, 1, 1], [], []>} : vector<8x8xf32>, vector<8x8xf32>, vector<8x8xf32> -> vector<8x8xf32>
    %c1_69 = arith.constant 1 : index
    %c0_70 = arith.constant 0 : index
    %c0_71 = arith.constant 0 : index
    %113 = vector.load %arg8[%c1_69, %c0_70, %c0_71] : memref<4x8x32xf32, #tpu.memory_space<vmem>>, vector<1x8x32xf32>
    %114 = vector.shape_cast %113 : vector<1x8x32xf32> to vector<8x32xf32>
    %cst_72 = arith.constant dense<0.000000e+00> : vector<8x32xf32>
    %115 = tpu.matmul %112, %114, %cst_72 {dimension_numbers = #tpu.dot_dimension_numbers<[1], [0], [0], [1], [0, 0, 1, 1], [], []>} : vector<8x8xf32>, vector<8x32xf32>, vector<8x32xf32> -> vector<8x32xf32>
    %116 = arith.addf %57, %115 : vector<8x32xf32>
    %c2 = arith.constant 2 : index
    %c0_73 = arith.constant 0 : index
    %c0_74 = arith.constant 0 : index
    %117 = vector.load %arg2[%c2, %c0_73, %c0_74] : memref<4x32x8xf32, #tpu.memory_space<vmem>>, vector<1x32x8xf32>
    %118 = vector.shape_cast %117 : vector<1x32x8xf32> to vector<32x8xf32>
    %cst_75 = arith.constant dense<0.000000e+00> : vector<16x8xf32>
    %119 = tpu.matmul %0, %118, %cst_75 {dimension_numbers = #tpu.dot_dimension_numbers<[1], [0], [0], [1], [0, 0, 1, 1], [], []>} : vector<16x32xf32>, vector<32x8xf32>, vector<16x8xf32> -> vector<16x8xf32>
    %c2_76 = arith.constant 2 : index
    %c0_77 = arith.constant 0 : index
    %c0_78 = arith.constant 0 : index
    %120 = vector.load %arg3[%c2_76, %c0_77, %c0_78] : memref<4x1x8xf32, #tpu.memory_space<vmem>>, vector<1x1x8xf32>
    %121 = vector.shape_cast %120 : vector<1x1x8xf32> to vector<1x8xf32>
    %122 = vector.broadcast %121 : vector<1x8xf32> to vector<16x8xf32>
    %123 = arith.addf %119, %122 : vector<16x8xf32>
    %c2_79 = arith.constant 2 : index
    %c0_80 = arith.constant 0 : index
    %c0_81 = arith.constant 0 : index
    %124 = vector.load %arg4[%c2_79, %c0_80, %c0_81] : memref<4x32x8xf32, #tpu.memory_space<vmem>>, vector<1x32x8xf32>
    %125 = vector.shape_cast %124 : vector<1x32x8xf32> to vector<32x8xf32>
    %cst_82 = arith.constant dense<0.000000e+00> : vector<16x8xf32>
    %126 = tpu.matmul %0, %125, %cst_82 {dimension_numbers = #tpu.dot_dimension_numbers<[1], [0], [0], [1], [0, 0, 1, 1], [], []>} : vector<16x32xf32>, vector<32x8xf32>, vector<16x8xf32> -> vector<16x8xf32>
    %c2_83 = arith.constant 2 : index
    %c0_84 = arith.constant 0 : index
    %c0_85 = arith.constant 0 : index
    %127 = vector.load %arg5[%c2_83, %c0_84, %c0_85] : memref<4x1x8xf32, #tpu.memory_space<vmem>>, vector<1x1x8xf32>
    %128 = vector.shape_cast %127 : vector<1x1x8xf32> to vector<1x8xf32>
    %129 = vector.broadcast %128 : vector<1x8xf32> to vector<16x8xf32>
    %130 = arith.addf %126, %129 : vector<16x8xf32>
    %c2_86 = arith.constant 2 : index
    %c0_87 = arith.constant 0 : index
    %c0_88 = arith.constant 0 : index
    %131 = vector.load %arg6[%c2_86, %c0_87, %c0_88] : memref<4x32x8xf32, #tpu.memory_space<vmem>>, vector<1x32x8xf32>
    %132 = vector.shape_cast %131 : vector<1x32x8xf32> to vector<32x8xf32>
    %cst_89 = arith.constant dense<0.000000e+00> : vector<16x8xf32>
    %133 = tpu.matmul %0, %132, %cst_89 {dimension_numbers = #tpu.dot_dimension_numbers<[1], [0], [0], [1], [0, 0, 1, 1], [], []>} : vector<16x32xf32>, vector<32x8xf32>, vector<16x8xf32> -> vector<16x8xf32>
    %c2_90 = arith.constant 2 : index
    %c0_91 = arith.constant 0 : index
    %c0_92 = arith.constant 0 : index
    %134 = vector.load %arg7[%c2_90, %c0_91, %c0_92] : memref<4x1x8xf32, #tpu.memory_space<vmem>>, vector<1x1x8xf32>
    %135 = vector.shape_cast %134 : vector<1x1x8xf32> to vector<1x8xf32>
    %136 = vector.broadcast %135 : vector<1x8xf32> to vector<16x8xf32>
    %137 = arith.addf %133, %136 : vector<16x8xf32>
    %138 = vector.extract_strided_slice %123 {offsets = [0, 0], sizes = [8, 8], strides = [1, 1]} : vector<16x8xf32> to vector<8x8xf32>
    %139 = vector.extract_strided_slice %130 {offsets = [0, 0], sizes = [8, 8], strides = [1, 1]} : vector<16x8xf32> to vector<8x8xf32>
    %140 = vector.extract_strided_slice %137 {offsets = [0, 0], sizes = [8, 8], strides = [1, 1]} : vector<16x8xf32> to vector<8x8xf32>
    %cst_93 = arith.constant dense<0.000000e+00> : vector<8x8xf32>
    %141 = tpu.matmul %138, %139, %cst_93 {dimension_numbers = #tpu.dot_dimension_numbers<[1], [1], [0], [0], [0, 0, 1, 0], [], []>} : vector<8x8xf32>, vector<8x8xf32>, vector<8x8xf32> -> vector<8x8xf32>
    %cst_94 = arith.constant dense<0xFF800000> : vector<8xf32>
    %142 = vector.multi_reduction <maximumf>, %141, %cst_94 [1] : vector<8x8xf32> to vector<8xf32>
    %143 = vector.shape_cast %142 : vector<8xf32> to vector<8x1xf32>
    %144 = vector.broadcast %143 : vector<8x1xf32> to vector<8x8xf32>
    %145 = arith.subf %141, %144 : vector<8x8xf32>
    %146 = math.exp %145 : vector<8x8xf32>
    %cst_95 = arith.constant dense<0.000000e+00> : vector<8xf32>
    %147 = vector.multi_reduction <add>, %146, %cst_95 [1] : vector<8x8xf32> to vector<8xf32>
    %148 = vector.shape_cast %147 : vector<8xf32> to vector<8x1xf32>
    %149 = tpu.reciprocal %148 {approx = true} : vector<8x1xf32> -> vector<8x1xf32>
    %150 = vector.broadcast %149 : vector<8x1xf32> to vector<8x8xf32>
    %151 = arith.mulf %146, %150 : vector<8x8xf32>
    %cst_96 = arith.constant dense<0.000000e+00> : vector<8x8xf32>
    %152 = tpu.matmul %151, %140, %cst_96 {dimension_numbers = #tpu.dot_dimension_numbers<[1], [0], [0], [1], [0, 0, 1, 1], [], []>} : vector<8x8xf32>, vector<8x8xf32>, vector<8x8xf32> -> vector<8x8xf32>
    %c2_97 = arith.constant 2 : index
    %c0_98 = arith.constant 0 : index
    %c0_99 = arith.constant 0 : index
    %153 = vector.load %arg8[%c2_97, %c0_98, %c0_99] : memref<4x8x32xf32, #tpu.memory_space<vmem>>, vector<1x8x32xf32>
    %154 = vector.shape_cast %153 : vector<1x8x32xf32> to vector<8x32xf32>
    %cst_100 = arith.constant dense<0.000000e+00> : vector<8x32xf32>
    %155 = tpu.matmul %152, %154, %cst_100 {dimension_numbers = #tpu.dot_dimension_numbers<[1], [0], [0], [1], [0, 0, 1, 1], [], []>} : vector<8x8xf32>, vector<8x32xf32>, vector<8x32xf32> -> vector<8x32xf32>
    %156 = arith.addf %97, %155 : vector<8x32xf32>
    %157 = vector.extract_strided_slice %123 {offsets = [8, 0], sizes = [8, 8], strides = [1, 1]} : vector<16x8xf32> to vector<8x8xf32>
    %158 = vector.extract_strided_slice %130 {offsets = [8, 0], sizes = [8, 8], strides = [1, 1]} : vector<16x8xf32> to vector<8x8xf32>
    %159 = vector.extract_strided_slice %137 {offsets = [8, 0], sizes = [8, 8], strides = [1, 1]} : vector<16x8xf32> to vector<8x8xf32>
    %cst_101 = arith.constant dense<0.000000e+00> : vector<8x8xf32>
    %160 = tpu.matmul %157, %158, %cst_101 {dimension_numbers = #tpu.dot_dimension_numbers<[1], [1], [0], [0], [0, 0, 1, 0], [], []>} : vector<8x8xf32>, vector<8x8xf32>, vector<8x8xf32> -> vector<8x8xf32>
    %cst_102 = arith.constant dense<0xFF800000> : vector<8xf32>
    %161 = vector.multi_reduction <maximumf>, %160, %cst_102 [1] : vector<8x8xf32> to vector<8xf32>
    %162 = vector.shape_cast %161 : vector<8xf32> to vector<8x1xf32>
    %163 = vector.broadcast %162 : vector<8x1xf32> to vector<8x8xf32>
    %164 = arith.subf %160, %163 : vector<8x8xf32>
    %165 = math.exp %164 : vector<8x8xf32>
    %cst_103 = arith.constant dense<0.000000e+00> : vector<8xf32>
    %166 = vector.multi_reduction <add>, %165, %cst_103 [1] : vector<8x8xf32> to vector<8xf32>
    %167 = vector.shape_cast %166 : vector<8xf32> to vector<8x1xf32>
    %168 = tpu.reciprocal %167 {approx = true} : vector<8x1xf32> -> vector<8x1xf32>
    %169 = vector.broadcast %168 : vector<8x1xf32> to vector<8x8xf32>
    %170 = arith.mulf %165, %169 : vector<8x8xf32>
    %cst_104 = arith.constant dense<0.000000e+00> : vector<8x8xf32>
    %171 = tpu.matmul %170, %159, %cst_104 {dimension_numbers = #tpu.dot_dimension_numbers<[1], [0], [0], [1], [0, 0, 1, 1], [], []>} : vector<8x8xf32>, vector<8x8xf32>, vector<8x8xf32> -> vector<8x8xf32>
    %c2_105 = arith.constant 2 : index
    %c0_106 = arith.constant 0 : index
    %c0_107 = arith.constant 0 : index
    %172 = vector.load %arg8[%c2_105, %c0_106, %c0_107] : memref<4x8x32xf32, #tpu.memory_space<vmem>>, vector<1x8x32xf32>
    %173 = vector.shape_cast %172 : vector<1x8x32xf32> to vector<8x32xf32>
    %cst_108 = arith.constant dense<0.000000e+00> : vector<8x32xf32>
    %174 = tpu.matmul %171, %173, %cst_108 {dimension_numbers = #tpu.dot_dimension_numbers<[1], [0], [0], [1], [0, 0, 1, 1], [], []>} : vector<8x8xf32>, vector<8x32xf32>, vector<8x32xf32> -> vector<8x32xf32>
    %175 = arith.addf %116, %174 : vector<8x32xf32>
    %c3 = arith.constant 3 : index
    %c0_109 = arith.constant 0 : index
    %c0_110 = arith.constant 0 : index
    %176 = vector.load %arg2[%c3, %c0_109, %c0_110] : memref<4x32x8xf32, #tpu.memory_space<vmem>>, vector<1x32x8xf32>
    %177 = vector.shape_cast %176 : vector<1x32x8xf32> to vector<32x8xf32>
    %cst_111 = arith.constant dense<0.000000e+00> : vector<16x8xf32>
    %178 = tpu.matmul %0, %177, %cst_111 {dimension_numbers = #tpu.dot_dimension_numbers<[1], [0], [0], [1], [0, 0, 1, 1], [], []>} : vector<16x32xf32>, vector<32x8xf32>, vector<16x8xf32> -> vector<16x8xf32>
    %c3_112 = arith.constant 3 : index
    %c0_113 = arith.constant 0 : index
    %c0_114 = arith.constant 0 : index
    %179 = vector.load %arg3[%c3_112, %c0_113, %c0_114] : memref<4x1x8xf32, #tpu.memory_space<vmem>>, vector<1x1x8xf32>
    %180 = vector.shape_cast %179 : vector<1x1x8xf32> to vector<1x8xf32>
    %181 = vector.broadcast %180 : vector<1x8xf32> to vector<16x8xf32>
    %182 = arith.addf %178, %181 : vector<16x8xf32>
    %c3_115 = arith.constant 3 : index
    %c0_116 = arith.constant 0 : index
    %c0_117 = arith.constant 0 : index
    %183 = vector.load %arg4[%c3_115, %c0_116, %c0_117] : memref<4x32x8xf32, #tpu.memory_space<vmem>>, vector<1x32x8xf32>
    %184 = vector.shape_cast %183 : vector<1x32x8xf32> to vector<32x8xf32>
    %cst_118 = arith.constant dense<0.000000e+00> : vector<16x8xf32>
    %185 = tpu.matmul %0, %184, %cst_118 {dimension_numbers = #tpu.dot_dimension_numbers<[1], [0], [0], [1], [0, 0, 1, 1], [], []>} : vector<16x32xf32>, vector<32x8xf32>, vector<16x8xf32> -> vector<16x8xf32>
    %c3_119 = arith.constant 3 : index
    %c0_120 = arith.constant 0 : index
    %c0_121 = arith.constant 0 : index
    %186 = vector.load %arg5[%c3_119, %c0_120, %c0_121] : memref<4x1x8xf32, #tpu.memory_space<vmem>>, vector<1x1x8xf32>
    %187 = vector.shape_cast %186 : vector<1x1x8xf32> to vector<1x8xf32>
    %188 = vector.broadcast %187 : vector<1x8xf32> to vector<16x8xf32>
    %189 = arith.addf %185, %188 : vector<16x8xf32>
    %c3_122 = arith.constant 3 : index
    %c0_123 = arith.constant 0 : index
    %c0_124 = arith.constant 0 : index
    %190 = vector.load %arg6[%c3_122, %c0_123, %c0_124] : memref<4x32x8xf32, #tpu.memory_space<vmem>>, vector<1x32x8xf32>
    %191 = vector.shape_cast %190 : vector<1x32x8xf32> to vector<32x8xf32>
    %cst_125 = arith.constant dense<0.000000e+00> : vector<16x8xf32>
    %192 = tpu.matmul %0, %191, %cst_125 {dimension_numbers = #tpu.dot_dimension_numbers<[1], [0], [0], [1], [0, 0, 1, 1], [], []>} : vector<16x32xf32>, vector<32x8xf32>, vector<16x8xf32> -> vector<16x8xf32>
    %c3_126 = arith.constant 3 : index
    %c0_127 = arith.constant 0 : index
    %c0_128 = arith.constant 0 : index
    %193 = vector.load %arg7[%c3_126, %c0_127, %c0_128] : memref<4x1x8xf32, #tpu.memory_space<vmem>>, vector<1x1x8xf32>
    %194 = vector.shape_cast %193 : vector<1x1x8xf32> to vector<1x8xf32>
    %195 = vector.broadcast %194 : vector<1x8xf32> to vector<16x8xf32>
    %196 = arith.addf %192, %195 : vector<16x8xf32>
    %197 = vector.extract_strided_slice %182 {offsets = [0, 0], sizes = [8, 8], strides = [1, 1]} : vector<16x8xf32> to vector<8x8xf32>
    %198 = vector.extract_strided_slice %189 {offsets = [0, 0], sizes = [8, 8], strides = [1, 1]} : vector<16x8xf32> to vector<8x8xf32>
    %199 = vector.extract_strided_slice %196 {offsets = [0, 0], sizes = [8, 8], strides = [1, 1]} : vector<16x8xf32> to vector<8x8xf32>
    %cst_129 = arith.constant dense<0.000000e+00> : vector<8x8xf32>
    %200 = tpu.matmul %197, %198, %cst_129 {dimension_numbers = #tpu.dot_dimension_numbers<[1], [1], [0], [0], [0, 0, 1, 0], [], []>} : vector<8x8xf32>, vector<8x8xf32>, vector<8x8xf32> -> vector<8x8xf32>
    %cst_130 = arith.constant dense<0xFF800000> : vector<8xf32>
    %201 = vector.multi_reduction <maximumf>, %200, %cst_130 [1] : vector<8x8xf32> to vector<8xf32>
    %202 = vector.shape_cast %201 : vector<8xf32> to vector<8x1xf32>
    %203 = vector.broadcast %202 : vector<8x1xf32> to vector<8x8xf32>
    %204 = arith.subf %200, %203 : vector<8x8xf32>
    %205 = math.exp %204 : vector<8x8xf32>
    %cst_131 = arith.constant dense<0.000000e+00> : vector<8xf32>
    %206 = vector.multi_reduction <add>, %205, %cst_131 [1] : vector<8x8xf32> to vector<8xf32>
    %207 = vector.shape_cast %206 : vector<8xf32> to vector<8x1xf32>
    %208 = tpu.reciprocal %207 {approx = true} : vector<8x1xf32> -> vector<8x1xf32>
    %209 = vector.broadcast %208 : vector<8x1xf32> to vector<8x8xf32>
    %210 = arith.mulf %205, %209 : vector<8x8xf32>
    %cst_132 = arith.constant dense<0.000000e+00> : vector<8x8xf32>
    %211 = tpu.matmul %210, %199, %cst_132 {dimension_numbers = #tpu.dot_dimension_numbers<[1], [0], [0], [1], [0, 0, 1, 1], [], []>} : vector<8x8xf32>, vector<8x8xf32>, vector<8x8xf32> -> vector<8x8xf32>
    %c3_133 = arith.constant 3 : index
    %c0_134 = arith.constant 0 : index
    %c0_135 = arith.constant 0 : index
    %212 = vector.load %arg8[%c3_133, %c0_134, %c0_135] : memref<4x8x32xf32, #tpu.memory_space<vmem>>, vector<1x8x32xf32>
    %213 = vector.shape_cast %212 : vector<1x8x32xf32> to vector<8x32xf32>
    %cst_136 = arith.constant dense<0.000000e+00> : vector<8x32xf32>
    %214 = tpu.matmul %211, %213, %cst_136 {dimension_numbers = #tpu.dot_dimension_numbers<[1], [0], [0], [1], [0, 0, 1, 1], [], []>} : vector<8x8xf32>, vector<8x32xf32>, vector<8x32xf32> -> vector<8x32xf32>
    %215 = arith.addf %156, %214 : vector<8x32xf32>
    %216 = vector.extract_strided_slice %182 {offsets = [8, 0], sizes = [8, 8], strides = [1, 1]} : vector<16x8xf32> to vector<8x8xf32>
    %217 = vector.extract_strided_slice %189 {offsets = [8, 0], sizes = [8, 8], strides = [1, 1]} : vector<16x8xf32> to vector<8x8xf32>
    %218 = vector.extract_strided_slice %196 {offsets = [8, 0], sizes = [8, 8], strides = [1, 1]} : vector<16x8xf32> to vector<8x8xf32>
    %cst_137 = arith.constant dense<0.000000e+00> : vector<8x8xf32>
    %219 = tpu.matmul %216, %217, %cst_137 {dimension_numbers = #tpu.dot_dimension_numbers<[1], [1], [0], [0], [0, 0, 1, 0], [], []>} : vector<8x8xf32>, vector<8x8xf32>, vector<8x8xf32> -> vector<8x8xf32>
    %cst_138 = arith.constant dense<0xFF800000> : vector<8xf32>
    %220 = vector.multi_reduction <maximumf>, %219, %cst_138 [1] : vector<8x8xf32> to vector<8xf32>
    %221 = vector.shape_cast %220 : vector<8xf32> to vector<8x1xf32>
    %222 = vector.broadcast %221 : vector<8x1xf32> to vector<8x8xf32>
    %223 = arith.subf %219, %222 : vector<8x8xf32>
    %224 = math.exp %223 : vector<8x8xf32>
    %cst_139 = arith.constant dense<0.000000e+00> : vector<8xf32>
    %225 = vector.multi_reduction <add>, %224, %cst_139 [1] : vector<8x8xf32> to vector<8xf32>
    %226 = vector.shape_cast %225 : vector<8xf32> to vector<8x1xf32>
    %227 = tpu.reciprocal %226 {approx = true} : vector<8x1xf32> -> vector<8x1xf32>
    %228 = vector.broadcast %227 : vector<8x1xf32> to vector<8x8xf32>
    %229 = arith.mulf %224, %228 : vector<8x8xf32>
    %cst_140 = arith.constant dense<0.000000e+00> : vector<8x8xf32>
    %230 = tpu.matmul %229, %218, %cst_140 {dimension_numbers = #tpu.dot_dimension_numbers<[1], [0], [0], [1], [0, 0, 1, 1], [], []>} : vector<8x8xf32>, vector<8x8xf32>, vector<8x8xf32> -> vector<8x8xf32>
    %c3_141 = arith.constant 3 : index
    %c0_142 = arith.constant 0 : index
    %c0_143 = arith.constant 0 : index
    %231 = vector.load %arg8[%c3_141, %c0_142, %c0_143] : memref<4x8x32xf32, #tpu.memory_space<vmem>>, vector<1x8x32xf32>
    %232 = vector.shape_cast %231 : vector<1x8x32xf32> to vector<8x32xf32>
    %cst_144 = arith.constant dense<0.000000e+00> : vector<8x32xf32>
    %233 = tpu.matmul %230, %232, %cst_144 {dimension_numbers = #tpu.dot_dimension_numbers<[1], [0], [0], [1], [0, 0, 1, 1], [], []>} : vector<8x8xf32>, vector<8x32xf32>, vector<8x32xf32> -> vector<8x32xf32>
    %234 = arith.addf %175, %233 : vector<8x32xf32>
    %c0_145 = arith.constant 0 : index
    %c0_146 = arith.constant 0 : index
    %235 = vector.load %arg9[%c0_145, %c0_146] : memref<1x32xf32, #tpu.memory_space<vmem>>, vector<1x32xf32>
    %236 = vector.broadcast %235 : vector<1x32xf32> to vector<8x32xf32>
    %237 = arith.addf %215, %236 : vector<8x32xf32>
    %c0_147 = arith.constant 0 : index
    %c0_148 = arith.constant 0 : index
    %238 = vector.load %arg10[%c0_147, %c0_148] : memref<16x32xf32, #tpu.memory_space<vmem>>, vector<8x32xf32>
    tpu.vector_store %arg10[%c0_147, %c0_148], %237 {strides = array<i32>} : memref<16x32xf32, #tpu.memory_space<vmem>>, vector<8x32xf32>,
    %239 = vector.broadcast %235 : vector<1x32xf32> to vector<8x32xf32>
    %240 = arith.addf %234, %239 : vector<8x32xf32>
    %c8 = arith.constant 8 : index
    %c0_149 = arith.constant 0 : index
    %241 = vector.load %arg10[%c8, %c0_149] : memref<16x32xf32, #tpu.memory_space<vmem>>, vector<8x32xf32>
    tpu.vector_store %arg10[%c8, %c0_149], %240 {strides = array<i32>} : memref<16x32xf32, #tpu.memory_space<vmem>>, vector<8x32xf32>,
    return
  }
  func.func @transform_0(%arg0: i32) -> (i32, i32) {
    %c0_i32 = arith.constant 0 : i32
    %c0_i32_0 = arith.constant 0 : i32
    %c0_i32_1 = arith.constant 0 : i32
    return %c0_i32, %c0_i32_0 : i32, i32
  }
  func.func @transform_1(%arg0: i32) -> (i32, i32, i32) {
    %c0_i32 = arith.constant 0 : i32
    %c0_i32_0 = arith.constant 0 : i32
    %c0_i32_1 = arith.constant 0 : i32
    %c0_i32_2 = arith.constant 0 : i32
    return %c0_i32, %c0_i32_0, %c0_i32_1 : i32, i32, i32
  }
  func.func @transform_2(%arg0: i32) -> (i32, i32, i32) {
    %c0_i32 = arith.constant 0 : i32
    %c0_i32_0 = arith.constant 0 : i32
    %c0_i32_1 = arith.constant 0 : i32
    %c0_i32_2 = arith.constant 0 : i32
    return %c0_i32, %c0_i32_0, %c0_i32_1 : i32, i32, i32
  }
  func.func @transform_3(%arg0: i32) -> (i32, i32, i32) {
    %c0_i32 = arith.constant 0 : i32
    %c0_i32_0 = arith.constant 0 : i32
    %c0_i32_1 = arith.constant 0 : i32
    %c0_i32_2 = arith.constant 0 : i32
    return %c0_i32, %c0_i32_0, %c0_i32_1 : i32, i32, i32
  }
  func.func @transform_4(%arg0: i32) -> (i32, i32, i32) {
    %c0_i32 = arith.constant 0 : i32
    %c0_i32_0 = arith.constant 0 : i32
    %c0_i32_1 = arith.constant 0 : i32
    %c0_i32_2 = arith.constant 0 : i32
    return %c0_i32, %c0_i32_0, %c0_i32_1 : i32, i32, i32
  }
  func.func @transform_5(%arg0: i32) -> (i32, i32, i32) {
    %c0_i32 = arith.constant 0 : i32
    %c0_i32_0 = arith.constant 0 : i32
    %c0_i32_1 = arith.constant 0 : i32
    %c0_i32_2 = arith.constant 0 : i32
    return %c0_i32, %c0_i32_0, %c0_i32_1 : i32, i32, i32
  }
  func.func @transform_6(%arg0: i32) -> (i32, i32, i32) {
    %c0_i32 = arith.constant 0 : i32
    %c0_i32_0 = arith.constant 0 : i32
    %c0_i32_1 = arith.constant 0 : i32
    %c0_i32_2 = arith.constant 0 : i32
    return %c0_i32, %c0_i32_0, %c0_i32_1 : i32, i32, i32
  }
  func.func @transform_7(%arg0: i32) -> (i32, i32, i32) {
    %c0_i32 = arith.constant 0 : i32
    %c0_i32_0 = arith.constant 0 : i32
    %c0_i32_1 = arith.constant 0 : i32
    %c0_i32_2 = arith.constant 0 : i32
    return %c0_i32, %c0_i32_0, %c0_i32_1 : i32, i32, i32
  }
  func.func @transform_8(%arg0: i32) -> (i32, i32) {
    %c0_i32 = arith.constant 0 : i32
    %c0_i32_0 = arith.constant 0 : i32
    %c0_i32_1 = arith.constant 0 : i32
    return %c0_i32, %c0_i32_0 : i32, i32
  }
  func.func @transform_9(%arg0: i32) -> (i32, i32) {
    %c0_i32 = arith.constant 0 : i32
    %c0_i32_0 = arith.constant 0 : i32
    %c0_i32_1 = arith.constant 0 : i32
    return %c0_i32, %c0_i32_0 : i32, i32
  }
}

</mosaic_0001>

<llo_original>
// kernel: tpu_custom_call.1
$region0: #{tpu_custom_call.1}
  #allocation0 [shape = 'u32[]', space=smem, size = 0x4, offset = 0x4, fixed_abs, tag = 'smem constant byte address 0x4 - core index']
  #allocation1 [shape = 'u32[144,128]{1,0:T(1,128)}', space=vmem, size = 0x12000, scoped, tag = 'internal scratch']
  %s0 = inlined_call_operand.vmem [shape: f32[16,32], index: 0, kind: input, shape index: {}]
  %s1 = inlined_call_operand.vmem [shape: f32[4,32,8], index: 1, kind: input, shape index: {}]
  %s2 = inlined_call_operand.vmem [shape: f32[4,1,8], index: 2, kind: input, shape index: {}]
  %s3 = inlined_call_operand.vmem [shape: f32[4,32,8], index: 3, kind: input, shape index: {}]
  %s4 = inlined_call_operand.vmem [shape: f32[4,1,8], index: 4, kind: input, shape index: {}]
  %s5 = inlined_call_operand.vmem [shape: f32[4,32,8], index: 5, kind: input, shape index: {}]
  %s6 = inlined_call_operand.vmem [shape: f32[4,1,8], index: 6, kind: input, shape index: {}]
  %s7 = inlined_call_operand.vmem [shape: f32[4,8,32], index: 7, kind: input, shape index: {}]
  %s8 = inlined_call_operand.vmem [shape: f32[1,32], index: 8, kind: input, shape index: {}]
  %s9 = inlined_call_operand.hbm [shape: f32[16,32], index: 9, kind: output, shape index: {}]
  %s10 = sld [smem:[#allocation0]]
  $region46: #{tpu_custom_call.1} parent=0
    _
  %s12 = ssub.s32 1, %s10
  %s13 = scalar_select 0, %s12, %s10
  $region1: #{tpu_custom_call.1} parent=0
    #allocation2 [shape = 'u8[8192]{0}', space=vmem, size = 0x2000, scoped, tag = 'output window, operand 0, single buffered']
    #allocation3 [shape = 's32[1]{0}', space=sflag, size = 0x4, scoped, tag = 'scoped memory for tpu_custom_call.1']
    %14 = vsyncpa [#allocation3], 0
    // Predicated region
    $region2: #{tpu_custom_call.1} parent=1 // pred_check
      _
    $region3: #{tpu_custom_call.1} parent=1 // pred_check_branch
      %16 = sbr.rel (0) target = $region5
    $region4: #{tpu_custom_call.1} parent=1 // pred_region
      _
    $region5: #{tpu_custom_call.1} parent=1 // pred_fallthru
      _
    // Predicated region
    $region6: #{tpu_custom_call.1} parent=1 // pred_check
      _
    $region7: #{tpu_custom_call.1} parent=1 // pred_check_branch
      %18 = sbr.rel (0) target = $region9
    $region8: #{tpu_custom_call.1} parent=1 // pred_region
      _
    $region9: #{tpu_custom_call.1} parent=1 // pred_fallthru
      _
    // Predicated region
    $region10: #{tpu_custom_call.1} parent=1 // pred_check
      _
    $region11: #{tpu_custom_call.1} parent=1 // pred_check_branch
      %20 = sbr.rel (0) target = $region13
    $region12: #{tpu_custom_call.1} parent=1 // pred_region
      _
    $region13: #{tpu_custom_call.1} parent=1 // pred_fallthru
      _
    // Predicated region
    $region14: #{tpu_custom_call.1} parent=1 // pred_check
      _
    $region15: #{tpu_custom_call.1} parent=1 // pred_check_branch
      %22 = sbr.rel (0) target = $region17
    $region16: #{tpu_custom_call.1} parent=1 // pred_region
      _
    $region17: #{tpu_custom_call.1} parent=1 // pred_fallthru
      _
    // Predicated region
    $region18: #{tpu_custom_call.1} parent=1 // pred_check
      _
    $region19: #{tpu_custom_call.1} parent=1 // pred_check_branch
      %24 = sbr.rel (0) target = $region21
    $region20: #{tpu_custom_call.1} parent=1 // pred_region
      _
    $region21: #{tpu_custom_call.1} parent=1 // pred_fallthru
      _
    // Predicated region
    $region22: #{tpu_custom_call.1} parent=1 // pred_check
      _
    $region23: #{tpu_custom_call.1} parent=1 // pred_check_branch
      %26 = sbr.rel (0) target = $region25
    $region24: #{tpu_custom_call.1} parent=1 // pred_region
      _
    $region25: #{tpu_custom_call.1} parent=1 // pred_fallthru
      _
    // Predicated region
    $region26: #{tpu_custom_call.1} parent=1 // pred_check
      _
    $region27: #{tpu_custom_call.1} parent=1 // pred_check_branch
      %28 = sbr.rel (0) target = $region29
    $region28: #{tpu_custom_call.1} parent=1 // pred_region
      _
    $region29: #{tpu_custom_call.1} parent=1 // pred_fallthru
      _
    // Predicated region
    $region30: #{tpu_custom_call.1} parent=1 // pred_check
      _
    $region31: #{tpu_custom_call.1} parent=1 // pred_check_branch
      %30 = sbr.rel (0) target = $region33
    $region32: #{tpu_custom_call.1} parent=1 // pred_region
      _
    $region33: #{tpu_custom_call.1} parent=1 // pred_fallthru
      _
    // Predicated region
    $region34: #{tpu_custom_call.1} parent=1 // pred_check
      _
    $region35: #{tpu_custom_call.1} parent=1 // pred_check_branch
      %32 = sbr.rel (0) target = $region37
    $region36: #{tpu_custom_call.1} parent=1 // pred_region
      _
    $region37: #{tpu_custom_call.1} parent=1 // pred_fallthru
      _
    %v33 = vld [vmem:[%s0] sm:$0xff]
    %v34 = vld [vmem:[%s0 + $0x8] sm:$0xff]
    %v35 = vld [vmem:[%s1] sm:$0xff]
    %v36 = vld [vmem:[%s1 + $0x8] sm:$0xff]
    %v37 = vld [vmem:[%s1 + $0x10] sm:$0xff]
    %v38 = vld [vmem:[%s1 + $0x18] sm:$0xff]
    %v39 = vld [vmem:[%s2] sm:$0x1]
    %v41 = vlaneseq
    %v42 = vshrl.u32 %v41, 7
    %v43 = vsub.s32 0, %v42
    %v44 = vrot.slane %v39, %v43
    %vm46 = vcmask 261120
    %v48 = vsel %vm46, %v33, 0
    %v51 = vsel %vm46, %v34, 0
    %53 = vmatprep.subr.mxu0 0.0
    %54 = vmatpush1.msra.mxu0 0.0
    %55 = vmatprep.subr.mxu0 0.0
    %56 = vmatpush1.msra.mxu0 0.0
    %57 = vmatprep.subr.mxu0 0.0
    %58 = vmatpush1.msra.mxu0 0.0
    %59 = vmatprep.subr.mxu0 0.0
    %60 = vmatpush1.msra.mxu0 0.0
    %61 = vmatprep.subr.mxu0 0.0
    %62 = vmatpush1.msra.mxu0 0.0
    %63 = vmatprep.subr.mxu0 0.0
    %64 = vmatpush1.msra.mxu0 0.0
    %65 = vmatprep.subr.mxu0 0.0
    %66 = vmatpush1.msra.mxu0 0.0
    %67 = vmatprep.subr.mxu0 0.0
    %68 = vmatpush1.msra.mxu0 0.0
    %69 = vmatprep.subr.mxu0 0.0
    %70 = vmatpush1.msra.mxu0 0.0
    %71 = vmatprep.subr.mxu0 0.0
    %72 = vmatpush1.msra.mxu0 0.0
    %73 = vmatprep.subr.mxu0 0.0
    %74 = vmatpush1.msra.mxu0 0.0
    %75 = vmatprep.subr.mxu0 0.0
    %76 = vmatpush1.msra.mxu0 0.0
    %77 = vmatprep.subr.mxu0 0.0
    %78 = vmatpush1.msra.mxu0 %v38
    %79 = vmatprep.subr.mxu0 0.0
    %80 = vmatpush1.msra.mxu0 %v37
    %81 = vmatprep.subr.mxu0 0.0
    %82 = vmatpush1.msra.mxu0 %v36
    %83 = vmatprep.subr.mxu0 0.0
    %84 = vmatpush1.msra.mxu0 %v35
    %85 = vmatprep.subr.mxu0 0.0
    %86 = vmatpush2.msra.mxu0 0.0
    %87 = vmatprep.subr.mxu0 0.0
    %88 = vmatpush2.msra.mxu0 0.0
    %89 = vmatprep.subr.mxu0 0.0
    %90 = vmatpush2.msra.mxu0 0.0
    %91 = vmatprep.subr.mxu0 0.0
    %92 = vmatpush2.msra.mxu0 0.0
    %93 = vmatprep.subr.mxu0 0.0
    %94 = vmatpush2.msra.mxu0 0.0
    %95 = vmatprep.subr.mxu0 0.0
    %96 = vmatpush2.msra.mxu0 0.0
    %97 = vmatprep.subr.mxu0 0.0
    %98 = vmatpush2.msra.mxu0 0.0
    %99 = vmatprep.subr.mxu0 0.0
    %100 = vmatpush2.msra.mxu0 0.0
    %101 = vmatprep.subr.mxu0 0.0
    %102 = vmatpush2.msra.mxu0 0.0
    %103 = vmatprep.subr.mxu0 0.0
    %104 = vmatpush2.msra.mxu0 0.0
    %105 = vmatprep.subr.mxu0 0.0
    %106 = vmatpush2.msra.mxu0 0.0
    %107 = vmatprep.subr.mxu0 0.0
    %108 = vmatpush2.msra.mxu0 0.0
    %109 = vmatprep.subr.mxu0 0.0
    %110 = vmatpush2.msra.mxu0 0.0
    %111 = vmatprep.subr.mxu0 0.0
    %112 = vmatpush2.msra.mxu0 0.0
    %113 = vmatprep.subr.mxu0 0.0
    %114 = vmatpush2.msra.mxu0 0.0
    %115 = vmatprep.subr.mxu0 0.0
    %116 = vmatpush2.msra.mxu0 0.0
    %117 = vmatprep.mubr.f32.mxu0 0.0
    %118 = vmatmul.mubr.f32.gmra.mxu0 %v48
    %v119 = vpop.f32.mrf.mxu0
    %v120 = vadd.f32 %v44, %v119
    %v121 = vpop.f32.mrf.mxu0
    %122 = vmatprep.mubr.f32.mxu0 0.0
    %123 = vmatmul.mubr.f32.gmra.mxu0 %v51
    %v124 = vpop.f32.mrf.mxu0
    %v125 = vadd.f32 %v44, %v124
    %v126 = vpop.f32.mrf.mxu0
    %127 = vdwg.mxu0
    %v128 = vld [vmem:[%s3] sm:$0xff]
    %v129 = vld [vmem:[%s3 + $0x8] sm:$0xff]
    %v130 = vld [vmem:[%s3 + $0x10] sm:$0xff]
    %v131 = vld [vmem:[%s3 + $0x18] sm:$0xff]
    %v132 = vld [vmem:[%s4] sm:$0x1]
    %v134 = vlaneseq
    %v135 = vshrl.u32 %v134, 7
    %v136 = vsub.s32 0, %v135
    %v137 = vrot.slane %v132, %v136
    %139 = vmatprep.subr.mxu0 0.0
    %140 = vmatpush1.msra.mxu0 0.0
    %141 = vmatprep.subr.mxu0 0.0
    %142 = vmatpush1.msra.mxu0 0.0
    %143 = vmatprep.subr.mxu0 0.0
    %144 = vmatpush1.msra.mxu0 0.0
    %145 = vmatprep.subr.mxu0 0.0
    %146 = vmatpush1.msra.mxu0 0.0
    %147 = vmatprep.subr.mxu0 0.0
    %148 = vmatpush1.msra.mxu0 0.0
    %149 = vmatprep.subr.mxu0 0.0
    %150 = vmatpush1.msra.mxu0 0.0
    %151 = vmatprep.subr.mxu0 0.0
    %152 = vmatpush1.msra.mxu0 0.0
    %153 = vmatprep.subr.mxu0 0.0
    %154 = vmatpush1.msra.mxu0 0.0
    %155 = vmatprep.subr.mxu0 0.0
    %156 = vmatpush1.msra.mxu0 0.0
    %157 = vmatprep.subr.mxu0 0.0
    %158 = vmatpush1.msra.mxu0 0.0
    %159 = vmatprep.subr.mxu0 0.0
    %160 = vmatpush1.msra.mxu0 0.0
    %161 = vmatprep.subr.mxu0 0.0
    %162 = vmatpush1.msra.mxu0 0.0
    %163 = vmatprep.subr.mxu0 0.0
    %164 = vmatpush1.msra.mxu0 %v131
    %165 = vmatprep.subr.mxu0 0.0
    %166 = vmatpush1.msra.mxu0 %v130
    %167 = vmatprep.subr.mxu0 0.0
    %168 = vmatpush1.msra.mxu0 %v129
    %169 = vmatprep.subr.mxu0 0.0
    %170 = vmatpush1.msra.mxu0 %v128
    %171 = vmatprep.subr.mxu0 0.0
    %172 = vmatpush2.msra.mxu0 0.0
    %173 = vmatprep.subr.mxu0 0.0
    %174 = vmatpush2.msra.mxu0 0.0
    %175 = vmatprep.subr.mxu0 0.0
    %176 = vmatpush2.msra.mxu0 0.0
    %177 = vmatprep.subr.mxu0 0.0
    %178 = vmatpush2.msra.mxu0 0.0
    %179 = vmatprep.subr.mxu0 0.0
    %180 = vmatpush2.msra.mxu0 0.0
    %181 = vmatprep.subr.mxu0 0.0
    %182 = vmatpush2.msra.mxu0 0.0
    %183 = vmatprep.subr.mxu0 0.0
    %184 = vmatpush2.msra.mxu0 0.0
    %185 = vmatprep.subr.mxu0 0.0
    %186 = vmatpush2.msra.mxu0 0.0
    %187 = vmatprep.subr.mxu0 0.0
    %188 = vmatpush2.msra.mxu0 0.0
    %189 = vmatprep.subr.mxu0 0.0
    %190 = vmatpush2.msra.mxu0 0.0
    %191 = vmatprep.subr.mxu0 0.0
    %192 = vmatpush2.msra.mxu0 0.0
    %193 = vmatprep.subr.mxu0 0.0
    %194 = vmatpush2.msra.mxu0 0.0
    %195 = vmatprep.subr.mxu0 0.0
    %196 = vmatpush2.msra.mxu0 0.0
    %197 = vmatprep.subr.mxu0 0.0
    %198 = vmatpush2.msra.mxu0 0.0
    %199 = vmatprep.subr.mxu0 0.0
    %200 = vmatpush2.msra.mxu0 0.0
    %201 = vmatprep.subr.mxu0 0.0
    %202 = vmatpush2.msra.mxu0 0.0
    %203 = vmatprep.mubr.f32.mxu0 0.0
    %204 = vmatmul.mubr.f32.gmra.mxu0 %v48
    %v205 = vpop.f32.mrf.mxu0
    %v206 = vadd.f32 %v137, %v205
    %v207 = vpop.f32.mrf.mxu0
    %208 = vmatprep.mubr.f32.mxu0 0.0
    %209 = vmatmul.mubr.f32.gmra.mxu0 %v51
    %v210 = vpop.f32.mrf.mxu0
    %v211 = vadd.f32 %v137, %v210
    %v212 = vpop.f32.mrf.mxu0
    %213 = vdwg.mxu0
    %v214 = vld [vmem:[%s5] sm:$0xff]
    %v215 = vld [vmem:[%s5 + $0x8] sm:$0xff]
    %v216 = vld [vmem:[%s5 + $0x10] sm:$0xff]
    %v217 = vld [vmem:[%s5 + $0x18] sm:$0xff]
    %v218 = vld [vmem:[%s6] sm:$0x1]
    %v220 = vlaneseq
    %v221 = vshrl.u32 %v220, 7
    %v222 = vsub.s32 0, %v221
    %v223 = vrot.slane %v218, %v222
    %225 = vmatprep.subr.mxu0 0.0
    %226 = vmatpush1.msra.mxu0 0.0
    %227 = vmatprep.subr.mxu0 0.0
    %228 = vmatpush1.msra.mxu0 0.0
    %229 = vmatprep.subr.mxu0 0.0
    %230 = vmatpush1.msra.mxu0 0.0
    %231 = vmatprep.subr.mxu0 0.0
    %232 = vmatpush1.msra.mxu0 0.0
    %233 = vmatprep.subr.mxu0 0.0
    %234 = vmatpush1.msra.mxu0 0.0
    %235 = vmatprep.subr.mxu0 0.0
    %236 = vmatpush1.msra.mxu0 0.0
    %237 = vmatprep.subr.mxu0 0.0
    %238 = vmatpush1.msra.mxu0 0.0
    %239 = vmatprep.subr.mxu0 0.0
    %240 = vmatpush1.msra.mxu0 0.0
    %241 = vmatprep.subr.mxu0 0.0
    %242 = vmatpush1.msra.mxu0 0.0
    %243 = vmatprep.subr.mxu0 0.0
    %244 = vmatpush1.msra.mxu0 0.0
    %245 = vmatprep.subr.mxu0 0.0
    %246 = vmatpush1.msra.mxu0 0.0
    %247 = vmatprep.subr.mxu0 0.0
    %248 = vmatpush1.msra.mxu0 0.0
    %249 = vmatprep.subr.mxu0 0.0
    %250 = vmatpush1.msra.mxu0 %v217
    %251 = vmatprep.subr.mxu0 0.0
    %252 = vmatpush1.msra.mxu0 %v216
    %253 = vmatprep.subr.mxu0 0.0
    %254 = vmatpush1.msra.mxu0 %v215
    %255 = vmatprep.subr.mxu0 0.0
    %256 = vmatpush1.msra.mxu0 %v214
    %257 = vmatprep.subr.mxu0 0.0
    %258 = vmatpush2.msra.mxu0 0.0
    %259 = vmatprep.subr.mxu0 0.0
    %260 = vmatpush2.msra.mxu0 0.0
    %261 = vmatprep.subr.mxu0 0.0
    %262 = vmatpush2.msra.mxu0 0.0
    %263 = vmatprep.subr.mxu0 0.0
    %264 = vmatpush2.msra.mxu0 0.0
    %265 = vmatprep.subr.mxu0 0.0
    %266 = vmatpush2.msra.mxu0 0.0
    %267 = vmatprep.subr.mxu0 0.0
    %268 = vmatpush2.msra.mxu0 0.0
    %269 = vmatprep.subr.mxu0 0.0
    %270 = vmatpush2.msra.mxu0 0.0
    %271 = vmatprep.subr.mxu0 0.0
    %272 = vmatpush2.msra.mxu0 0.0
    %273 = vmatprep.subr.mxu0 0.0
    %274 = vmatpush2.msra.mxu0 0.0
    %275 = vmatprep.subr.mxu0 0.0
    %276 = vmatpush2.msra.mxu0 0.0
    %277 = vmatprep.subr.mxu0 0.0
    %278 = vmatpush2.msra.mxu0 0.0
    %279 = vmatprep.subr.mxu0 0.0
    %280 = vmatpush2.msra.mxu0 0.0
    %281 = vmatprep.subr.mxu0 0.0
    %282 = vmatpush2.msra.mxu0 0.0
    %283 = vmatprep.subr.mxu0 0.0
    %284 = vmatpush2.msra.mxu0 0.0
    %285 = vmatprep.subr.mxu0 0.0
    %286 = vmatpush2.msra.mxu0 0.0
    %287 = vmatprep.subr.mxu0 0.0
    %288 = vmatpush2.msra.mxu0 0.0
    %289 = vmatprep.mubr.f32.mxu0 0.0
    %290 = vmatmul.mubr.f32.gmra.mxu0 %v48
    %v291 = vpop.f32.mrf.mxu0
    %v292 = vadd.f32 %v223, %v291
    %v293 = vpop.f32.mrf.mxu0
    %294 = vmatprep.mubr.f32.mxu0 0.0
    %295 = vmatmul.mubr.f32.gmra.mxu0 %v51
    %v296 = vpop.f32.mrf.mxu0
    %v297 = vadd.f32 %v223, %v296
    %v298 = vpop.f32.mrf.mxu0
    %299 = vdwg.mxu0
    %vm300 = vcmask 64512
    %v302 = vsel %vm300, %v120, 0
    %v305 = vsel %vm300, %v206, 0
    %307 = vmatprep.subr.mxu0 0.0
    %308 = vmatpush1.xpose.msra.mxu0 0.0
    %309 = vmatprep.subr.mxu0 0.0
    %310 = vmatpush1.xpose.msra.mxu0 0.0
    %311 = vmatprep.subr.mxu0 0.0
    %312 = vmatpush1.xpose.msra.mxu0 0.0
    %313 = vmatprep.subr.mxu0 0.0
    %314 = vmatpush1.xpose.msra.mxu0 0.0
    %315 = vmatprep.subr.mxu0 0.0
    %316 = vmatpush1.xpose.msra.mxu0 0.0
    %317 = vmatprep.subr.mxu0 0.0
    %318 = vmatpush1.xpose.msra.mxu0 0.0
    %319 = vmatprep.subr.mxu0 0.0
    %320 = vmatpush1.xpose.msra.mxu0 0.0
    %321 = vmatprep.subr.mxu0 0.0
    %322 = vmatpush1.xpose.msra.mxu0 0.0
    %323 = vmatprep.subr.mxu0 0.0
    %324 = vmatpush1.xpose.msra.mxu0 0.0
    %325 = vmatprep.subr.mxu0 0.0
    %326 = vmatpush1.xpose.msra.mxu0 0.0
    %327 = vmatprep.subr.mxu0 0.0
    %328 = vmatpush1.xpose.msra.mxu0 0.0
    %329 = vmatprep.subr.mxu0 0.0
    %330 = vmatpush1.xpose.msra.mxu0 0.0
    %331 = vmatprep.subr.mxu0 0.0
    %332 = vmatpush1.xpose.msra.mxu0 0.0
    %333 = vmatprep.subr.mxu0 0.0
    %334 = vmatpush1.xpose.msra.mxu0 0.0
    %335 = vmatprep.subr.mxu0 0.0
    %336 = vmatpush1.xpose.msra.mxu0 0.0
    %337 = vmatprep.subr.mxu0 0.0
    %338 = vmatpush1.xpose.msra.mxu0 %v305
    %339 = vmatprep.subr.mxu0 0.0
    %340 = vmatpush2.xpose.msra.mxu0 0.0
    %341 = vmatprep.subr.mxu0 0.0
    %342 = vmatpush2.xpose.msra.mxu0 0.0
    %343 = vmatprep.subr.mxu0 0.0
    %344 = vmatpush2.xpose.msra.mxu0 0.0
    %345 = vmatprep.subr.mxu0 0.0
    %346 = vmatpush2.xpose.msra.mxu0 0.0
    %347 = vmatprep.subr.mxu0 0.0
    %348 = vmatpush2.xpose.msra.mxu0 0.0
    %349 = vmatprep.subr.mxu0 0.0
    %350 = vmatpush2.xpose.msra.mxu0 0.0
    %351 = vmatprep.subr.mxu0 0.0
    %352 = vmatpush2.xpose.msra.mxu0 0.0
    %353 = vmatprep.subr.mxu0 0.0
    %354 = vmatpush2.xpose.msra.mxu0 0.0
    %355 = vmatprep.subr.mxu0 0.0
    %356 = vmatpush2.xpose.msra.mxu0 0.0
    %357 = vmatprep.subr.mxu0 0.0
    %358 = vmatpush2.xpose.msra.mxu0 0.0
    %359 = vmatprep.subr.mxu0 0.0
    %360 = vmatpush2.xpose.msra.mxu0 0.0
    %361 = vmatprep.subr.mxu0 0.0
    %362 = vmatpush2.xpose.msra.mxu0 0.0
    %363 = vmatprep.subr.mxu0 0.0
    %364 = vmatpush2.xpose.msra.mxu0 0.0
    %365 = vmatprep.subr.mxu0 0.0
    %366 = vmatpush2.xpose.msra.mxu0 0.0
    %367 = vmatprep.subr.mxu0 0.0
    %368 = vmatpush2.xpose.msra.mxu0 0.0
    %369 = vmatprep.subr.mxu0 0.0
    %370 = vmatpush2.xpose.msra.mxu0 0.0
    %371 = vmatprep.mubr.f32.mxu0 0.0
    %372 = vmatmul.mubr.f32.gmra.mxu0 %v302
    %v373 = vpop.f32.mrf.mxu0
    %v374 = vadd.f32 0.0, %v373
    %v375 = vpop.f32.mrf.mxu0
    %376 = vdwg.mxu0
    %v377 = vsel %vm300, %v374, -inf
    %378 = vmax.xlane.f32.xlu0 %v377
    %v379 = vpop.xlane.xlu0 %378
    %v380 = vsub.f32 %v374, %v379
    %v381 = vmul.f32 %v380, 1.442695
    %v382 = vpow.pop %v381
    %v383 = vsel %vm300, %v382, 0.0
    %384 = vadd.xlane.f32.xlu0 %v383
    %v385 = vpop.xlane.xlu0 %384
    %v386 = vrcp.pop %v385
    %v387 = vmul.f32 %v382, %v386
    %v389 = vsel %vm300, %v387, 0
    %391 = vmatprep.subr.mxu0 0.0
    %392 = vmatpush1.msra.mxu0 0.0
    %393 = vmatprep.subr.mxu0 0.0
    %394 = vmatpush1.msra.mxu0 0.0
    %395 = vmatprep.subr.mxu0 0.0
    %396 = vmatpush1.msra.mxu0 0.0
    %397 = vmatprep.subr.mxu0 0.0
    %398 = vmatpush1.msra.mxu0 0.0
    %399 = vmatprep.subr.mxu0 0.0
    %400 = vmatpush1.msra.mxu0 0.0
    %401 = vmatprep.subr.mxu0 0.0
    %402 = vmatpush1.msra.mxu0 0.0
    %403 = vmatprep.subr.mxu0 0.0
    %404 = vmatpush1.msra.mxu0 0.0
    %405 = vmatprep.subr.mxu0 0.0
    %406 = vmatpush1.msra.mxu0 0.0
    %407 = vmatprep.subr.mxu0 0.0
    %408 = vmatpush1.msra.mxu0 0.0
    %409 = vmatprep.subr.mxu0 0.0
    %410 = vmatpush1.msra.mxu0 0.0
    %411 = vmatprep.subr.mxu0 0.0
    %412 = vmatpush1.msra.mxu0 0.0
    %413 = vmatprep.subr.mxu0 0.0
    %414 = vmatpush1.msra.mxu0 0.0
    %415 = vmatprep.subr.mxu0 0.0
    %416 = vmatpush1.msra.mxu0 0.0
    %417 = vmatprep.subr.mxu0 0.0
    %418 = vmatpush1.msra.mxu0 0.0
    %419 = vmatprep.subr.mxu0 0.0
    %420 = vmatpush1.msra.mxu0 0.0
    %421 = vmatprep.subr.mxu0 0.0
    %422 = vmatpush1.msra.mxu0 %v292
    %423 = vmatprep.subr.mxu0 0.0
    %424 = vmatpush2.msra.mxu0 0.0
    %425 = vmatprep.subr.mxu0 0.0
    %426 = vmatpush2.msra.mxu0 0.0
    %427 = vmatprep.subr.mxu0 0.0
    %428 = vmatpush2.msra.mxu0 0.0
    %429 = vmatprep.subr.mxu0 0.0
    %430 = vmatpush2.msra.mxu0 0.0
    %431 = vmatprep.subr.mxu0 0.0
    %432 = vmatpush2.msra.mxu0 0.0
    %433 = vmatprep.subr.mxu0 0.0
    %434 = vmatpush2.msra.mxu0 0.0
    %435 = vmatprep.subr.mxu0 0.0
    %436 = vmatpush2.msra.mxu0 0.0
    %437 = vmatprep.subr.mxu0 0.0
    %438 = vmatpush2.msra.mxu0 0.0
    %439 = vmatprep.subr.mxu0 0.0
    %440 = vmatpush2.msra.mxu0 0.0
    %441 = vmatprep.subr.mxu0 0.0
    %442 = vmatpush2.msra.mxu0 0.0
    %443 = vmatprep.subr.mxu0 0.0
    %444 = vmatpush2.msra.mxu0 0.0
    %445 = vmatprep.subr.mxu0 0.0
    %446 = vmatpush2.msra.mxu0 0.0
    %447 = vmatprep.subr.mxu0 0.0
    %448 = vmatpush2.msra.mxu0 0.0
    %449 = vmatprep.subr.mxu0 0.0
    %450 = vmatpush2.msra.mxu0 0.0
    %451 = vmatprep.subr.mxu0 0.0
    %452 = vmatpush2.msra.mxu0 0.0
    %453 = vmatprep.subr.mxu0 0.0
    %454 = vmatpush2.msra.mxu0 0.0
    %455 = vmatprep.mubr.f32.mxu0 0.0
    %456 = vmatmul.mubr.f32.gmra.mxu0 %v389
    %v457 = vpop.f32.mrf.mxu0
    %v458 = vadd.f32 0.0, %v457
    %v459 = vpop.f32.mrf.mxu0
    %460 = vdwg.mxu0
    %v461 = vld [vmem:[%s7] sm:$0xff]
    %v463 = vsel %vm300, %v125, 0
    %v466 = vsel %vm300, %v211, 0
    %468 = vmatprep.subr.mxu0 0.0
    %469 = vmatpush1.xpose.msra.mxu0 0.0
    %470 = vmatprep.subr.mxu0 0.0
    %471 = vmatpush1.xpose.msra.mxu0 0.0
    %472 = vmatprep.subr.mxu0 0.0
    %473 = vmatpush1.xpose.msra.mxu0 0.0
    %474 = vmatprep.subr.mxu0 0.0
    %475 = vmatpush1.xpose.msra.mxu0 0.0
    %476 = vmatprep.subr.mxu0 0.0
    %477 = vmatpush1.xpose.msra.mxu0 0.0
    %478 = vmatprep.subr.mxu0 0.0
    %479 = vmatpush1.xpose.msra.mxu0 0.0
    %480 = vmatprep.subr.mxu0 0.0
    %481 = vmatpush1.xpose.msra.mxu0 0.0
    %482 = vmatprep.subr.mxu0 0.0
    %483 = vmatpush1.xpose.msra.mxu0 0.0
    %484 = vmatprep.subr.mxu0 0.0
    %485 = vmatpush1.xpose.msra.mxu0 0.0
    %486 = vmatprep.subr.mxu0 0.0
    %487 = vmatpush1.xpose.msra.mxu0 0.0
    %488 = vmatprep.subr.mxu0 0.0
    %489 = vmatpush1.xpose.msra.mxu0 0.0
    %490 = vmatprep.subr.mxu0 0.0
    %491 = vmatpush1.xpose.msra.mxu0 0.0
    %492 = vmatprep.subr.mxu0 0.0
    %493 = vmatpush1.xpose.msra.mxu0 0.0
    %494 = vmatprep.subr.mxu0 0.0
    %495 = vmatpush1.xpose.msra.mxu0 0.0
    %496 = vmatprep.subr.mxu0 0.0
    %497 = vmatpush1.xpose.msra.mxu0 0.0
    %498 = vmatprep.subr.mxu0 0.0
    %499 = vmatpush1.xpose.msra.mxu0 %v466
    %500 = vmatprep.subr.mxu0 0.0
    %501 = vmatpush2.xpose.msra.mxu0 0.0
    %502 = vmatprep.subr.mxu0 0.0
    %503 = vmatpush2.xpose.msra.mxu0 0.0
    %504 = vmatprep.subr.mxu0 0.0
    %505 = vmatpush2.xpose.msra.mxu0 0.0
    %506 = vmatprep.subr.mxu0 0.0
    %507 = vmatpush2.xpose.msra.mxu0 0.0
    %508 = vmatprep.subr.mxu0 0.0
    %509 = vmatpush2.xpose.msra.mxu0 0.0
    %510 = vmatprep.subr.mxu0 0.0
    %511 = vmatpush2.xpose.msra.mxu0 0.0
    %512 = vmatprep.subr.mxu0 0.0
    %513 = vmatpush2.xpose.msra.mxu0 0.0
    %514 = vmatprep.subr.mxu0 0.0
    %515 = vmatpush2.xpose.msra.mxu0 0.0
    %516 = vmatprep.subr.mxu0 0.0
    %517 = vmatpush2.xpose.msra.mxu0 0.0
    %518 = vmatprep.subr.mxu0 0.0
    %519 = vmatpush2.xpose.msra.mxu0 0.0
    %520 = vmatprep.subr.mxu0 0.0
    %521 = vmatpush2.xpose.msra.mxu0 0.0
    %522 = vmatprep.subr.mxu0 0.0
    %523 = vmatpush2.xpose.msra.mxu0 0.0
    %524 = vmatprep.subr.mxu0 0.0
    %525 = vmatpush2.xpose.msra.mxu0 0.0
    %526 = vmatprep.subr.mxu0 0.0
    %527 = vmatpush2.xpose.msra.mxu0 0.0
    %528 = vmatprep.subr.mxu0 0.0
    %529 = vmatpush2.xpose.msra.mxu0 0.0
    %530 = vmatprep.subr.mxu0 0.0
    %531 = vmatpush2.xpose.msra.mxu0 0.0
    %532 = vmatprep.mubr.f32.mxu0 0.0
    %533 = vmatmul.mubr.f32.gmra.mxu0 %v463
    %v534 = vpop.f32.mrf.mxu0
    %v535 = vadd.f32 0.0, %v534
    %v536 = vpop.f32.mrf.mxu0
    %537 = vdwg.mxu0
    %v538 = vsel %vm300, %v535, -inf
    %539 = vmax.xlane.f32.xlu0 %v538
    %v540 = vpop.xlane.xlu0 %539
    %v541 = vsub.f32 %v535, %v540
    %v542 = vmul.f32 %v541, 1.442695
    %v543 = vpow.pop %v542
    %v544 = vsel %vm300, %v543, 0.0
    %545 = vadd.xlane.f32.xlu0 %v544
    %v546 = vpop.xlane.xlu0 %545
    %v547 = vrcp.pop %v546
    %v548 = vmul.f32 %v543, %v547
    %v550 = vsel %vm300, %v548, 0
    %552 = vmatprep.subr.mxu0 0.0
    %553 = vmatpush1.msra.mxu0 0.0
    %554 = vmatprep.subr.mxu0 0.0
    %555 = vmatpush1.msra.mxu0 0.0
    %556 = vmatprep.subr.mxu0 0.0
    %557 = vmatpush1.msra.mxu0 0.0
    %558 = vmatprep.subr.mxu0 0.0
    %559 = vmatpush1.msra.mxu0 0.0
    %560 = vmatprep.subr.mxu0 0.0
    %561 = vmatpush1.msra.mxu0 0.0
    %562 = vmatprep.subr.mxu0 0.0
    %563 = vmatpush1.msra.mxu0 0.0
    %564 = vmatprep.subr.mxu0 0.0
    %565 = vmatpush1.msra.mxu0 0.0
    %566 = vmatprep.subr.mxu0 0.0
    %567 = vmatpush1.msra.mxu0 0.0
    %568 = vmatprep.subr.mxu0 0.0
    %569 = vmatpush1.msra.mxu0 0.0
    %570 = vmatprep.subr.mxu0 0.0
    %571 = vmatpush1.msra.mxu0 0.0
    %572 = vmatprep.subr.mxu0 0.0
    %573 = vmatpush1.msra.mxu0 0.0
    %574 = vmatprep.subr.mxu0 0.0
    %575 = vmatpush1.msra.mxu0 0.0
    %576 = vmatprep.subr.mxu0 0.0
    %577 = vmatpush1.msra.mxu0 0.0
    %578 = vmatprep.subr.mxu0 0.0
    %579 = vmatpush1.msra.mxu0 0.0
    %580 = vmatprep.subr.mxu0 0.0
    %581 = vmatpush1.msra.mxu0 0.0
    %582 = vmatprep.subr.mxu0 0.0
    %583 = vmatpush1.msra.mxu0 %v297
    %584 = vmatprep.subr.mxu0 0.0
    %585 = vmatpush2.msra.mxu0 0.0
    %586 = vmatprep.subr.mxu0 0.0
    %587 = vmatpush2.msra.mxu0 0.0
    %588 = vmatprep.subr.mxu0 0.0
    %589 = vmatpush2.msra.mxu0 0.0
    %590 = vmatprep.subr.mxu0 0.0
    %591 = vmatpush2.msra.mxu0 0.0
    %592 = vmatprep.subr.mxu0 0.0
    %593 = vmatpush2.msra.mxu0 0.0
    %594 = vmatprep.subr.mxu0 0.0
    %595 = vmatpush2.msra.mxu0 0.0
    %596 = vmatprep.subr.mxu0 0.0
    %597 = vmatpush2.msra.mxu0 0.0
    %598 = vmatprep.subr.mxu0 0.0
    %599 = vmatpush2.msra.mxu0 0.0
    %600 = vmatprep.subr.mxu0 0.0
    %601 = vmatpush2.msra.mxu0 0.0
    %602 = vmatprep.subr.mxu0 0.0
    %603 = vmatpush2.msra.mxu0 0.0
    %604 = vmatprep.subr.mxu0 0.0
    %605 = vmatpush2.msra.mxu0 0.0
    %606 = vmatprep.subr.mxu0 0.0
    %607 = vmatpush2.msra.mxu0 0.0
    %608 = vmatprep.subr.mxu0 0.0
    %609 = vmatpush2.msra.mxu0 0.0
    %610 = vmatprep.subr.mxu0 0.0
    %611 = vmatpush2.msra.mxu0 0.0
    %612 = vmatprep.subr.mxu0 0.0
    %613 = vmatpush2.msra.mxu0 0.0
    %614 = vmatprep.subr.mxu0 0.0
    %615 = vmatpush2.msra.mxu0 0.0
    %616 = vmatprep.mubr.f32.mxu0 0.0
    %617 = vmatmul.mubr.f32.gmra.mxu0 %v550
    %v618 = vpop.f32.mrf.mxu0
    %v619 = vadd.f32 0.0, %v618
    %v620 = vpop.f32.mrf.mxu0
    %621 = vdwg.mxu0
    %s622 = scalar_lea.vmem %s1, 32
    %v623 = vld [vmem:[%s622] sm:$0xff]
    %v624 = vld [vmem:[%s622 + $0x8] sm:$0xff]
    %v625 = vld [vmem:[%s622 + $0x10] sm:$0xff]
    %v626 = vld [vmem:[%s622 + $0x18] sm:$0xff]
    %s627 = scalar_lea.vmem %s2, 1
    %v628 = vld [vmem:[%s627] sm:$0x1]
    %v630 = vlaneseq
    %v631 = vshrl.u32 %v630, 7
    %v632 = vsub.s32 0, %v631
    %v633 = vrot.slane %v628, %v632
    %635 = vmatprep.subr.mxu0 0.0
    %636 = vmatpush1.msra.mxu0 0.0
    %637 = vmatprep.subr.mxu0 0.0
    %638 = vmatpush1.msra.mxu0 0.0
    %639 = vmatprep.subr.mxu0 0.0
    %640 = vmatpush1.msra.mxu0 0.0
    %641 = vmatprep.subr.mxu0 0.0
    %642 = vmatpush1.msra.mxu0 0.0
    %643 = vmatprep.subr.mxu0 0.0
    %644 = vmatpush1.msra.mxu0 0.0
    %645 = vmatprep.subr.mxu0 0.0
    %646 = vmatpush1.msra.mxu0 0.0
    %647 = vmatprep.subr.mxu0 0.0
    %648 = vmatpush1.msra.mxu0 0.0
    %649 = vmatprep.subr.mxu0 0.0
    %650 = vmatpush1.msra.mxu0 0.0
    %651 = vmatprep.subr.mxu0 0.0
    %652 = vmatpush1.msra.mxu0 0.0
    %653 = vmatprep.subr.mxu0 0.0
    %654 = vmatpush1.msra.mxu0 0.0
    %655 = vmatprep.subr.mxu0 0.0
    %656 = vmatpush1.msra.mxu0 0.0
    %657 = vmatprep.subr.mxu0 0.0
    %658 = vmatpush1.msra.mxu0 0.0
    %659 = vmatprep.subr.mxu0 0.0
    %660 = vmatpush1.msra.mxu0 %v626
    %661 = vmatprep.subr.mxu0 0.0
    %662 = vmatpush1.msra.mxu0 %v625
    %663 = vmatprep.subr.mxu0 0.0
    %664 = vmatpush1.msra.mxu0 %v624
    %665 = vmatprep.subr.mxu0 0.0
    %666 = vmatpush1.msra.mxu0 %v623
    %667 = vmatprep.subr.mxu0 0.0
    %668 = vmatpush2.msra.mxu0 0.0
    %669 = vmatprep.subr.mxu0 0.0
    %670 = vmatpush2.msra.mxu0 0.0
    %671 = vmatprep.subr.mxu0 0.0
    %672 = vmatpush2.msra.mxu0 0.0
    %673 = vmatprep.subr.mxu0 0.0
    %674 = vmatpush2.msra.mxu0 0.0
    %675 = vmatprep.subr.mxu0 0.0
    %676 = vmatpush2.msra.mxu0 0.0
    %677 = vmatprep.subr.mxu0 0.0
    %678 = vmatpush2.msra.mxu0 0.0
    %679 = vmatprep.subr.mxu0 0.0
    %680 = vmatpush2.msra.mxu0 0.0
    %681 = vmatprep.subr.mxu0 0.0
    %682 = vmatpush2.msra.mxu0 0.0
    %683 = vmatprep.subr.mxu0 0.0
    %684 = vmatpush2.msra.mxu0 0.0
    %685 = vmatprep.subr.mxu0 0.0
    %686 = vmatpush2.msra.mxu0 0.0
    %687 = vmatprep.subr.mxu0 0.0
    %688 = vmatpush2.msra.mxu0 0.0
    %689 = vmatprep.subr.mxu0 0.0
    %690 = vmatpush2.msra.mxu0 0.0
    %691 = vmatprep.subr.mxu0 0.0
    %692 = vmatpush2.msra.mxu0 0.0
    %693 = vmatprep.subr.mxu0 0.0
    %694 = vmatpush2.msra.mxu0 0.0
    %695 = vmatprep.subr.mxu0 0.0
    %696 = vmatpush2.msra.mxu0 0.0
    %697 = vmatprep.subr.mxu0 0.0
    %698 = vmatpush2.msra.mxu0 0.0
    %699 = vmatprep.mubr.f32.mxu0 0.0
    %700 = vmatmul.mubr.f32.gmra.mxu0 %v48
    %v701 = vpop.f32.mrf.mxu0
    %v702 = vadd.f32 %v633, %v701
    %v703 = vpop.f32.mrf.mxu0
    %704 = vmatprep.mubr.f32.mxu0 0.0
    %705 = vmatmul.mubr.f32.gmra.mxu0 %v51
    %v706 = vpop.f32.mrf.mxu0
    %v707 = vadd.f32 %v633, %v706
    %v708 = vpop.f32.mrf.mxu0
    %709 = vdwg.mxu0
    %s710 = scalar_lea.vmem %s3, 32
    %v711 = vld [vmem:[%s710] sm:$0xff]
    %v712 = vld [vmem:[%s710 + $0x8] sm:$0xff]
    %v713 = vld [vmem:[%s710 + $0x10] sm:$0xff]
    %v714 = vld [vmem:[%s710 + $0x18] sm:$0xff]
    %s715 = scalar_lea.vmem %s4, 1
    %v716 = vld [vmem:[%s715] sm:$0x1]
    %v718 = vlaneseq
    %v719 = vshrl.u32 %v718, 7
    %v720 = vsub.s32 0, %v719
    %v721 = vrot.slane %v716, %v720
    %723 = vmatprep.subr.mxu0 0.0
    %724 = vmatpush1.msra.mxu0 0.0
    %725 = vmatprep.subr.mxu0 0.0
    %726 = vmatpush1.msra.mxu0 0.0
    %727 = vmatprep.subr.mxu0 0.0
    %728 = vmatpush1.msra.mxu0 0.0
    %729 = vmatprep.subr.mxu0 0.0
    %730 = vmatpush1.msra.mxu0 0.0
    %731 = vmatprep.subr.mxu0 0.0
    %732 = vmatpush1.msra.mxu0 0.0
    %733 = vmatprep.subr.mxu0 0.0
    %734 = vmatpush1.msra.mxu0 0.0
    %735 = vmatprep.subr.mxu0 0.0
    %736 = vmatpush1.msra.mxu0 0.0
    %737 = vmatprep.subr.mxu0 0.0
    %738 = vmatpush1.msra.mxu0 0.0
    %739 = vmatprep.subr.mxu0 0.0
    %740 = vmatpush1.msra.mxu0 0.0
    %741 = vmatprep.subr.mxu0 0.0
    %742 = vmatpush1.msra.mxu0 0.0
    %743 = vmatprep.subr.mxu0 0.0
    %744 = vmatpush1.msra.mxu0 0.0
    %745 = vmatprep.subr.mxu0 0.0
    %746 = vmatpush1.msra.mxu0 0.0
    %747 = vmatprep.subr.mxu0 0.0
    %748 = vmatpush1.msra.mxu0 %v714
    %749 = vmatprep.subr.mxu0 0.0
    %750 = vmatpush1.msra.mxu0 %v713
    %751 = vmatprep.subr.mxu0 0.0
    %752 = vmatpush1.msra.mxu0 %v712
    %753 = vmatprep.subr.mxu0 0.0
    %754 = vmatpush1.msra.mxu0 %v711
    %755 = vmatprep.subr.mxu0 0.0
    %756 = vmatpush2.msra.mxu0 0.0
    %757 = vmatprep.subr.mxu0 0.0
    %758 = vmatpush2.msra.mxu0 0.0
    %759 = vmatprep.subr.mxu0 0.0
    %760 = vmatpush2.msra.mxu0 0.0
    %761 = vmatprep.subr.mxu0 0.0
    %762 = vmatpush2.msra.mxu0 0.0
    %763 = vmatprep.subr.mxu0 0.0
    %764 = vmatpush2.msra.mxu0 0.0
    %765 = vmatprep.subr.mxu0 0.0
    %766 = vmatpush2.msra.mxu0 0.0
    %767 = vmatprep.subr.mxu0 0.0
    %768 = vmatpush2.msra.mxu0 0.0
    %769 = vmatprep.subr.mxu0 0.0
    %770 = vmatpush2.msra.mxu0 0.0
    %771 = vmatprep.subr.mxu0 0.0
    %772 = vmatpush2.msra.mxu0 0.0
    %773 = vmatprep.subr.mxu0 0.0
    %774 = vmatpush2.msra.mxu0 0.0
    %775 = vmatprep.subr.mxu0 0.0
    %776 = vmatpush2.msra.mxu0 0.0
    %777 = vmatprep.subr.mxu0 0.0
    %778 = vmatpush2.msra.mxu0 0.0
    %779 = vmatprep.subr.mxu0 0.0
    %780 = vmatpush2.msra.mxu0 0.0
    %781 = vmatprep.subr.mxu0 0.0
    %782 = vmatpush2.msra.mxu0 0.0
    %783 = vmatprep.subr.mxu0 0.0
    %784 = vmatpush2.msra.mxu0 0.0
    %785 = vmatprep.subr.mxu0 0.0
    %786 = vmatpush2.msra.mxu0 0.0
    %787 = vmatprep.mubr.f32.mxu0 0.0
    %788 = vmatmul.mubr.f32.gmra.mxu0 %v48
    %v789 = vpop.f32.mrf.mxu0
    %v790 = vadd.f32 %v721, %v789
    %v791 = vpop.f32.mrf.mxu0
    %792 = vmatprep.mubr.f32.mxu0 0.0
    %793 = vmatmul.mubr.f32.gmra.mxu0 %v51
    %v794 = vpop.f32.mrf.mxu0
    %v795 = vadd.f32 %v721, %v794
    %v796 = vpop.f32.mrf.mxu0
    %797 = vdwg.mxu0
    %s798 = scalar_lea.vmem %s5, 32
    %v799 = vld [vmem:[%s798] sm:$0xff]
    %v800 = vld [vmem:[%s798 + $0x8] sm:$0xff]
    %v801 = vld [vmem:[%s798 + $0x10] sm:$0xff]
    %v802 = vld [vmem:[%s798 + $0x18] sm:$0xff]
    %s803 = scalar_lea.vmem %s6, 1
    %v804 = vld [vmem:[%s803] sm:$0x1]
    %v806 = vlaneseq
    %v807 = vshrl.u32 %v806, 7
    %v808 = vsub.s32 0, %v807
    %v809 = vrot.slane %v804, %v808
    %811 = vmatprep.subr.mxu0 0.0
    %812 = vmatpush1.msra.mxu0 0.0
    %813 = vmatprep.subr.mxu0 0.0
    %814 = vmatpush1.msra.mxu0 0.0
    %815 = vmatprep.subr.mxu0 0.0
    %816 = vmatpush1.msra.mxu0 0.0
    %817 = vmatprep.subr.mxu0 0.0
    %818 = vmatpush1.msra.mxu0 0.0
    %819 = vmatprep.subr.mxu0 0.0
    %820 = vmatpush1.msra.mxu0 0.0
    %821 = vmatprep.subr.mxu0 0.0
    %822 = vmatpush1.msra.mxu0 0.0
    %823 = vmatprep.subr.mxu0 0.0
    %824 = vmatpush1.msra.mxu0 0.0
    %825 = vmatprep.subr.mxu0 0.0
    %826 = vmatpush1.msra.mxu0 0.0
    %827 = vmatprep.subr.mxu0 0.0
    %828 = vmatpush1.msra.mxu0 0.0
    %829 = vmatprep.subr.mxu0 0.0
    %830 = vmatpush1.msra.mxu0 0.0
    %831 = vmatprep.subr.mxu0 0.0
    %832 = vmatpush1.msra.mxu0 0.0
    %833 = vmatprep.subr.mxu0 0.0
    %834 = vmatpush1.msra.mxu0 0.0
    %835 = vmatprep.subr.mxu0 0.0
    %836 = vmatpush1.msra.mxu0 %v802
    %837 = vmatprep.subr.mxu0 0.0
    %838 = vmatpush1.msra.mxu0 %v801
    %839 = vmatprep.subr.mxu0 0.0
    %840 = vmatpush1.msra.mxu0 %v800
    %841 = vmatprep.subr.mxu0 0.0
    %842 = vmatpush1.msra.mxu0 %v799
    %843 = vmatprep.subr.mxu0 0.0
    %844 = vmatpush2.msra.mxu0 0.0
    %845 = vmatprep.subr.mxu0 0.0
    %846 = vmatpush2.msra.mxu0 0.0
    %847 = vmatprep.subr.mxu0 0.0
    %848 = vmatpush2.msra.mxu0 0.0
    %849 = vmatprep.subr.mxu0 0.0
    %850 = vmatpush2.msra.mxu0 0.0
    %851 = vmatprep.subr.mxu0 0.0
    %852 = vmatpush2.msra.mxu0 0.0
    %853 = vmatprep.subr.mxu0 0.0
    %854 = vmatpush2.msra.mxu0 0.0
    %855 = vmatprep.subr.mxu0 0.0
    %856 = vmatpush2.msra.mxu0 0.0
    %857 = vmatprep.subr.mxu0 0.0
    %858 = vmatpush2.msra.mxu0 0.0
    %859 = vmatprep.subr.mxu0 0.0
    %860 = vmatpush2.msra.mxu0 0.0
    %861 = vmatprep.subr.mxu0 0.0
    %862 = vmatpush2.msra.mxu0 0.0
    %863 = vmatprep.subr.mxu0 0.0
    %864 = vmatpush2.msra.mxu0 0.0
    %865 = vmatprep.subr.mxu0 0.0
    %866 = vmatpush2.msra.mxu0 0.0
    %867 = vmatprep.subr.mxu0 0.0
    %868 = vmatpush2.msra.mxu0 0.0
    %869 = vmatprep.subr.mxu0 0.0
    %870 = vmatpush2.msra.mxu0 0.0
    %871 = vmatprep.subr.mxu0 0.0
    %872 = vmatpush2.msra.mxu0 0.0
    %873 = vmatprep.subr.mxu0 0.0
    %874 = vmatpush2.msra.mxu0 0.0
    %875 = vmatprep.mubr.f32.mxu0 0.0
    %876 = vmatmul.mubr.f32.gmra.mxu0 %v48
    %v877 = vpop.f32.mrf.mxu0
    %v878 = vadd.f32 %v809, %v877
    %v879 = vpop.f32.mrf.mxu0
    %880 = vmatprep.mubr.f32.mxu0 0.0
    %881 = vmatmul.mubr.f32.gmra.mxu0 %v51
    %v882 = vpop.f32.mrf.mxu0
    %v883 = vadd.f32 %v809, %v882
    %v884 = vpop.f32.mrf.mxu0
    %885 = vdwg.mxu0
    %v887 = vsel %vm300, %v702, 0
    %v890 = vsel %vm300, %v790, 0
    %892 = vmatprep.subr.mxu0 0.0
    %893 = vmatpush1.xpose.msra.mxu0 0.0
    %894 = vmatprep.subr.mxu0 0.0
    %895 = vmatpush1.xpose.msra.mxu0 0.0
    %896 = vmatprep.subr.mxu0 0.0
    %897 = vmatpush1.xpose.msra.mxu0 0.0
    %898 = vmatprep.subr.mxu0 0.0
    %899 = vmatpush1.xpose.msra.mxu0 0.0
    %900 = vmatprep.subr.mxu0 0.0
    %901 = vmatpush1.xpose.msra.mxu0 0.0
    %902 = vmatprep.subr.mxu0 0.0
    %903 = vmatpush1.xpose.msra.mxu0 0.0
    %904 = vmatprep.subr.mxu0 0.0
    %905 = vmatpush1.xpose.msra.mxu0 0.0
    %906 = vmatprep.subr.mxu0 0.0
    %907 = vmatpush1.xpose.msra.mxu0 0.0
    %908 = vmatprep.subr.mxu0 0.0
    %909 = vmatpush1.xpose.msra.mxu0 0.0
    %910 = vmatprep.subr.mxu0 0.0
    %911 = vmatpush1.xpose.msra.mxu0 0.0
    %912 = vmatprep.subr.mxu0 0.0
    %913 = vmatpush1.xpose.msra.mxu0 0.0
    %914 = vmatprep.subr.mxu0 0.0
    %915 = vmatpush1.xpose.msra.mxu0 0.0
    %916 = vmatprep.subr.mxu0 0.0
    %917 = vmatpush1.xpose.msra.mxu0 0.0
    %918 = vmatprep.subr.mxu0 0.0
    %919 = vmatpush1.xpose.msra.mxu0 0.0
    %920 = vmatprep.subr.mxu0 0.0
    %921 = vmatpush1.xpose.msra.mxu0 0.0
    %922 = vmatprep.subr.mxu0 0.0
    %923 = vmatpush1.xpose.msra.mxu0 %v890
    %924 = vmatprep.subr.mxu0 0.0
    %925 = vmatpush2.xpose.msra.mxu0 0.0
    %926 = vmatprep.subr.mxu0 0.0
    %927 = vmatpush2.xpose.msra.mxu0 0.0
    %928 = vmatprep.subr.mxu0 0.0
    %929 = vmatpush2.xpose.msra.mxu0 0.0
    %930 = vmatprep.subr.mxu0 0.0
    %931 = vmatpush2.xpose.msra.mxu0 0.0
    %932 = vmatprep.subr.mxu0 0.0
    %933 = vmatpush2.xpose.msra.mxu0 0.0
    %934 = vmatprep.subr.mxu0 0.0
    %935 = vmatpush2.xpose.msra.mxu0 0.0
    %936 = vmatprep.subr.mxu0 0.0
    %937 = vmatpush2.xpose.msra.mxu0 0.0
    %938 = vmatprep.subr.mxu0 0.0
    %939 = vmatpush2.xpose.msra.mxu0 0.0
    %940 = vmatprep.subr.mxu0 0.0
    %941 = vmatpush2.xpose.msra.mxu0 0.0
    %942 = vmatprep.subr.mxu0 0.0
    %943 = vmatpush2.xpose.msra.mxu0 0.0
    %944 = vmatprep.subr.mxu0 0.0
    %945 = vmatpush2.xpose.msra.mxu0 0.0
    %946 = vmatprep.subr.mxu0 0.0
    %947 = vmatpush2.xpose.msra.mxu0 0.0
    %948 = vmatprep.subr.mxu0 0.0
    %949 = vmatpush2.xpose.msra.mxu0 0.0
    %950 = vmatprep.subr.mxu0 0.0
    %951 = vmatpush2.xpose.msra.mxu0 0.0
    %952 = vmatprep.subr.mxu0 0.0
    %953 = vmatpush2.xpose.msra.mxu0 0.0
    %954 = vmatprep.subr.mxu0 0.0
    %955 = vmatpush2.xpose.msra.mxu0 0.0
    %956 = vmatprep.mubr.f32.mxu0 0.0
    %957 = vmatmul.mubr.f32.gmra.mxu0 %v887
    %v958 = vpop.f32.mrf.mxu0
    %v959 = vadd.f32 0.0, %v958
    %v960 = vpop.f32.mrf.mxu0
    %961 = vdwg.mxu0
    %v962 = vsel %vm300, %v959, -inf
    %963 = vmax.xlane.f32.xlu0 %v962
    %v964 = vpop.xlane.xlu0 %963
    %v965 = vsub.f32 %v959, %v964
    %v966 = vmul.f32 %v965, 1.442695
    %v967 = vpow.pop %v966
    %v968 = vsel %vm300, %v967, 0.0
    %969 = vadd.xlane.f32.xlu0 %v968
    %v970 = vpop.xlane.xlu0 %969
    %v971 = vrcp.pop %v970
    %v972 = vmul.f32 %v967, %v971
    %v974 = vsel %vm300, %v972, 0
    %976 = vmatprep.subr.mxu0 0.0
    %977 = vmatpush1.msra.mxu0 0.0
    %978 = vmatprep.subr.mxu0 0.0
    %979 = vmatpush1.msra.mxu0 0.0
    %980 = vmatprep.subr.mxu0 0.0
    %981 = vmatpush1.msra.mxu0 0.0
    %982 = vmatprep.subr.mxu0 0.0
    %983 = vmatpush1.msra.mxu0 0.0
    %984 = vmatprep.subr.mxu0 0.0
    %985 = vmatpush1.msra.mxu0 0.0
    %986 = vmatprep.subr.mxu0 0.0
    %987 = vmatpush1.msra.mxu0 0.0
    %988 = vmatprep.subr.mxu0 0.0
    %989 = vmatpush1.msra.mxu0 0.0
    %990 = vmatprep.subr.mxu0 0.0
    %991 = vmatpush1.msra.mxu0 0.0
    %992 = vmatprep.subr.mxu0 0.0
    %993 = vmatpush1.msra.mxu0 0.0
    %994 = vmatprep.subr.mxu0 0.0
    %995 = vmatpush1.msra.mxu0 0.0
    %996 = vmatprep.subr.mxu0 0.0
    %997 = vmatpush1.msra.mxu0 0.0
    %998 = vmatprep.subr.mxu0 0.0
    %999 = vmatpush1.msra.mxu0 0.0
    %1000 = vmatprep.subr.mxu0 0.0
    %1001 = vmatpush1.msra.mxu0 0.0
    %1002 = vmatprep.subr.mxu0 0.0
    %1003 = vmatpush1.msra.mxu0 0.0
    %1004 = vmatprep.subr.mxu0 0.0
    %1005 = vmatpush1.msra.mxu0 0.0
    %1006 = vmatprep.subr.mxu0 0.0
    %1007 = vmatpush1.msra.mxu0 %v878
    %1008 = vmatprep.subr.mxu0 0.0
    %1009 = vmatpush2.msra.mxu0 0.0
    %1010 = vmatprep.subr.mxu0 0.0
    %1011 = vmatpush2.msra.mxu0 0.0
    %1012 = vmatprep.subr.mxu0 0.0
    %1013 = vmatpush2.msra.mxu0 0.0
    %1014 = vmatprep.subr.mxu0 0.0
    %1015 = vmatpush2.msra.mxu0 0.0
    %1016 = vmatprep.subr.mxu0 0.0
    %1017 = vmatpush2.msra.mxu0 0.0
    %1018 = vmatprep.subr.mxu0 0.0
    %1019 = vmatpush2.msra.mxu0 0.0
    %1020 = vmatprep.subr.mxu0 0.0
    %1021 = vmatpush2.msra.mxu0 0.0
    %1022 = vmatprep.subr.mxu0 0.0
    %1023 = vmatpush2.msra.mxu0 0.0
    %1024 = vmatprep.subr.mxu0 0.0
    %1025 = vmatpush2.msra.mxu0 0.0
    %1026 = vmatprep.subr.mxu0 0.0
    %1027 = vmatpush2.msra.mxu0 0.0
    %1028 = vmatprep.subr.mxu0 0.0
    %1029 = vmatpush2.msra.mxu0 0.0
    %1030 = vmatprep.subr.mxu0 0.0
    %1031 = vmatpush2.msra.mxu0 0.0
    %1032 = vmatprep.subr.mxu0 0.0
    %1033 = vmatpush2.msra.mxu0 0.0
    %1034 = vmatprep.subr.mxu0 0.0
    %1035 = vmatpush2.msra.mxu0 0.0
    %1036 = vmatprep.subr.mxu0 0.0
    %1037 = vmatpush2.msra.mxu0 0.0
    %1038 = vmatprep.subr.mxu0 0.0
    %1039 = vmatpush2.msra.mxu0 0.0
    %1040 = vmatprep.mubr.f32.mxu0 0.0
    %1041 = vmatmul.mubr.f32.gmra.mxu0 %v974
    %v1042 = vpop.f32.mrf.mxu0
    %v1043 = vadd.f32 0.0, %v1042
    %v1044 = vpop.f32.mrf.mxu0
    %1045 = vdwg.mxu0
    %s1046 = scalar_lea.vmem %s7, 8
    %v1047 = vld [vmem:[%s1046] sm:$0xff]
    %v1049 = vsel %vm300, %v1043, 0
    %1051 = vmatprep.subr.mxu0 0.0
    %1052 = vmatpush1.msra.mxu0 0.0
    %1053 = vmatprep.subr.mxu0 0.0
    %1054 = vmatpush1.msra.mxu0 0.0
    %1055 = vmatprep.subr.mxu0 0.0
    %1056 = vmatpush1.msra.mxu0 0.0
    %1057 = vmatprep.subr.mxu0 0.0
    %1058 = vmatpush1.msra.mxu0 0.0
    %1059 = vmatprep.subr.mxu0 0.0
    %1060 = vmatpush1.msra.mxu0 0.0
    %1061 = vmatprep.subr.mxu0 0.0
    %1062 = vmatpush1.msra.mxu0 0.0
    %1063 = vmatprep.subr.mxu0 0.0
    %1064 = vmatpush1.msra.mxu0 0.0
    %1065 = vmatprep.subr.mxu0 0.0
    %1066 = vmatpush1.msra.mxu0 0.0
    %1067 = vmatprep.subr.mxu0 0.0
    %1068 = vmatpush1.msra.mxu0 0.0
    %1069 = vmatprep.subr.mxu0 0.0
    %1070 = vmatpush1.msra.mxu0 0.0
    %1071 = vmatprep.subr.mxu0 0.0
    %1072 = vmatpush1.msra.mxu0 0.0
    %1073 = vmatprep.subr.mxu0 0.0
    %1074 = vmatpush1.msra.mxu0 0.0
    %1075 = vmatprep.subr.mxu0 0.0
    %1076 = vmatpush1.msra.mxu0 0.0
    %1077 = vmatprep.subr.mxu0 0.0
    %1078 = vmatpush1.msra.mxu0 0.0
    %1079 = vmatprep.subr.mxu0 0.0
    %1080 = vmatpush1.msra.mxu0 0.0
    %1081 = vmatprep.subr.mxu0 0.0
    %1082 = vmatpush1.msra.mxu0 %v1047
    %1083 = vmatprep.subr.mxu0 0.0
    %1084 = vmatpush2.msra.mxu0 0.0
    %1085 = vmatprep.subr.mxu0 0.0
    %1086 = vmatpush2.msra.mxu0 0.0
    %1087 = vmatprep.subr.mxu0 0.0
    %1088 = vmatpush2.msra.mxu0 0.0
    %1089 = vmatprep.subr.mxu0 0.0
    %1090 = vmatpush2.msra.mxu0 0.0
    %1091 = vmatprep.subr.mxu0 0.0
    %1092 = vmatpush2.msra.mxu0 0.0
    %1093 = vmatprep.subr.mxu0 0.0
    %1094 = vmatpush2.msra.mxu0 0.0
    %1095 = vmatprep.subr.mxu0 0.0
    %1096 = vmatpush2.msra.mxu0 0.0
    %1097 = vmatprep.subr.mxu0 0.0
    %1098 = vmatpush2.msra.mxu0 0.0
    %1099 = vmatprep.subr.mxu0 0.0
    %1100 = vmatpush2.msra.mxu0 0.0
    %1101 = vmatprep.subr.mxu0 0.0
    %1102 = vmatpush2.msra.mxu0 0.0
    %1103 = vmatprep.subr.mxu0 0.0
    %1104 = vmatpush2.msra.mxu0 0.0
    %1105 = vmatprep.subr.mxu0 0.0
    %1106 = vmatpush2.msra.mxu0 0.0
    %1107 = vmatprep.subr.mxu0 0.0
    %1108 = vmatpush2.msra.mxu0 0.0
    %1109 = vmatprep.subr.mxu0 0.0
    %1110 = vmatpush2.msra.mxu0 0.0
    %1111 = vmatprep.subr.mxu0 0.0
    %1112 = vmatpush2.msra.mxu0 0.0
    %1113 = vmatprep.subr.mxu0 0.0
    %1114 = vmatpush2.msra.mxu0 0.0
    %1115 = vmatprep.mubr.f32.mxu0 0.0
    %1116 = vmatmul.mubr.f32.gmra.mxu0 %v1049
    %v1117 = vpop.f32.mrf.mxu0
    %v1118 = vadd.f32 0.0, %v1117
    %v1119 = vpop.f32.mrf.mxu0
    %1120 = vdwg.mxu0
    %v1122 = vsel %vm300, %v458, 0
    %1124 = vmatprep.subr.mxu0 0.0
    %1125 = vmatpush1.msra.mxu0 0.0
    %1126 = vmatprep.subr.mxu0 0.0
    %1127 = vmatpush1.msra.mxu0 0.0
    %1128 = vmatprep.subr.mxu0 0.0
    %1129 = vmatpush1.msra.mxu0 0.0
    %1130 = vmatprep.subr.mxu0 0.0
    %1131 = vmatpush1.msra.mxu0 0.0
    %1132 = vmatprep.subr.mxu0 0.0
    %1133 = vmatpush1.msra.mxu0 0.0
    %1134 = vmatprep.subr.mxu0 0.0
    %1135 = vmatpush1.msra.mxu0 0.0
    %1136 = vmatprep.subr.mxu0 0.0
    %1137 = vmatpush1.msra.mxu0 0.0
    %1138 = vmatprep.subr.mxu0 0.0
    %1139 = vmatpush1.msra.mxu0 0.0
    %1140 = vmatprep.subr.mxu0 0.0
    %1141 = vmatpush1.msra.mxu0 0.0
    %1142 = vmatprep.subr.mxu0 0.0
    %1143 = vmatpush1.msra.mxu0 0.0
    %1144 = vmatprep.subr.mxu0 0.0
    %1145 = vmatpush1.msra.mxu0 0.0
    %1146 = vmatprep.subr.mxu0 0.0
    %1147 = vmatpush1.msra.mxu0 0.0
    %1148 = vmatprep.subr.mxu0 0.0
    %1149 = vmatpush1.msra.mxu0 0.0
    %1150 = vmatprep.subr.mxu0 0.0
    %1151 = vmatpush1.msra.mxu0 0.0
    %1152 = vmatprep.subr.mxu0 0.0
    %1153 = vmatpush1.msra.mxu0 0.0
    %1154 = vmatprep.subr.mxu0 0.0
    %1155 = vmatpush1.msra.mxu0 %v461
    %1156 = vmatprep.subr.mxu0 0.0
    %1157 = vmatpush2.msra.mxu0 0.0
    %1158 = vmatprep.subr.mxu0 0.0
    %1159 = vmatpush2.msra.mxu0 0.0
    %1160 = vmatprep.subr.mxu0 0.0
    %1161 = vmatpush2.msra.mxu0 0.0
    %1162 = vmatprep.subr.mxu0 0.0
    %1163 = vmatpush2.msra.mxu0 0.0
    %1164 = vmatprep.subr.mxu0 0.0
    %1165 = vmatpush2.msra.mxu0 0.0
    %1166 = vmatprep.subr.mxu0 0.0
    %1167 = vmatpush2.msra.mxu0 0.0
    %1168 = vmatprep.subr.mxu0 0.0
    %1169 = vmatpush2.msra.mxu0 0.0
    %1170 = vmatprep.subr.mxu0 0.0
    %1171 = vmatpush2.msra.mxu0 0.0
    %1172 = vmatprep.subr.mxu0 0.0
    %1173 = vmatpush2.msra.mxu0 0.0
    %1174 = vmatprep.subr.mxu0 0.0
    %1175 = vmatpush2.msra.mxu0 0.0
    %1176 = vmatprep.subr.mxu0 0.0
    %1177 = vmatpush2.msra.mxu0 0.0
    %1178 = vmatprep.subr.mxu0 0.0
    %1179 = vmatpush2.msra.mxu0 0.0
    %1180 = vmatprep.subr.mxu0 0.0
    %1181 = vmatpush2.msra.mxu0 0.0
    %1182 = vmatprep.subr.mxu0 0.0
    %1183 = vmatpush2.msra.mxu0 0.0
    %1184 = vmatprep.subr.mxu0 0.0
    %1185 = vmatpush2.msra.mxu0 0.0
    %1186 = vmatprep.subr.mxu0 0.0
    %1187 = vmatpush2.msra.mxu0 0.0
    %1188 = vmatprep.mubr.f32.mxu0 0.0
    %1189 = vmatmul.mubr.f32.gmra.mxu0 %v1122
    %v1190 = vpop.f32.mrf.mxu0
    %v1191 = vadd.f32 %v1118, %v1190
    %v1192 = vpop.f32.mrf.mxu0
    %1193 = vdwg.mxu0
    %v1195 = vsel %vm300, %v707, 0
    %v1198 = vsel %vm300, %v795, 0
    %1200 = vmatprep.subr.mxu0 0.0
    %1201 = vmatpush1.xpose.msra.mxu0 0.0
    %1202 = vmatprep.subr.mxu0 0.0
    %1203 = vmatpush1.xpose.msra.mxu0 0.0
    %1204 = vmatprep.subr.mxu0 0.0
    %1205 = vmatpush1.xpose.msra.mxu0 0.0
    %1206 = vmatprep.subr.mxu0 0.0
    %1207 = vmatpush1.xpose.msra.mxu0 0.0
    %1208 = vmatprep.subr.mxu0 0.0
    %1209 = vmatpush1.xpose.msra.mxu0 0.0
    %1210 = vmatprep.subr.mxu0 0.0
    %1211 = vmatpush1.xpose.msra.mxu0 0.0
    %1212 = vmatprep.subr.mxu0 0.0
    %1213 = vmatpush1.xpose.msra.mxu0 0.0
    %1214 = vmatprep.subr.mxu0 0.0
    %1215 = vmatpush1.xpose.msra.mxu0 0.0
    %1216 = vmatprep.subr.mxu0 0.0
    %1217 = vmatpush1.xpose.msra.mxu0 0.0
    %1218 = vmatprep.subr.mxu0 0.0
    %1219 = vmatpush1.xpose.msra.mxu0 0.0
    %1220 = vmatprep.subr.mxu0 0.0
    %1221 = vmatpush1.xpose.msra.mxu0 0.0
    %1222 = vmatprep.subr.mxu0 0.0
    %1223 = vmatpush1.xpose.msra.mxu0 0.0
    %1224 = vmatprep.subr.mxu0 0.0
    %1225 = vmatpush1.xpose.msra.mxu0 0.0
    %1226 = vmatprep.subr.mxu0 0.0
    %1227 = vmatpush1.xpose.msra.mxu0 0.0
    %1228 = vmatprep.subr.mxu0 0.0
    %1229 = vmatpush1.xpose.msra.mxu0 0.0
    %1230 = vmatprep.subr.mxu0 0.0
    %1231 = vmatpush1.xpose.msra.mxu0 %v1198
    %1232 = vmatprep.subr.mxu0 0.0
    %1233 = vmatpush2.xpose.msra.mxu0 0.0
    %1234 = vmatprep.subr.mxu0 0.0
    %1235 = vmatpush2.xpose.msra.mxu0 0.0
    %1236 = vmatprep.subr.mxu0 0.0
    %1237 = vmatpush2.xpose.msra.mxu0 0.0
    %1238 = vmatprep.subr.mxu0 0.0
    %1239 = vmatpush2.xpose.msra.mxu0 0.0
    %1240 = vmatprep.subr.mxu0 0.0
    %1241 = vmatpush2.xpose.msra.mxu0 0.0
    %1242 = vmatprep.subr.mxu0 0.0
    %1243 = vmatpush2.xpose.msra.mxu0 0.0
    %1244 = vmatprep.subr.mxu0 0.0
    %1245 = vmatpush2.xpose.msra.mxu0 0.0
    %1246 = vmatprep.subr.mxu0 0.0
    %1247 = vmatpush2.xpose.msra.mxu0 0.0
    %1248 = vmatprep.subr.mxu0 0.0
    %1249 = vmatpush2.xpose.msra.mxu0 0.0
    %1250 = vmatprep.subr.mxu0 0.0
    %1251 = vmatpush2.xpose.msra.mxu0 0.0
    %1252 = vmatprep.subr.mxu0 0.0
    %1253 = vmatpush2.xpose.msra.mxu0 0.0
    %1254 = vmatprep.subr.mxu0 0.0
    %1255 = vmatpush2.xpose.msra.mxu0 0.0
    %1256 = vmatprep.subr.mxu0 0.0
    %1257 = vmatpush2.xpose.msra.mxu0 0.0
    %1258 = vmatprep.subr.mxu0 0.0
    %1259 = vmatpush2.xpose.msra.mxu0 0.0
    %1260 = vmatprep.subr.mxu0 0.0
    %1261 = vmatpush2.xpose.msra.mxu0 0.0
    %1262 = vmatprep.subr.mxu0 0.0
    %1263 = vmatpush2.xpose.msra.mxu0 0.0
    %1264 = vmatprep.mubr.f32.mxu0 0.0
    %1265 = vmatmul.mubr.f32.gmra.mxu0 %v1195
    %v1266 = vpop.f32.mrf.mxu0
    %v1267 = vadd.f32 0.0, %v1266
    %v1268 = vpop.f32.mrf.mxu0
    %1269 = vdwg.mxu0
    %v1270 = vsel %vm300, %v1267, -inf
    %1271 = vmax.xlane.f32.xlu0 %v1270
    %v1272 = vpop.xlane.xlu0 %1271
    %v1273 = vsub.f32 %v1267, %v1272
    %v1274 = vmul.f32 %v1273, 1.442695
    %v1275 = vpow.pop %v1274
    %v1276 = vsel %vm300, %v1275, 0.0
    %1277 = vadd.xlane.f32.xlu0 %v1276
    %v1278 = vpop.xlane.xlu0 %1277
    %v1279 = vrcp.pop %v1278
    %v1280 = vmul.f32 %v1275, %v1279
    %v1282 = vsel %vm300, %v1280, 0
    %1284 = vmatprep.subr.mxu0 0.0
    %1285 = vmatpush1.msra.mxu0 0.0
    %1286 = vmatprep.subr.mxu0 0.0
    %1287 = vmatpush1.msra.mxu0 0.0
    %1288 = vmatprep.subr.mxu0 0.0
    %1289 = vmatpush1.msra.mxu0 0.0
    %1290 = vmatprep.subr.mxu0 0.0
    %1291 = vmatpush1.msra.mxu0 0.0
    %1292 = vmatprep.subr.mxu0 0.0
    %1293 = vmatpush1.msra.mxu0 0.0
    %1294 = vmatprep.subr.mxu0 0.0
    %1295 = vmatpush1.msra.mxu0 0.0
    %1296 = vmatprep.subr.mxu0 0.0
    %1297 = vmatpush1.msra.mxu0 0.0
    %1298 = vmatprep.subr.mxu0 0.0
    %1299 = vmatpush1.msra.mxu0 0.0
    %1300 = vmatprep.subr.mxu0 0.0
    %1301 = vmatpush1.msra.mxu0 0.0
    %1302 = vmatprep.subr.mxu0 0.0
    %1303 = vmatpush1.msra.mxu0 0.0
    %1304 = vmatprep.subr.mxu0 0.0
    %1305 = vmatpush1.msra.mxu0 0.0
    %1306 = vmatprep.subr.mxu0 0.0
    %1307 = vmatpush1.msra.mxu0 0.0
    %1308 = vmatprep.subr.mxu0 0.0
    %1309 = vmatpush1.msra.mxu0 0.0
    %1310 = vmatprep.subr.mxu0 0.0
    %1311 = vmatpush1.msra.mxu0 0.0
    %1312 = vmatprep.subr.mxu0 0.0
    %1313 = vmatpush1.msra.mxu0 0.0
    %1314 = vmatprep.subr.mxu0 0.0
    %1315 = vmatpush1.msra.mxu0 %v883
    %1316 = vmatprep.subr.mxu0 0.0
    %1317 = vmatpush2.msra.mxu0 0.0
    %1318 = vmatprep.subr.mxu0 0.0
    %1319 = vmatpush2.msra.mxu0 0.0
    %1320 = vmatprep.subr.mxu0 0.0
    %1321 = vmatpush2.msra.mxu0 0.0
    %1322 = vmatprep.subr.mxu0 0.0
    %1323 = vmatpush2.msra.mxu0 0.0
    %1324 = vmatprep.subr.mxu0 0.0
    %1325 = vmatpush2.msra.mxu0 0.0
    %1326 = vmatprep.subr.mxu0 0.0
    %1327 = vmatpush2.msra.mxu0 0.0
    %1328 = vmatprep.subr.mxu0 0.0
    %1329 = vmatpush2.msra.mxu0 0.0
    %1330 = vmatprep.subr.mxu0 0.0
    %1331 = vmatpush2.msra.mxu0 0.0
    %1332 = vmatprep.subr.mxu0 0.0
    %1333 = vmatpush2.msra.mxu0 0.0
    %1334 = vmatprep.subr.mxu0 0.0
    %1335 = vmatpush2.msra.mxu0 0.0
    %1336 = vmatprep.subr.mxu0 0.0
    %1337 = vmatpush2.msra.mxu0 0.0
    %1338 = vmatprep.subr.mxu0 0.0
    %1339 = vmatpush2.msra.mxu0 0.0
    %1340 = vmatprep.subr.mxu0 0.0
    %1341 = vmatpush2.msra.mxu0 0.0
    %1342 = vmatprep.subr.mxu0 0.0
    %1343 = vmatpush2.msra.mxu0 0.0
    %1344 = vmatprep.subr.mxu0 0.0
    %1345 = vmatpush2.msra.mxu0 0.0
    %1346 = vmatprep.subr.mxu0 0.0
    %1347 = vmatpush2.msra.mxu0 0.0
    %1348 = vmatprep.mubr.f32.mxu0 0.0
    %1349 = vmatmul.mubr.f32.gmra.mxu0 %v1282
    %v1350 = vpop.f32.mrf.mxu0
    %v1351 = vadd.f32 0.0, %v1350
    %v1352 = vpop.f32.mrf.mxu0
    %1353 = vdwg.mxu0
    %v1355 = vsel %vm300, %v1351, 0
    %1357 = vmatprep.subr.mxu0 0.0
    %1358 = vmatpush1.msra.mxu0 0.0
    %1359 = vmatprep.subr.mxu0 0.0
    %1360 = vmatpush1.msra.mxu0 0.0
    %1361 = vmatprep.subr.mxu0 0.0
    %1362 = vmatpush1.msra.mxu0 0.0
    %1363 = vmatprep.subr.mxu0 0.0
    %1364 = vmatpush1.msra.mxu0 0.0
    %1365 = vmatprep.subr.mxu0 0.0
    %1366 = vmatpush1.msra.mxu0 0.0
    %1367 = vmatprep.subr.mxu0 0.0
    %1368 = vmatpush1.msra.mxu0 0.0
    %1369 = vmatprep.subr.mxu0 0.0
    %1370 = vmatpush1.msra.mxu0 0.0
    %1371 = vmatprep.subr.mxu0 0.0
    %1372 = vmatpush1.msra.mxu0 0.0
    %1373 = vmatprep.subr.mxu0 0.0
    %1374 = vmatpush1.msra.mxu0 0.0
    %1375 = vmatprep.subr.mxu0 0.0
    %1376 = vmatpush1.msra.mxu0 0.0
    %1377 = vmatprep.subr.mxu0 0.0
    %1378 = vmatpush1.msra.mxu0 0.0
    %1379 = vmatprep.subr.mxu0 0.0
    %1380 = vmatpush1.msra.mxu0 0.0
    %1381 = vmatprep.subr.mxu0 0.0
    %1382 = vmatpush1.msra.mxu0 0.0
    %1383 = vmatprep.subr.mxu0 0.0
    %1384 = vmatpush1.msra.mxu0 0.0
    %1385 = vmatprep.subr.mxu0 0.0
    %1386 = vmatpush1.msra.mxu0 0.0
    %1387 = vmatprep.subr.mxu0 0.0
    %1388 = vmatpush1.msra.mxu0 %v1047
    %1389 = vmatprep.subr.mxu0 0.0
    %1390 = vmatpush2.msra.mxu0 0.0
    %1391 = vmatprep.subr.mxu0 0.0
    %1392 = vmatpush2.msra.mxu0 0.0
    %1393 = vmatprep.subr.mxu0 0.0
    %1394 = vmatpush2.msra.mxu0 0.0
    %1395 = vmatprep.subr.mxu0 0.0
    %1396 = vmatpush2.msra.mxu0 0.0
    %1397 = vmatprep.subr.mxu0 0.0
    %1398 = vmatpush2.msra.mxu0 0.0
    %1399 = vmatprep.subr.mxu0 0.0
    %1400 = vmatpush2.msra.mxu0 0.0
    %1401 = vmatprep.subr.mxu0 0.0
    %1402 = vmatpush2.msra.mxu0 0.0
    %1403 = vmatprep.subr.mxu0 0.0
    %1404 = vmatpush2.msra.mxu0 0.0
    %1405 = vmatprep.subr.mxu0 0.0
    %1406 = vmatpush2.msra.mxu0 0.0
    %1407 = vmatprep.subr.mxu0 0.0
    %1408 = vmatpush2.msra.mxu0 0.0
    %1409 = vmatprep.subr.mxu0 0.0
    %1410 = vmatpush2.msra.mxu0 0.0
    %1411 = vmatprep.subr.mxu0 0.0
    %1412 = vmatpush2.msra.mxu0 0.0
    %1413 = vmatprep.subr.mxu0 0.0
    %1414 = vmatpush2.msra.mxu0 0.0
    %1415 = vmatprep.subr.mxu0 0.0
    %1416 = vmatpush2.msra.mxu0 0.0
    %1417 = vmatprep.subr.mxu0 0.0
    %1418 = vmatpush2.msra.mxu0 0.0
    %1419 = vmatprep.subr.mxu0 0.0
    %1420 = vmatpush2.msra.mxu0 0.0
    %1421 = vmatprep.mubr.f32.mxu0 0.0
    %1422 = vmatmul.mubr.f32.gmra.mxu0 %v1355
    %v1423 = vpop.f32.mrf.mxu0
    %v1424 = vadd.f32 0.0, %v1423
    %v1425 = vpop.f32.mrf.mxu0
    %1426 = vdwg.mxu0
    %v1428 = vsel %vm300, %v619, 0
    %1430 = vmatprep.subr.mxu0 0.0
    %1431 = vmatpush1.msra.mxu0 0.0
    %1432 = vmatprep.subr.mxu0 0.0
    %1433 = vmatpush1.msra.mxu0 0.0
    %1434 = vmatprep.subr.mxu0 0.0
    %1435 = vmatpush1.msra.mxu0 0.0
    %1436 = vmatprep.subr.mxu0 0.0
    %1437 = vmatpush1.msra.mxu0 0.0
    %1438 = vmatprep.subr.mxu0 0.0
    %1439 = vmatpush1.msra.mxu0 0.0
    %1440 = vmatprep.subr.mxu0 0.0
    %1441 = vmatpush1.msra.mxu0 0.0
    %1442 = vmatprep.subr.mxu0 0.0
    %1443 = vmatpush1.msra.mxu0 0.0
    %1444 = vmatprep.subr.mxu0 0.0
    %1445 = vmatpush1.msra.mxu0 0.0
    %1446 = vmatprep.subr.mxu0 0.0
    %1447 = vmatpush1.msra.mxu0 0.0
    %1448 = vmatprep.subr.mxu0 0.0
    %1449 = vmatpush1.msra.mxu0 0.0
    %1450 = vmatprep.subr.mxu0 0.0
    %1451 = vmatpush1.msra.mxu0 0.0
    %1452 = vmatprep.subr.mxu0 0.0
    %1453 = vmatpush1.msra.mxu0 0.0
    %1454 = vmatprep.subr.mxu0 0.0
    %1455 = vmatpush1.msra.mxu0 0.0
    %1456 = vmatprep.subr.mxu0 0.0
    %1457 = vmatpush1.msra.mxu0 0.0
    %1458 = vmatprep.subr.mxu0 0.0
    %1459 = vmatpush1.msra.mxu0 0.0
    %1460 = vmatprep.subr.mxu0 0.0
    %1461 = vmatpush1.msra.mxu0 %v461
    %1462 = vmatprep.subr.mxu0 0.0
    %1463 = vmatpush2.msra.mxu0 0.0
    %1464 = vmatprep.subr.mxu0 0.0
    %1465 = vmatpush2.msra.mxu0 0.0
    %1466 = vmatprep.subr.mxu0 0.0
    %1467 = vmatpush2.msra.mxu0 0.0
    %1468 = vmatprep.subr.mxu0 0.0
    %1469 = vmatpush2.msra.mxu0 0.0
    %1470 = vmatprep.subr.mxu0 0.0
    %1471 = vmatpush2.msra.mxu0 0.0
    %1472 = vmatprep.subr.mxu0 0.0
    %1473 = vmatpush2.msra.mxu0 0.0
    %1474 = vmatprep.subr.mxu0 0.0
    %1475 = vmatpush2.msra.mxu0 0.0
    %1476 = vmatprep.subr.mxu0 0.0
    %1477 = vmatpush2.msra.mxu0 0.0
    %1478 = vmatprep.subr.mxu0 0.0
    %1479 = vmatpush2.msra.mxu0 0.0
    %1480 = vmatprep.subr.mxu0 0.0
    %1481 = vmatpush2.msra.mxu0 0.0
    %1482 = vmatprep.subr.mxu0 0.0
    %1483 = vmatpush2.msra.mxu0 0.0
    %1484 = vmatprep.subr.mxu0 0.0
    %1485 = vmatpush2.msra.mxu0 0.0
    %1486 = vmatprep.subr.mxu0 0.0
    %1487 = vmatpush2.msra.mxu0 0.0
    %1488 = vmatprep.subr.mxu0 0.0
    %1489 = vmatpush2.msra.mxu0 0.0
    %1490 = vmatprep.subr.mxu0 0.0
    %1491 = vmatpush2.msra.mxu0 0.0
    %1492 = vmatprep.subr.mxu0 0.0
    %1493 = vmatpush2.msra.mxu0 0.0
    %1494 = vmatprep.mubr.f32.mxu0 0.0
    %1495 = vmatmul.mubr.f32.gmra.mxu0 %v1428
    %v1496 = vpop.f32.mrf.mxu0
    %v1497 = vadd.f32 %v1424, %v1496
    %v1498 = vpop.f32.mrf.mxu0
    %1499 = vdwg.mxu0
    %s1500 = scalar_lea.vmem %s1, 64
    %v1501 = vld [vmem:[%s1500] sm:$0xff]
    %v1502 = vld [vmem:[%s1500 + $0x8] sm:$0xff]
    %v1503 = vld [vmem:[%s1500 + $0x10] sm:$0xff]
    %v1504 = vld [vmem:[%s1500 + $0x18] sm:$0xff]
    %s1505 = scalar_lea.vmem %s2, 2
    %v1506 = vld [vmem:[%s1505] sm:$0x1]
    %v1508 = vlaneseq
    %v1509 = vshrl.u32 %v1508, 7
    %v1510 = vsub.s32 0, %v1509
    %v1511 = vrot.slane %v1506, %v1510
    %1513 = vmatprep.subr.mxu0 0.0
    %1514 = vmatpush1.msra.mxu0 0.0
    %1515 = vmatprep.subr.mxu0 0.0
    %1516 = vmatpush1.msra.mxu0 0.0
    %1517 = vmatprep.subr.mxu0 0.0
    %1518 = vmatpush1.msra.mxu0 0.0
    %1519 = vmatprep.subr.mxu0 0.0
    %1520 = vmatpush1.msra.mxu0 0.0
    %1521 = vmatprep.subr.mxu0 0.0
    %1522 = vmatpush1.msra.mxu0 0.0
    %1523 = vmatprep.subr.mxu0 0.0
    %1524 = vmatpush1.msra.mxu0 0.0
    %1525 = vmatprep.subr.mxu0 0.0
    %1526 = vmatpush1.msra.mxu0 0.0
    %1527 = vmatprep.subr.mxu0 0.0
    %1528 = vmatpush1.msra.mxu0 0.0
    %1529 = vmatprep.subr.mxu0 0.0
    %1530 = vmatpush1.msra.mxu0 0.0
    %1531 = vmatprep.subr.mxu0 0.0
    %1532 = vmatpush1.msra.mxu0 0.0
    %1533 = vmatprep.subr.mxu0 0.0
    %1534 = vmatpush1.msra.mxu0 0.0
    %1535 = vmatprep.subr.mxu0 0.0
    %1536 = vmatpush1.msra.mxu0 0.0
    %1537 = vmatprep.subr.mxu0 0.0
    %1538 = vmatpush1.msra.mxu0 %v1504
    %1539 = vmatprep.subr.mxu0 0.0
    %1540 = vmatpush1.msra.mxu0 %v1503
    %1541 = vmatprep.subr.mxu0 0.0
    %1542 = vmatpush1.msra.mxu0 %v1502
    %1543 = vmatprep.subr.mxu0 0.0
    %1544 = vmatpush1.msra.mxu0 %v1501
    %1545 = vmatprep.subr.mxu0 0.0
    %1546 = vmatpush2.msra.mxu0 0.0
    %1547 = vmatprep.subr.mxu0 0.0
    %1548 = vmatpush2.msra.mxu0 0.0
    %1549 = vmatprep.subr.mxu0 0.0
    %1550 = vmatpush2.msra.mxu0 0.0
    %1551 = vmatprep.subr.mxu0 0.0
    %1552 = vmatpush2.msra.mxu0 0.0
    %1553 = vmatprep.subr.mxu0 0.0
    %1554 = vmatpush2.msra.mxu0 0.0
    %1555 = vmatprep.subr.mxu0 0.0
    %1556 = vmatpush2.msra.mxu0 0.0
    %1557 = vmatprep.subr.mxu0 0.0
    %1558 = vmatpush2.msra.mxu0 0.0
    %1559 = vmatprep.subr.mxu0 0.0
    %1560 = vmatpush2.msra.mxu0 0.0
    %1561 = vmatprep.subr.mxu0 0.0
    %1562 = vmatpush2.msra.mxu0 0.0
    %1563 = vmatprep.subr.mxu0 0.0
    %1564 = vmatpush2.msra.mxu0 0.0
    %1565 = vmatprep.subr.mxu0 0.0
    %1566 = vmatpush2.msra.mxu0 0.0
    %1567 = vmatprep.subr.mxu0 0.0
    %1568 = vmatpush2.msra.mxu0 0.0
    %1569 = vmatprep.subr.mxu0 0.0
    %1570 = vmatpush2.msra.mxu0 0.0
    %1571 = vmatprep.subr.mxu0 0.0
    %1572 = vmatpush2.msra.mxu0 0.0
    %1573 = vmatprep.subr.mxu0 0.0
    %1574 = vmatpush2.msra.mxu0 0.0
    %1575 = vmatprep.subr.mxu0 0.0
    %1576 = vmatpush2.msra.mxu0 0.0
    %1577 = vmatprep.mubr.f32.mxu0 0.0
    %1578 = vmatmul.mubr.f32.gmra.mxu0 %v48
    %v1579 = vpop.f32.mrf.mxu0
    %v1580 = vadd.f32 %v1511, %v1579
    %v1581 = vpop.f32.mrf.mxu0
    %1582 = vmatprep.mubr.f32.mxu0 0.0
    %1583 = vmatmul.mubr.f32.gmra.mxu0 %v51
    %v1584 = vpop.f32.mrf.mxu0
    %v1585 = vadd.f32 %v1511, %v1584
    %v1586 = vpop.f32.mrf.mxu0
    %1587 = vdwg.mxu0
    %s1588 = scalar_lea.vmem %s3, 64
    %v1589 = vld [vmem:[%s1588] sm:$0xff]
    %v1590 = vld [vmem:[%s1588 + $0x8] sm:$0xff]
    %v1591 = vld [vmem:[%s1588 + $0x10] sm:$0xff]
    %v1592 = vld [vmem:[%s1588 + $0x18] sm:$0xff]
    %s1593 = scalar_lea.vmem %s4, 2
    %v1594 = vld [vmem:[%s1593] sm:$0x1]
    %v1596 = vlaneseq
    %v1597 = vshrl.u32 %v1596, 7
    %v1598 = vsub.s32 0, %v1597
    %v1599 = vrot.slane %v1594, %v1598
    %1601 = vmatprep.subr.mxu0 0.0
    %1602 = vmatpush1.msra.mxu0 0.0
    %1603 = vmatprep.subr.mxu0 0.0
    %1604 = vmatpush1.msra.mxu0 0.0
    %1605 = vmatprep.subr.mxu0 0.0
    %1606 = vmatpush1.msra.mxu0 0.0
    %1607 = vmatprep.subr.mxu0 0.0
    %1608 = vmatpush1.msra.mxu0 0.0
    %1609 = vmatprep.subr.mxu0 0.0
    %1610 = vmatpush1.msra.mxu0 0.0
    %1611 = vmatprep.subr.mxu0 0.0
    %1612 = vmatpush1.msra.mxu0 0.0
    %1613 = vmatprep.subr.mxu0 0.0
    %1614 = vmatpush1.msra.mxu0 0.0
    %1615 = vmatprep.subr.mxu0 0.0
    %1616 = vmatpush1.msra.mxu0 0.0
    %1617 = vmatprep.subr.mxu0 0.0
    %1618 = vmatpush1.msra.mxu0 0.0
    %1619 = vmatprep.subr.mxu0 0.0
    %1620 = vmatpush1.msra.mxu0 0.0
    %1621 = vmatprep.subr.mxu0 0.0
    %1622 = vmatpush1.msra.mxu0 0.0
    %1623 = vmatprep.subr.mxu0 0.0
    %1624 = vmatpush1.msra.mxu0 0.0
    %1625 = vmatprep.subr.mxu0 0.0
    %1626 = vmatpush1.msra.mxu0 %v1592
    %1627 = vmatprep.subr.mxu0 0.0
    %1628 = vmatpush1.msra.mxu0 %v1591
    %1629 = vmatprep.subr.mxu0 0.0
    %1630 = vmatpush1.msra.mxu0 %v1590
    %1631 = vmatprep.subr.mxu0 0.0
    %1632 = vmatpush1.msra.mxu0 %v1589
    %1633 = vmatprep.subr.mxu0 0.0
    %1634 = vmatpush2.msra.mxu0 0.0
    %1635 = vmatprep.subr.mxu0 0.0
    %1636 = vmatpush2.msra.mxu0 0.0
    %1637 = vmatprep.subr.mxu0 0.0
    %1638 = vmatpush2.msra.mxu0 0.0
    %1639 = vmatprep.subr.mxu0 0.0
    %1640 = vmatpush2.msra.mxu0 0.0
    %1641 = vmatprep.subr.mxu0 0.0
    %1642 = vmatpush2.msra.mxu0 0.0
    %1643 = vmatprep.subr.mxu0 0.0
    %1644 = vmatpush2.msra.mxu0 0.0
    %1645 = vmatprep.subr.mxu0 0.0
    %1646 = vmatpush2.msra.mxu0 0.0
    %1647 = vmatprep.subr.mxu0 0.0
    %1648 = vmatpush2.msra.mxu0 0.0
    %1649 = vmatprep.subr.mxu0 0.0
    %1650 = vmatpush2.msra.mxu0 0.0
    %1651 = vmatprep.subr.mxu0 0.0
    %1652 = vmatpush2.msra.mxu0 0.0
    %1653 = vmatprep.subr.mxu0 0.0
    %1654 = vmatpush2.msra.mxu0 0.0
    %1655 = vmatprep.subr.mxu0 0.0
    %1656 = vmatpush2.msra.mxu0 0.0
    %1657 = vmatprep.subr.mxu0 0.0
    %1658 = vmatpush2.msra.mxu0 0.0
    %1659 = vmatprep.subr.mxu0 0.0
    %1660 = vmatpush2.msra.mxu0 0.0
    %1661 = vmatprep.subr.mxu0 0.0
    %1662 = vmatpush2.msra.mxu0 0.0
    %1663 = vmatprep.subr.mxu0 0.0
    %1664 = vmatpush2.msra.mxu0 0.0
    %1665 = vmatprep.mubr.f32.mxu0 0.0
    %1666 = vmatmul.mubr.f32.gmra.mxu0 %v48
    %v1667 = vpop.f32.mrf.mxu0
    %v1668 = vadd.f32 %v1599, %v1667
    %v1669 = vpop.f32.mrf.mxu0
    %1670 = vmatprep.mubr.f32.mxu0 0.0
    %1671 = vmatmul.mubr.f32.gmra.mxu0 %v51
    %v1672 = vpop.f32.mrf.mxu0
    %v1673 = vadd.f32 %v1599, %v1672
    %v1674 = vpop.f32.mrf.mxu0
    %1675 = vdwg.mxu0
    %s1676 = scalar_lea.vmem %s5, 64
    %v1677 = vld [vmem:[%s1676] sm:$0xff]
    %v1678 = vld [vmem:[%s1676 + $0x8] sm:$0xff]
    %v1679 = vld [vmem:[%s1676 + $0x10] sm:$0xff]
    %v1680 = vld [vmem:[%s1676 + $0x18] sm:$0xff]
    %s1681 = scalar_lea.vmem %s6, 2
    %v1682 = vld [vmem:[%s1681] sm:$0x1]
    %v1684 = vlaneseq
    %v1685 = vshrl.u32 %v1684, 7
    %v1686 = vsub.s32 0, %v1685
    %v1687 = vrot.slane %v1682, %v1686
    %1689 = vmatprep.subr.mxu0 0.0
    %1690 = vmatpush1.msra.mxu0 0.0
    %1691 = vmatprep.subr.mxu0 0.0
    %1692 = vmatpush1.msra.mxu0 0.0
    %1693 = vmatprep.subr.mxu0 0.0
    %1694 = vmatpush1.msra.mxu0 0.0
    %1695 = vmatprep.subr.mxu0 0.0
    %1696 = vmatpush1.msra.mxu0 0.0
    %1697 = vmatprep.subr.mxu0 0.0
    %1698 = vmatpush1.msra.mxu0 0.0
    %1699 = vmatprep.subr.mxu0 0.0
    %1700 = vmatpush1.msra.mxu0 0.0
    %1701 = vmatprep.subr.mxu0 0.0
    %1702 = vmatpush1.msra.mxu0 0.0
    %1703 = vmatprep.subr.mxu0 0.0
    %1704 = vmatpush1.msra.mxu0 0.0
    %1705 = vmatprep.subr.mxu0 0.0
    %1706 = vmatpush1.msra.mxu0 0.0
    %1707 = vmatprep.subr.mxu0 0.0
    %1708 = vmatpush1.msra.mxu0 0.0
    %1709 = vmatprep.subr.mxu0 0.0
    %1710 = vmatpush1.msra.mxu0 0.0
    %1711 = vmatprep.subr.mxu0 0.0
    %1712 = vmatpush1.msra.mxu0 0.0
    %1713 = vmatprep.subr.mxu0 0.0
    %1714 = vmatpush1.msra.mxu0 %v1680
    %1715 = vmatprep.subr.mxu0 0.0
    %1716 = vmatpush1.msra.mxu0 %v1679
    %1717 = vmatprep.subr.mxu0 0.0
    %1718 = vmatpush1.msra.mxu0 %v1678
    %1719 = vmatprep.subr.mxu0 0.0
    %1720 = vmatpush1.msra.mxu0 %v1677
    %1721 = vmatprep.subr.mxu0 0.0
    %1722 = vmatpush2.msra.mxu0 0.0
    %1723 = vmatprep.subr.mxu0 0.0
    %1724 = vmatpush2.msra.mxu0 0.0
    %1725 = vmatprep.subr.mxu0 0.0
    %1726 = vmatpush2.msra.mxu0 0.0
    %1727 = vmatprep.subr.mxu0 0.0
    %1728 = vmatpush2.msra.mxu0 0.0
    %1729 = vmatprep.subr.mxu0 0.0
    %1730 = vmatpush2.msra.mxu0 0.0
    %1731 = vmatprep.subr.mxu0 0.0
    %1732 = vmatpush2.msra.mxu0 0.0
    %1733 = vmatprep.subr.mxu0 0.0
    %1734 = vmatpush2.msra.mxu0 0.0
    %1735 = vmatprep.subr.mxu0 0.0
    %1736 = vmatpush2.msra.mxu0 0.0
    %1737 = vmatprep.subr.mxu0 0.0
    %1738 = vmatpush2.msra.mxu0 0.0
    %1739 = vmatprep.subr.mxu0 0.0
    %1740 = vmatpush2.msra.mxu0 0.0
    %1741 = vmatprep.subr.mxu0 0.0
    %1742 = vmatpush2.msra.mxu0 0.0
    %1743 = vmatprep.subr.mxu0 0.0
    %1744 = vmatpush2.msra.mxu0 0.0
    %1745 = vmatprep.subr.mxu0 0.0
    %1746 = vmatpush2.msra.mxu0 0.0
    %1747 = vmatprep.subr.mxu0 0.0
    %1748 = vmatpush2.msra.mxu0 0.0
    %1749 = vmatprep.subr.mxu0 0.0
    %1750 = vmatpush2.msra.mxu0 0.0
    %1751 = vmatprep.subr.mxu0 0.0
    %1752 = vmatpush2.msra.mxu0 0.0
    %1753 = vmatprep.mubr.f32.mxu0 0.0
    %1754 = vmatmul.mubr.f32.gmra.mxu0 %v48
    %v1755 = vpop.f32.mrf.mxu0
    %v1756 = vadd.f32 %v1687, %v1755
    %v1757 = vpop.f32.mrf.mxu0
    %1758 = vmatprep.mubr.f32.mxu0 0.0
    %1759 = vmatmul.mubr.f32.gmra.mxu0 %v51
    %v1760 = vpop.f32.mrf.mxu0
    %v1761 = vadd.f32 %v1687, %v1760
    %v1762 = vpop.f32.mrf.mxu0
    %1763 = vdwg.mxu0
    %v1765 = vsel %vm300, %v1580, 0
    %v1768 = vsel %vm300, %v1668, 0
    %1770 = vmatprep.subr.mxu0 0.0
    %1771 = vmatpush1.xpose.msra.mxu0 0.0
    %1772 = vmatprep.subr.mxu0 0.0
    %1773 = vmatpush1.xpose.msra.mxu0 0.0
    %1774 = vmatprep.subr.mxu0 0.0
    %1775 = vmatpush1.xpose.msra.mxu0 0.0
    %1776 = vmatprep.subr.mxu0 0.0
    %1777 = vmatpush1.xpose.msra.mxu0 0.0
    %1778 = vmatprep.subr.mxu0 0.0
    %1779 = vmatpush1.xpose.msra.mxu0 0.0
    %1780 = vmatprep.subr.mxu0 0.0
    %1781 = vmatpush1.xpose.msra.mxu0 0.0
    %1782 = vmatprep.subr.mxu0 0.0
    %1783 = vmatpush1.xpose.msra.mxu0 0.0
    %1784 = vmatprep.subr.mxu0 0.0
    %1785 = vmatpush1.xpose.msra.mxu0 0.0
    %1786 = vmatprep.subr.mxu0 0.0
    %1787 = vmatpush1.xpose.msra.mxu0 0.0
    %1788 = vmatprep.subr.mxu0 0.0
    %1789 = vmatpush1.xpose.msra.mxu0 0.0
    %1790 = vmatprep.subr.mxu0 0.0
    %1791 = vmatpush1.xpose.msra.mxu0 0.0
    %1792 = vmatprep.subr.mxu0 0.0
    %1793 = vmatpush1.xpose.msra.mxu0 0.0
    %1794 = vmatprep.subr.mxu0 0.0
    %1795 = vmatpush1.xpose.msra.mxu0 0.0
    %1796 = vmatprep.subr.mxu0 0.0
    %1797 = vmatpush1.xpose.msra.mxu0 0.0
    %1798 = vmatprep.subr.mxu0 0.0
    %1799 = vmatpush1.xpose.msra.mxu0 0.0
    %1800 = vmatprep.subr.mxu0 0.0
    %1801 = vmatpush1.xpose.msra.mxu0 %v1768
    %1802 = vmatprep.subr.mxu0 0.0
    %1803 = vmatpush2.xpose.msra.mxu0 0.0
    %1804 = vmatprep.subr.mxu0 0.0
    %1805 = vmatpush2.xpose.msra.mxu0 0.0
    %1806 = vmatprep.subr.mxu0 0.0
    %1807 = vmatpush2.xpose.msra.mxu0 0.0
    %1808 = vmatprep.subr.mxu0 0.0
    %1809 = vmatpush2.xpose.msra.mxu0 0.0
    %1810 = vmatprep.subr.mxu0 0.0
    %1811 = vmatpush2.xpose.msra.mxu0 0.0
    %1812 = vmatprep.subr.mxu0 0.0
    %1813 = vmatpush2.xpose.msra.mxu0 0.0
    %1814 = vmatprep.subr.mxu0 0.0
    %1815 = vmatpush2.xpose.msra.mxu0 0.0
    %1816 = vmatprep.subr.mxu0 0.0
    %1817 = vmatpush2.xpose.msra.mxu0 0.0
    %1818 = vmatprep.subr.mxu0 0.0
    %1819 = vmatpush2.xpose.msra.mxu0 0.0
    %1820 = vmatprep.subr.mxu0 0.0
    %1821 = vmatpush2.xpose.msra.mxu0 0.0
    %1822 = vmatprep.subr.mxu0 0.0
    %1823 = vmatpush2.xpose.msra.mxu0 0.0
    %1824 = vmatprep.subr.mxu0 0.0
    %1825 = vmatpush2.xpose.msra.mxu0 0.0
    %1826 = vmatprep.subr.mxu0 0.0
    %1827 = vmatpush2.xpose.msra.mxu0 0.0
    %1828 = vmatprep.subr.mxu0 0.0
    %1829 = vmatpush2.xpose.msra.mxu0 0.0
    %1830 = vmatprep.subr.mxu0 0.0
    %1831 = vmatpush2.xpose.msra.mxu0 0.0
    %1832 = vmatprep.subr.mxu0 0.0
    %1833 = vmatpush2.xpose.msra.mxu0 0.0
    %1834 = vmatprep.mubr.f32.mxu0 0.0
    %1835 = vmatmul.mubr.f32.gmra.mxu0 %v1765
    %v1836 = vpop.f32.mrf.mxu0
    %v1837 = vadd.f32 0.0, %v1836
    %v1838 = vpop.f32.mrf.mxu0
    %1839 = vdwg.mxu0
    %v1840 = vsel %vm300, %v1837, -inf
    %1841 = vmax.xlane.f32.xlu0 %v1840
    %v1842 = vpop.xlane.xlu0 %1841
    %v1843 = vsub.f32 %v1837, %v1842
    %v1844 = vmul.f32 %v1843, 1.442695
    %v1845 = vpow.pop %v1844
    %v1846 = vsel %vm300, %v1845, 0.0
    %1847 = vadd.xlane.f32.xlu0 %v1846
    %v1848 = vpop.xlane.xlu0 %1847
    %v1849 = vrcp.pop %v1848
    %v1850 = vmul.f32 %v1845, %v1849
    %v1852 = vsel %vm300, %v1850, 0
    %1854 = vmatprep.subr.mxu0 0.0
    %1855 = vmatpush1.msra.mxu0 0.0
    %1856 = vmatprep.subr.mxu0 0.0
    %1857 = vmatpush1.msra.mxu0 0.0
    %1858 = vmatprep.subr.mxu0 0.0
    %1859 = vmatpush1.msra.mxu0 0.0
    %1860 = vmatprep.subr.mxu0 0.0
    %1861 = vmatpush1.msra.mxu0 0.0
    %1862 = vmatprep.subr.mxu0 0.0
    %1863 = vmatpush1.msra.mxu0 0.0
    %1864 = vmatprep.subr.mxu0 0.0
    %1865 = vmatpush1.msra.mxu0 0.0
    %1866 = vmatprep.subr.mxu0 0.0
    %1867 = vmatpush1.msra.mxu0 0.0
    %1868 = vmatprep.subr.mxu0 0.0
    %1869 = vmatpush1.msra.mxu0 0.0
    %1870 = vmatprep.subr.mxu0 0.0
    %1871 = vmatpush1.msra.mxu0 0.0
    %1872 = vmatprep.subr.mxu0 0.0
    %1873 = vmatpush1.msra.mxu0 0.0
    %1874 = vmatprep.subr.mxu0 0.0
    %1875 = vmatpush1.msra.mxu0 0.0
    %1876 = vmatprep.subr.mxu0 0.0
    %1877 = vmatpush1.msra.mxu0 0.0
    %1878 = vmatprep.subr.mxu0 0.0
    %1879 = vmatpush1.msra.mxu0 0.0
    %1880 = vmatprep.subr.mxu0 0.0
    %1881 = vmatpush1.msra.mxu0 0.0
    %1882 = vmatprep.subr.mxu0 0.0
    %1883 = vmatpush1.msra.mxu0 0.0
    %1884 = vmatprep.subr.mxu0 0.0
    %1885 = vmatpush1.msra.mxu0 %v1756
    %1886 = vmatprep.subr.mxu0 0.0
    %1887 = vmatpush2.msra.mxu0 0.0
    %1888 = vmatprep.subr.mxu0 0.0
    %1889 = vmatpush2.msra.mxu0 0.0
    %1890 = vmatprep.subr.mxu0 0.0
    %1891 = vmatpush2.msra.mxu0 0.0
    %1892 = vmatprep.subr.mxu0 0.0
    %1893 = vmatpush2.msra.mxu0 0.0
    %1894 = vmatprep.subr.mxu0 0.0
    %1895 = vmatpush2.msra.mxu0 0.0
    %1896 = vmatprep.subr.mxu0 0.0
    %1897 = vmatpush2.msra.mxu0 0.0
    %1898 = vmatprep.subr.mxu0 0.0
    %1899 = vmatpush2.msra.mxu0 0.0
    %1900 = vmatprep.subr.mxu0 0.0
    %1901 = vmatpush2.msra.mxu0 0.0
    %1902 = vmatprep.subr.mxu0 0.0
    %1903 = vmatpush2.msra.mxu0 0.0
    %1904 = vmatprep.subr.mxu0 0.0
    %1905 = vmatpush2.msra.mxu0 0.0
    %1906 = vmatprep.subr.mxu0 0.0
    %1907 = vmatpush2.msra.mxu0 0.0
    %1908 = vmatprep.subr.mxu0 0.0
    %1909 = vmatpush2.msra.mxu0 0.0
    %1910 = vmatprep.subr.mxu0 0.0
    %1911 = vmatpush2.msra.mxu0 0.0
    %1912 = vmatprep.subr.mxu0 0.0
    %1913 = vmatpush2.msra.mxu0 0.0
    %1914 = vmatprep.subr.mxu0 0.0
    %1915 = vmatpush2.msra.mxu0 0.0
    %1916 = vmatprep.subr.mxu0 0.0
    %1917 = vmatpush2.msra.mxu0 0.0
    %1918 = vmatprep.mubr.f32.mxu0 0.0
    %1919 = vmatmul.mubr.f32.gmra.mxu0 %v1852
    %v1920 = vpop.f32.mrf.mxu0
    %v1921 = vadd.f32 0.0, %v1920
    %v1922 = vpop.f32.mrf.mxu0
    %1923 = vdwg.mxu0
    %s1924 = scalar_lea.vmem %s7, 16
    %v1925 = vld [vmem:[%s1924] sm:$0xff]
    %v1927 = vsel %vm300, %v1921, 0
    %1929 = vmatprep.subr.mxu0 0.0
    %1930 = vmatpush1.msra.mxu0 0.0
    %1931 = vmatprep.subr.mxu0 0.0
    %1932 = vmatpush1.msra.mxu0 0.0
    %1933 = vmatprep.subr.mxu0 0.0
    %1934 = vmatpush1.msra.mxu0 0.0
    %1935 = vmatprep.subr.mxu0 0.0
    %1936 = vmatpush1.msra.mxu0 0.0
    %1937 = vmatprep.subr.mxu0 0.0
    %1938 = vmatpush1.msra.mxu0 0.0
    %1939 = vmatprep.subr.mxu0 0.0
    %1940 = vmatpush1.msra.mxu0 0.0
    %1941 = vmatprep.subr.mxu0 0.0
    %1942 = vmatpush1.msra.mxu0 0.0
    %1943 = vmatprep.subr.mxu0 0.0
    %1944 = vmatpush1.msra.mxu0 0.0
    %1945 = vmatprep.subr.mxu0 0.0
    %1946 = vmatpush1.msra.mxu0 0.0
    %1947 = vmatprep.subr.mxu0 0.0
    %1948 = vmatpush1.msra.mxu0 0.0
    %1949 = vmatprep.subr.mxu0 0.0
    %1950 = vmatpush1.msra.mxu0 0.0
    %1951 = vmatprep.subr.mxu0 0.0
    %1952 = vmatpush1.msra.mxu0 0.0
    %1953 = vmatprep.subr.mxu0 0.0
    %1954 = vmatpush1.msra.mxu0 0.0
    %1955 = vmatprep.subr.mxu0 0.0
    %1956 = vmatpush1.msra.mxu0 0.0
    %1957 = vmatprep.subr.mxu0 0.0
    %1958 = vmatpush1.msra.mxu0 0.0
    %1959 = vmatprep.subr.mxu0 0.0
    %1960 = vmatpush1.msra.mxu0 %v1925
    %1961 = vmatprep.subr.mxu0 0.0
    %1962 = vmatpush2.msra.mxu0 0.0
    %1963 = vmatprep.subr.mxu0 0.0
    %1964 = vmatpush2.msra.mxu0 0.0
    %1965 = vmatprep.subr.mxu0 0.0
    %1966 = vmatpush2.msra.mxu0 0.0
    %1967 = vmatprep.subr.mxu0 0.0
    %1968 = vmatpush2.msra.mxu0 0.0
    %1969 = vmatprep.subr.mxu0 0.0
    %1970 = vmatpush2.msra.mxu0 0.0
    %1971 = vmatprep.subr.mxu0 0.0
    %1972 = vmatpush2.msra.mxu0 0.0
    %1973 = vmatprep.subr.mxu0 0.0
    %1974 = vmatpush2.msra.mxu0 0.0
    %1975 = vmatprep.subr.mxu0 0.0
    %1976 = vmatpush2.msra.mxu0 0.0
    %1977 = vmatprep.subr.mxu0 0.0
    %1978 = vmatpush2.msra.mxu0 0.0
    %1979 = vmatprep.subr.mxu0 0.0
    %1980 = vmatpush2.msra.mxu0 0.0
    %1981 = vmatprep.subr.mxu0 0.0
    %1982 = vmatpush2.msra.mxu0 0.0
    %1983 = vmatprep.subr.mxu0 0.0
    %1984 = vmatpush2.msra.mxu0 0.0
    %1985 = vmatprep.subr.mxu0 0.0
    %1986 = vmatpush2.msra.mxu0 0.0
    %1987 = vmatprep.subr.mxu0 0.0
    %1988 = vmatpush2.msra.mxu0 0.0
    %1989 = vmatprep.subr.mxu0 0.0
    %1990 = vmatpush2.msra.mxu0 0.0
    %1991 = vmatprep.subr.mxu0 0.0
    %1992 = vmatpush2.msra.mxu0 0.0
    %1993 = vmatprep.mubr.f32.mxu0 0.0
    %1994 = vmatmul.mubr.f32.gmra.mxu0 %v1927
    %v1995 = vpop.f32.mrf.mxu0
    %v1996 = vadd.f32 0.0, %v1995
    %v1997 = vpop.f32.mrf.mxu0
    %1998 = vdwg.mxu0
    %v1999 = vadd.f32 %v1191, %v1996
    %v2001 = vsel %vm300, %v1585, 0
    %v2004 = vsel %vm300, %v1673, 0
    %2006 = vmatprep.subr.mxu0 0.0
    %2007 = vmatpush1.xpose.msra.mxu0 0.0
    %2008 = vmatprep.subr.mxu0 0.0
    %2009 = vmatpush1.xpose.msra.mxu0 0.0
    %2010 = vmatprep.subr.mxu0 0.0
    %2011 = vmatpush1.xpose.msra.mxu0 0.0
    %2012 = vmatprep.subr.mxu0 0.0
    %2013 = vmatpush1.xpose.msra.mxu0 0.0
    %2014 = vmatprep.subr.mxu0 0.0
    %2015 = vmatpush1.xpose.msra.mxu0 0.0
    %2016 = vmatprep.subr.mxu0 0.0
    %2017 = vmatpush1.xpose.msra.mxu0 0.0
    %2018 = vmatprep.subr.mxu0 0.0
    %2019 = vmatpush1.xpose.msra.mxu0 0.0
    %2020 = vmatprep.subr.mxu0 0.0
    %2021 = vmatpush1.xpose.msra.mxu0 0.0
    %2022 = vmatprep.subr.mxu0 0.0
    %2023 = vmatpush1.xpose.msra.mxu0 0.0
    %2024 = vmatprep.subr.mxu0 0.0
    %2025 = vmatpush1.xpose.msra.mxu0 0.0
    %2026 = vmatprep.subr.mxu0 0.0
    %2027 = vmatpush1.xpose.msra.mxu0 0.0
    %2028 = vmatprep.subr.mxu0 0.0
    %2029 = vmatpush1.xpose.msra.mxu0 0.0
    %2030 = vmatprep.subr.mxu0 0.0
    %2031 = vmatpush1.xpose.msra.mxu0 0.0
    %2032 = vmatprep.subr.mxu0 0.0
    %2033 = vmatpush1.xpose.msra.mxu0 0.0
    %2034 = vmatprep.subr.mxu0 0.0
    %2035 = vmatpush1.xpose.msra.mxu0 0.0
    %2036 = vmatprep.subr.mxu0 0.0
    %2037 = vmatpush1.xpose.msra.mxu0 %v2004
    %2038 = vmatprep.subr.mxu0 0.0
    %2039 = vmatpush2.xpose.msra.mxu0 0.0
    %2040 = vmatprep.subr.mxu0 0.0
    %2041 = vmatpush2.xpose.msra.mxu0 0.0
    %2042 = vmatprep.subr.mxu0 0.0
    %2043 = vmatpush2.xpose.msra.mxu0 0.0
    %2044 = vmatprep.subr.mxu0 0.0
    %2045 = vmatpush2.xpose.msra.mxu0 0.0
    %2046 = vmatprep.subr.mxu0 0.0
    %2047 = vmatpush2.xpose.msra.mxu0 0.0
    %2048 = vmatprep.subr.mxu0 0.0
    %2049 = vmatpush2.xpose.msra.mxu0 0.0
    %2050 = vmatprep.subr.mxu0 0.0
    %2051 = vmatpush2.xpose.msra.mxu0 0.0
    %2052 = vmatprep.subr.mxu0 0.0
    %2053 = vmatpush2.xpose.msra.mxu0 0.0
    %2054 = vmatprep.subr.mxu0 0.0
    %2055 = vmatpush2.xpose.msra.mxu0 0.0
    %2056 = vmatprep.subr.mxu0 0.0
    %2057 = vmatpush2.xpose.msra.mxu0 0.0
    %2058 = vmatprep.subr.mxu0 0.0
    %2059 = vmatpush2.xpose.msra.mxu0 0.0
    %2060 = vmatprep.subr.mxu0 0.0
    %2061 = vmatpush2.xpose.msra.mxu0 0.0
    %2062 = vmatprep.subr.mxu0 0.0
    %2063 = vmatpush2.xpose.msra.mxu0 0.0
    %2064 = vmatprep.subr.mxu0 0.0
    %2065 = vmatpush2.xpose.msra.mxu0 0.0
    %2066 = vmatprep.subr.mxu0 0.0
    %2067 = vmatpush2.xpose.msra.mxu0 0.0
    %2068 = vmatprep.subr.mxu0 0.0
    %2069 = vmatpush2.xpose.msra.mxu0 0.0
    %2070 = vmatprep.mubr.f32.mxu0 0.0
    %2071 = vmatmul.mubr.f32.gmra.mxu0 %v2001
    %v2072 = vpop.f32.mrf.mxu0
    %v2073 = vadd.f32 0.0, %v2072
    %v2074 = vpop.f32.mrf.mxu0
    %2075 = vdwg.mxu0
    %v2076 = vsel %vm300, %v2073, -inf
    %2077 = vmax.xlane.f32.xlu0 %v2076
    %v2078 = vpop.xlane.xlu0 %2077
    %v2079 = vsub.f32 %v2073, %v2078
    %v2080 = vmul.f32 %v2079, 1.442695
    %v2081 = vpow.pop %v2080
    %v2082 = vsel %vm300, %v2081, 0.0
    %2083 = vadd.xlane.f32.xlu0 %v2082
    %v2084 = vpop.xlane.xlu0 %2083
    %v2085 = vrcp.pop %v2084
    %v2086 = vmul.f32 %v2081, %v2085
    %v2088 = vsel %vm300, %v2086, 0
    %2090 = vmatprep.subr.mxu0 0.0
    %2091 = vmatpush1.msra.mxu0 0.0
    %2092 = vmatprep.subr.mxu0 0.0
    %2093 = vmatpush1.msra.mxu0 0.0
    %2094 = vmatprep.subr.mxu0 0.0
    %2095 = vmatpush1.msra.mxu0 0.0
    %2096 = vmatprep.subr.mxu0 0.0
    %2097 = vmatpush1.msra.mxu0 0.0
    %2098 = vmatprep.subr.mxu0 0.0
    %2099 = vmatpush1.msra.mxu0 0.0
    %2100 = vmatprep.subr.mxu0 0.0
    %2101 = vmatpush1.msra.mxu0 0.0
    %2102 = vmatprep.subr.mxu0 0.0
    %2103 = vmatpush1.msra.mxu0 0.0
    %2104 = vmatprep.subr.mxu0 0.0
    %2105 = vmatpush1.msra.mxu0 0.0
    %2106 = vmatprep.subr.mxu0 0.0
    %2107 = vmatpush1.msra.mxu0 0.0
    %2108 = vmatprep.subr.mxu0 0.0
    %2109 = vmatpush1.msra.mxu0 0.0
    %2110 = vmatprep.subr.mxu0 0.0
    %2111 = vmatpush1.msra.mxu0 0.0
    %2112 = vmatprep.subr.mxu0 0.0
    %2113 = vmatpush1.msra.mxu0 0.0
    %2114 = vmatprep.subr.mxu0 0.0
    %2115 = vmatpush1.msra.mxu0 0.0
    %2116 = vmatprep.subr.mxu0 0.0
    %2117 = vmatpush1.msra.mxu0 0.0
    %2118 = vmatprep.subr.mxu0 0.0
    %2119 = vmatpush1.msra.mxu0 0.0
    %2120 = vmatprep.subr.mxu0 0.0
    %2121 = vmatpush1.msra.mxu0 %v1761
    %2122 = vmatprep.subr.mxu0 0.0
    %2123 = vmatpush2.msra.mxu0 0.0
    %2124 = vmatprep.subr.mxu0 0.0
    %2125 = vmatpush2.msra.mxu0 0.0
    %2126 = vmatprep.subr.mxu0 0.0
    %2127 = vmatpush2.msra.mxu0 0.0
    %2128 = vmatprep.subr.mxu0 0.0
    %2129 = vmatpush2.msra.mxu0 0.0
    %2130 = vmatprep.subr.mxu0 0.0
    %2131 = vmatpush2.msra.mxu0 0.0
    %2132 = vmatprep.subr.mxu0 0.0
    %2133 = vmatpush2.msra.mxu0 0.0
    %2134 = vmatprep.subr.mxu0 0.0
    %2135 = vmatpush2.msra.mxu0 0.0
    %2136 = vmatprep.subr.mxu0 0.0
    %2137 = vmatpush2.msra.mxu0 0.0
    %2138 = vmatprep.subr.mxu0 0.0
    %2139 = vmatpush2.msra.mxu0 0.0
    %2140 = vmatprep.subr.mxu0 0.0
    %2141 = vmatpush2.msra.mxu0 0.0
    %2142 = vmatprep.subr.mxu0 0.0
    %2143 = vmatpush2.msra.mxu0 0.0
    %2144 = vmatprep.subr.mxu0 0.0
    %2145 = vmatpush2.msra.mxu0 0.0
    %2146 = vmatprep.subr.mxu0 0.0
    %2147 = vmatpush2.msra.mxu0 0.0
    %2148 = vmatprep.subr.mxu0 0.0
    %2149 = vmatpush2.msra.mxu0 0.0
    %2150 = vmatprep.subr.mxu0 0.0
    %2151 = vmatpush2.msra.mxu0 0.0
    %2152 = vmatprep.subr.mxu0 0.0
    %2153 = vmatpush2.msra.mxu0 0.0
    %2154 = vmatprep.mubr.f32.mxu0 0.0
    %2155 = vmatmul.mubr.f32.gmra.mxu0 %v2088
    %v2156 = vpop.f32.mrf.mxu0
    %v2157 = vadd.f32 0.0, %v2156
    %v2158 = vpop.f32.mrf.mxu0
    %2159 = vdwg.mxu0
    %v2161 = vsel %vm300, %v2157, 0
    %2163 = vmatprep.subr.mxu0 0.0
    %2164 = vmatpush1.msra.mxu0 0.0
    %2165 = vmatprep.subr.mxu0 0.0
    %2166 = vmatpush1.msra.mxu0 0.0
    %2167 = vmatprep.subr.mxu0 0.0
    %2168 = vmatpush1.msra.mxu0 0.0
    %2169 = vmatprep.subr.mxu0 0.0
    %2170 = vmatpush1.msra.mxu0 0.0
    %2171 = vmatprep.subr.mxu0 0.0
    %2172 = vmatpush1.msra.mxu0 0.0
    %2173 = vmatprep.subr.mxu0 0.0
    %2174 = vmatpush1.msra.mxu0 0.0
    %2175 = vmatprep.subr.mxu0 0.0
    %2176 = vmatpush1.msra.mxu0 0.0
    %2177 = vmatprep.subr.mxu0 0.0
    %2178 = vmatpush1.msra.mxu0 0.0
    %2179 = vmatprep.subr.mxu0 0.0
    %2180 = vmatpush1.msra.mxu0 0.0
    %2181 = vmatprep.subr.mxu0 0.0
    %2182 = vmatpush1.msra.mxu0 0.0
    %2183 = vmatprep.subr.mxu0 0.0
    %2184 = vmatpush1.msra.mxu0 0.0
    %2185 = vmatprep.subr.mxu0 0.0
    %2186 = vmatpush1.msra.mxu0 0.0
    %2187 = vmatprep.subr.mxu0 0.0
    %2188 = vmatpush1.msra.mxu0 0.0
    %2189 = vmatprep.subr.mxu0 0.0
    %2190 = vmatpush1.msra.mxu0 0.0
    %2191 = vmatprep.subr.mxu0 0.0
    %2192 = vmatpush1.msra.mxu0 0.0
    %2193 = vmatprep.subr.mxu0 0.0
    %2194 = vmatpush1.msra.mxu0 %v1925
    %2195 = vmatprep.subr.mxu0 0.0
    %2196 = vmatpush2.msra.mxu0 0.0
    %2197 = vmatprep.subr.mxu0 0.0
    %2198 = vmatpush2.msra.mxu0 0.0
    %2199 = vmatprep.subr.mxu0 0.0
    %2200 = vmatpush2.msra.mxu0 0.0
    %2201 = vmatprep.subr.mxu0 0.0
    %2202 = vmatpush2.msra.mxu0 0.0
    %2203 = vmatprep.subr.mxu0 0.0
    %2204 = vmatpush2.msra.mxu0 0.0
    %2205 = vmatprep.subr.mxu0 0.0
    %2206 = vmatpush2.msra.mxu0 0.0
    %2207 = vmatprep.subr.mxu0 0.0
    %2208 = vmatpush2.msra.mxu0 0.0
    %2209 = vmatprep.subr.mxu0 0.0
    %2210 = vmatpush2.msra.mxu0 0.0
    %2211 = vmatprep.subr.mxu0 0.0
    %2212 = vmatpush2.msra.mxu0 0.0
    %2213 = vmatprep.subr.mxu0 0.0
    %2214 = vmatpush2.msra.mxu0 0.0
    %2215 = vmatprep.subr.mxu0 0.0
    %2216 = vmatpush2.msra.mxu0 0.0
    %2217 = vmatprep.subr.mxu0 0.0
    %2218 = vmatpush2.msra.mxu0 0.0
    %2219 = vmatprep.subr.mxu0 0.0
    %2220 = vmatpush2.msra.mxu0 0.0
    %2221 = vmatprep.subr.mxu0 0.0
    %2222 = vmatpush2.msra.mxu0 0.0
    %2223 = vmatprep.subr.mxu0 0.0
    %2224 = vmatpush2.msra.mxu0 0.0
    %2225 = vmatprep.subr.mxu0 0.0
    %2226 = vmatpush2.msra.mxu0 0.0
    %2227 = vmatprep.mubr.f32.mxu0 0.0
    %2228 = vmatmul.mubr.f32.gmra.mxu0 %v2161
    %v2229 = vpop.f32.mrf.mxu0
    %v2230 = vadd.f32 0.0, %v2229
    %v2231 = vpop.f32.mrf.mxu0
    %2232 = vdwg.mxu0
    %v2233 = vadd.f32 %v1497, %v2230
    %s2234 = scalar_lea.vmem %s1, 96
    %v2235 = vld [vmem:[%s2234] sm:$0xff]
    %v2236 = vld [vmem:[%s2234 + $0x8] sm:$0xff]
    %v2237 = vld [vmem:[%s2234 + $0x10] sm:$0xff]
    %v2238 = vld [vmem:[%s2234 + $0x18] sm:$0xff]
    %s2239 = scalar_lea.vmem %s2, 3
    %v2240 = vld [vmem:[%s2239] sm:$0x1]
    %v2242 = vlaneseq
    %v2243 = vshrl.u32 %v2242, 7
    %v2244 = vsub.s32 0, %v2243
    %v2245 = vrot.slane %v2240, %v2244
    %2247 = vmatprep.subr.mxu0 0.0
    %2248 = vmatpush1.msra.mxu0 0.0
    %2249 = vmatprep.subr.mxu0 0.0
    %2250 = vmatpush1.msra.mxu0 0.0
    %2251 = vmatprep.subr.mxu0 0.0
    %2252 = vmatpush1.msra.mxu0 0.0
    %2253 = vmatprep.subr.mxu0 0.0
    %2254 = vmatpush1.msra.mxu0 0.0
    %2255 = vmatprep.subr.mxu0 0.0
    %2256 = vmatpush1.msra.mxu0 0.0
    %2257 = vmatprep.subr.mxu0 0.0
    %2258 = vmatpush1.msra.mxu0 0.0
    %2259 = vmatprep.subr.mxu0 0.0
    %2260 = vmatpush1.msra.mxu0 0.0
    %2261 = vmatprep.subr.mxu0 0.0
    %2262 = vmatpush1.msra.mxu0 0.0
    %2263 = vmatprep.subr.mxu0 0.0
    %2264 = vmatpush1.msra.mxu0 0.0
    %2265 = vmatprep.subr.mxu0 0.0
    %2266 = vmatpush1.msra.mxu0 0.0
    %2267 = vmatprep.subr.mxu0 0.0
    %2268 = vmatpush1.msra.mxu0 0.0
    %2269 = vmatprep.subr.mxu0 0.0
    %2270 = vmatpush1.msra.mxu0 0.0
    %2271 = vmatprep.subr.mxu0 0.0
    %2272 = vmatpush1.msra.mxu0 %v2238
    %2273 = vmatprep.subr.mxu0 0.0
    %2274 = vmatpush1.msra.mxu0 %v2237
    %2275 = vmatprep.subr.mxu0 0.0
    %2276 = vmatpush1.msra.mxu0 %v2236
    %2277 = vmatprep.subr.mxu0 0.0
    %2278 = vmatpush1.msra.mxu0 %v2235
    %2279 = vmatprep.subr.mxu0 0.0
    %2280 = vmatpush2.msra.mxu0 0.0
    %2281 = vmatprep.subr.mxu0 0.0
    %2282 = vmatpush2.msra.mxu0 0.0
    %2283 = vmatprep.subr.mxu0 0.0
    %2284 = vmatpush2.msra.mxu0 0.0
    %2285 = vmatprep.subr.mxu0 0.0
    %2286 = vmatpush2.msra.mxu0 0.0
    %2287 = vmatprep.subr.mxu0 0.0
    %2288 = vmatpush2.msra.mxu0 0.0
    %2289 = vmatprep.subr.mxu0 0.0
    %2290 = vmatpush2.msra.mxu0 0.0
    %2291 = vmatprep.subr.mxu0 0.0
    %2292 = vmatpush2.msra.mxu0 0.0
    %2293 = vmatprep.subr.mxu0 0.0
    %2294 = vmatpush2.msra.mxu0 0.0
    %2295 = vmatprep.subr.mxu0 0.0
    %2296 = vmatpush2.msra.mxu0 0.0
    %2297 = vmatprep.subr.mxu0 0.0
    %2298 = vmatpush2.msra.mxu0 0.0
    %2299 = vmatprep.subr.mxu0 0.0
    %2300 = vmatpush2.msra.mxu0 0.0
    %2301 = vmatprep.subr.mxu0 0.0
    %2302 = vmatpush2.msra.mxu0 0.0
    %2303 = vmatprep.subr.mxu0 0.0
    %2304 = vmatpush2.msra.mxu0 0.0
    %2305 = vmatprep.subr.mxu0 0.0
    %2306 = vmatpush2.msra.mxu0 0.0
    %2307 = vmatprep.subr.mxu0 0.0
    %2308 = vmatpush2.msra.mxu0 0.0
    %2309 = vmatprep.subr.mxu0 0.0
    %2310 = vmatpush2.msra.mxu0 0.0
    %2311 = vmatprep.mubr.f32.mxu0 0.0
    %2312 = vmatmul.mubr.f32.gmra.mxu0 %v48
    %v2313 = vpop.f32.mrf.mxu0
    %v2314 = vadd.f32 %v2245, %v2313
    %v2315 = vpop.f32.mrf.mxu0
    %2316 = vmatprep.mubr.f32.mxu0 0.0
    %2317 = vmatmul.mubr.f32.gmra.mxu0 %v51
    %v2318 = vpop.f32.mrf.mxu0
    %v2319 = vadd.f32 %v2245, %v2318
    %v2320 = vpop.f32.mrf.mxu0
    %2321 = vdwg.mxu0
    %s2322 = scalar_lea.vmem %s3, 96
    %v2323 = vld [vmem:[%s2322] sm:$0xff]
    %v2324 = vld [vmem:[%s2322 + $0x8] sm:$0xff]
    %v2325 = vld [vmem:[%s2322 + $0x10] sm:$0xff]
    %v2326 = vld [vmem:[%s2322 + $0x18] sm:$0xff]
    %s2327 = scalar_lea.vmem %s4, 3
    %v2328 = vld [vmem:[%s2327] sm:$0x1]
    %v2330 = vlaneseq
    %v2331 = vshrl.u32 %v2330, 7
    %v2332 = vsub.s32 0, %v2331
    %v2333 = vrot.slane %v2328, %v2332
    %2335 = vmatprep.subr.mxu0 0.0
    %2336 = vmatpush1.msra.mxu0 0.0
    %2337 = vmatprep.subr.mxu0 0.0
    %2338 = vmatpush1.msra.mxu0 0.0
    %2339 = vmatprep.subr.mxu0 0.0
    %2340 = vmatpush1.msra.mxu0 0.0
    %2341 = vmatprep.subr.mxu0 0.0
    %2342 = vmatpush1.msra.mxu0 0.0
    %2343 = vmatprep.subr.mxu0 0.0
    %2344 = vmatpush1.msra.mxu0 0.0
    %2345 = vmatprep.subr.mxu0 0.0
    %2346 = vmatpush1.msra.mxu0 0.0
    %2347 = vmatprep.subr.mxu0 0.0
    %2348 = vmatpush1.msra.mxu0 0.0
    %2349 = vmatprep.subr.mxu0 0.0
    %2350 = vmatpush1.msra.mxu0 0.0
    %2351 = vmatprep.subr.mxu0 0.0
    %2352 = vmatpush1.msra.mxu0 0.0
    %2353 = vmatprep.subr.mxu0 0.0
    %2354 = vmatpush1.msra.mxu0 0.0
    %2355 = vmatprep.subr.mxu0 0.0
    %2356 = vmatpush1.msra.mxu0 0.0
    %2357 = vmatprep.subr.mxu0 0.0
    %2358 = vmatpush1.msra.mxu0 0.0
    %2359 = vmatprep.subr.mxu0 0.0
    %2360 = vmatpush1.msra.mxu0 %v2326
    %2361 = vmatprep.subr.mxu0 0.0
    %2362 = vmatpush1.msra.mxu0 %v2325
    %2363 = vmatprep.subr.mxu0 0.0
    %2364 = vmatpush1.msra.mxu0 %v2324
    %2365 = vmatprep.subr.mxu0 0.0
    %2366 = vmatpush1.msra.mxu0 %v2323
    %2367 = vmatprep.subr.mxu0 0.0
    %2368 = vmatpush2.msra.mxu0 0.0
    %2369 = vmatprep.subr.mxu0 0.0
    %2370 = vmatpush2.msra.mxu0 0.0
    %2371 = vmatprep.subr.mxu0 0.0
    %2372 = vmatpush2.msra.mxu0 0.0
    %2373 = vmatprep.subr.mxu0 0.0
    %2374 = vmatpush2.msra.mxu0 0.0
    %2375 = vmatprep.subr.mxu0 0.0
    %2376 = vmatpush2.msra.mxu0 0.0
    %2377 = vmatprep.subr.mxu0 0.0
    %2378 = vmatpush2.msra.mxu0 0.0
    %2379 = vmatprep.subr.mxu0 0.0
    %2380 = vmatpush2.msra.mxu0 0.0
    %2381 = vmatprep.subr.mxu0 0.0
    %2382 = vmatpush2.msra.mxu0 0.0
    %2383 = vmatprep.subr.mxu0 0.0
    %2384 = vmatpush2.msra.mxu0 0.0
    %2385 = vmatprep.subr.mxu0 0.0
    %2386 = vmatpush2.msra.mxu0 0.0
    %2387 = vmatprep.subr.mxu0 0.0
    %2388 = vmatpush2.msra.mxu0 0.0
    %2389 = vmatprep.subr.mxu0 0.0
    %2390 = vmatpush2.msra.mxu0 0.0
    %2391 = vmatprep.subr.mxu0 0.0
    %2392 = vmatpush2.msra.mxu0 0.0
    %2393 = vmatprep.subr.mxu0 0.0
    %2394 = vmatpush2.msra.mxu0 0.0
    %2395 = vmatprep.subr.mxu0 0.0
    %2396 = vmatpush2.msra.mxu0 0.0
    %2397 = vmatprep.subr.mxu0 0.0
    %2398 = vmatpush2.msra.mxu0 0.0
    %2399 = vmatprep.mubr.f32.mxu0 0.0
    %2400 = vmatmul.mubr.f32.gmra.mxu0 %v48
    %v2401 = vpop.f32.mrf.mxu0
    %v2402 = vadd.f32 %v2333, %v2401
    %v2403 = vpop.f32.mrf.mxu0
    %2404 = vmatprep.mubr.f32.mxu0 0.0
    %2405 = vmatmul.mubr.f32.gmra.mxu0 %v51
    %v2406 = vpop.f32.mrf.mxu0
    %v2407 = vadd.f32 %v2333, %v2406
    %v2408 = vpop.f32.mrf.mxu0
    %2409 = vdwg.mxu0
    %s2410 = scalar_lea.vmem %s5, 96
    %v2411 = vld [vmem:[%s2410] sm:$0xff]
    %v2412 = vld [vmem:[%s2410 + $0x8] sm:$0xff]
    %v2413 = vld [vmem:[%s2410 + $0x10] sm:$0xff]
    %v2414 = vld [vmem:[%s2410 + $0x18] sm:$0xff]
    %s2415 = scalar_lea.vmem %s6, 3
    %v2416 = vld [vmem:[%s2415] sm:$0x1]
    %v2418 = vlaneseq
    %v2419 = vshrl.u32 %v2418, 7
    %v2420 = vsub.s32 0, %v2419
    %v2421 = vrot.slane %v2416, %v2420
    %2423 = vmatprep.subr.mxu0 0.0
    %2424 = vmatpush1.msra.mxu0 0.0
    %2425 = vmatprep.subr.mxu0 0.0
    %2426 = vmatpush1.msra.mxu0 0.0
    %2427 = vmatprep.subr.mxu0 0.0
    %2428 = vmatpush1.msra.mxu0 0.0
    %2429 = vmatprep.subr.mxu0 0.0
    %2430 = vmatpush1.msra.mxu0 0.0
    %2431 = vmatprep.subr.mxu0 0.0
    %2432 = vmatpush1.msra.mxu0 0.0
    %2433 = vmatprep.subr.mxu0 0.0
    %2434 = vmatpush1.msra.mxu0 0.0
    %2435 = vmatprep.subr.mxu0 0.0
    %2436 = vmatpush1.msra.mxu0 0.0
    %2437 = vmatprep.subr.mxu0 0.0
    %2438 = vmatpush1.msra.mxu0 0.0
    %2439 = vmatprep.subr.mxu0 0.0
    %2440 = vmatpush1.msra.mxu0 0.0
    %2441 = vmatprep.subr.mxu0 0.0
    %2442 = vmatpush1.msra.mxu0 0.0
    %2443 = vmatprep.subr.mxu0 0.0
    %2444 = vmatpush1.msra.mxu0 0.0
    %2445 = vmatprep.subr.mxu0 0.0
    %2446 = vmatpush1.msra.mxu0 0.0
    %2447 = vmatprep.subr.mxu0 0.0
    %2448 = vmatpush1.msra.mxu0 %v2414
    %2449 = vmatprep.subr.mxu0 0.0
    %2450 = vmatpush1.msra.mxu0 %v2413
    %2451 = vmatprep.subr.mxu0 0.0
    %2452 = vmatpush1.msra.mxu0 %v2412
    %2453 = vmatprep.subr.mxu0 0.0
    %2454 = vmatpush1.msra.mxu0 %v2411
    %2455 = vmatprep.subr.mxu0 0.0
    %2456 = vmatpush2.msra.mxu0 0.0
    %2457 = vmatprep.subr.mxu0 0.0
    %2458 = vmatpush2.msra.mxu0 0.0
    %2459 = vmatprep.subr.mxu0 0.0
    %2460 = vmatpush2.msra.mxu0 0.0
    %2461 = vmatprep.subr.mxu0 0.0
    %2462 = vmatpush2.msra.mxu0 0.0
    %2463 = vmatprep.subr.mxu0 0.0
    %2464 = vmatpush2.msra.mxu0 0.0
    %2465 = vmatprep.subr.mxu0 0.0
    %2466 = vmatpush2.msra.mxu0 0.0
    %2467 = vmatprep.subr.mxu0 0.0
    %2468 = vmatpush2.msra.mxu0 0.0
    %2469 = vmatprep.subr.mxu0 0.0
    %2470 = vmatpush2.msra.mxu0 0.0
    %2471 = vmatprep.subr.mxu0 0.0
    %2472 = vmatpush2.msra.mxu0 0.0
    %2473 = vmatprep.subr.mxu0 0.0
    %2474 = vmatpush2.msra.mxu0 0.0
    %2475 = vmatprep.subr.mxu0 0.0
    %2476 = vmatpush2.msra.mxu0 0.0
    %2477 = vmatprep.subr.mxu0 0.0
    %2478 = vmatpush2.msra.mxu0 0.0
    %2479 = vmatprep.subr.mxu0 0.0
    %2480 = vmatpush2.msra.mxu0 0.0
    %2481 = vmatprep.subr.mxu0 0.0
    %2482 = vmatpush2.msra.mxu0 0.0
    %2483 = vmatprep.subr.mxu0 0.0
    %2484 = vmatpush2.msra.mxu0 0.0
    %2485 = vmatprep.subr.mxu0 0.0
    %2486 = vmatpush2.msra.mxu0 0.0
    %2487 = vmatprep.mubr.f32.mxu0 0.0
    %2488 = vmatmul.mubr.f32.gmra.mxu0 %v48
    %v2489 = vpop.f32.mrf.mxu0
    %v2490 = vadd.f32 %v2421, %v2489
    %v2491 = vpop.f32.mrf.mxu0
    %2492 = vmatprep.mubr.f32.mxu0 0.0
    %2493 = vmatmul.mubr.f32.gmra.mxu0 %v51
    %v2494 = vpop.f32.mrf.mxu0
    %v2495 = vadd.f32 %v2421, %v2494
    %v2496 = vpop.f32.mrf.mxu0
    %2497 = vdwg.mxu0
    %v2499 = vsel %vm300, %v2314, 0
    %v2502 = vsel %vm300, %v2402, 0
    %2504 = vmatprep.subr.mxu0 0.0
    %2505 = vmatpush1.xpose.msra.mxu0 0.0
    %2506 = vmatprep.subr.mxu0 0.0
    %2507 = vmatpush1.xpose.msra.mxu0 0.0
    %2508 = vmatprep.subr.mxu0 0.0
    %2509 = vmatpush1.xpose.msra.mxu0 0.0
    %2510 = vmatprep.subr.mxu0 0.0
    %2511 = vmatpush1.xpose.msra.mxu0 0.0
    %2512 = vmatprep.subr.mxu0 0.0
    %2513 = vmatpush1.xpose.msra.mxu0 0.0
    %2514 = vmatprep.subr.mxu0 0.0
    %2515 = vmatpush1.xpose.msra.mxu0 0.0
    %2516 = vmatprep.subr.mxu0 0.0
    %2517 = vmatpush1.xpose.msra.mxu0 0.0
    %2518 = vmatprep.subr.mxu0 0.0
    %2519 = vmatpush1.xpose.msra.mxu0 0.0
    %2520 = vmatprep.subr.mxu0 0.0
    %2521 = vmatpush1.xpose.msra.mxu0 0.0
    %2522 = vmatprep.subr.mxu0 0.0
    %2523 = vmatpush1.xpose.msra.mxu0 0.0
    %2524 = vmatprep.subr.mxu0 0.0
    %2525 = vmatpush1.xpose.msra.mxu0 0.0
    %2526 = vmatprep.subr.mxu0 0.0
    %2527 = vmatpush1.xpose.msra.mxu0 0.0
    %2528 = vmatprep.subr.mxu0 0.0
    %2529 = vmatpush1.xpose.msra.mxu0 0.0
    %2530 = vmatprep.subr.mxu0 0.0
    %2531 = vmatpush1.xpose.msra.mxu0 0.0
    %2532 = vmatprep.subr.mxu0 0.0
    %2533 = vmatpush1.xpose.msra.mxu0 0.0
    %2534 = vmatprep.subr.mxu0 0.0
    %2535 = vmatpush1.xpose.msra.mxu0 %v2502
    %2536 = vmatprep.subr.mxu0 0.0
    %2537 = vmatpush2.xpose.msra.mxu0 0.0
    %2538 = vmatprep.subr.mxu0 0.0
    %2539 = vmatpush2.xpose.msra.mxu0 0.0
    %2540 = vmatprep.subr.mxu0 0.0
    %2541 = vmatpush2.xpose.msra.mxu0 0.0
    %2542 = vmatprep.subr.mxu0 0.0
    %2543 = vmatpush2.xpose.msra.mxu0 0.0
    %2544 = vmatprep.subr.mxu0 0.0
    %2545 = vmatpush2.xpose.msra.mxu0 0.0
    %2546 = vmatprep.subr.mxu0 0.0
    %2547 = vmatpush2.xpose.msra.mxu0 0.0
    %2548 = vmatprep.subr.mxu0 0.0
    %2549 = vmatpush2.xpose.msra.mxu0 0.0
    %2550 = vmatprep.subr.mxu0 0.0
    %2551 = vmatpush2.xpose.msra.mxu0 0.0
    %2552 = vmatprep.subr.mxu0 0.0
    %2553 = vmatpush2.xpose.msra.mxu0 0.0
    %2554 = vmatprep.subr.mxu0 0.0
    %2555 = vmatpush2.xpose.msra.mxu0 0.0
    %2556 = vmatprep.subr.mxu0 0.0
    %2557 = vmatpush2.xpose.msra.mxu0 0.0
    %2558 = vmatprep.subr.mxu0 0.0
    %2559 = vmatpush2.xpose.msra.mxu0 0.0
    %2560 = vmatprep.subr.mxu0 0.0
    %2561 = vmatpush2.xpose.msra.mxu0 0.0
    %2562 = vmatprep.subr.mxu0 0.0
    %2563 = vmatpush2.xpose.msra.mxu0 0.0
    %2564 = vmatprep.subr.mxu0 0.0
    %2565 = vmatpush2.xpose.msra.mxu0 0.0
    %2566 = vmatprep.subr.mxu0 0.0
    %2567 = vmatpush2.xpose.msra.mxu0 0.0
    %2568 = vmatprep.mubr.f32.mxu0 0.0
    %2569 = vmatmul.mubr.f32.gmra.mxu0 %v2499
    %v2570 = vpop.f32.mrf.mxu0
    %v2571 = vadd.f32 0.0, %v2570
    %v2572 = vpop.f32.mrf.mxu0
    %2573 = vdwg.mxu0
    %v2574 = vsel %vm300, %v2571, -inf
    %2575 = vmax.xlane.f32.xlu0 %v2574
    %v2576 = vpop.xlane.xlu0 %2575
    %v2577 = vsub.f32 %v2571, %v2576
    %v2578 = vmul.f32 %v2577, 1.442695
    %v2579 = vpow.pop %v2578
    %v2580 = vsel %vm300, %v2579, 0.0
    %2581 = vadd.xlane.f32.xlu0 %v2580
    %v2582 = vpop.xlane.xlu0 %2581
    %v2583 = vrcp.pop %v2582
    %v2584 = vmul.f32 %v2579, %v2583
    %v2586 = vsel %vm300, %v2584, 0
    %2588 = vmatprep.subr.mxu0 0.0
    %2589 = vmatpush1.msra.mxu0 0.0
    %2590 = vmatprep.subr.mxu0 0.0
    %2591 = vmatpush1.msra.mxu0 0.0
    %2592 = vmatprep.subr.mxu0 0.0
    %2593 = vmatpush1.msra.mxu0 0.0
    %2594 = vmatprep.subr.mxu0 0.0
    %2595 = vmatpush1.msra.mxu0 0.0
    %2596 = vmatprep.subr.mxu0 0.0
    %2597 = vmatpush1.msra.mxu0 0.0
    %2598 = vmatprep.subr.mxu0 0.0
    %2599 = vmatpush1.msra.mxu0 0.0
    %2600 = vmatprep.subr.mxu0 0.0
    %2601 = vmatpush1.msra.mxu0 0.0
    %2602 = vmatprep.subr.mxu0 0.0
    %2603 = vmatpush1.msra.mxu0 0.0
    %2604 = vmatprep.subr.mxu0 0.0
    %2605 = vmatpush1.msra.mxu0 0.0
    %2606 = vmatprep.subr.mxu0 0.0
    %2607 = vmatpush1.msra.mxu0 0.0
    %2608 = vmatprep.subr.mxu0 0.0
    %2609 = vmatpush1.msra.mxu0 0.0
    %2610 = vmatprep.subr.mxu0 0.0
    %2611 = vmatpush1.msra.mxu0 0.0
    %2612 = vmatprep.subr.mxu0 0.0
    %2613 = vmatpush1.msra.mxu0 0.0
    %2614 = vmatprep.subr.mxu0 0.0
    %2615 = vmatpush1.msra.mxu0 0.0
    %2616 = vmatprep.subr.mxu0 0.0
    %2617 = vmatpush1.msra.mxu0 0.0
    %2618 = vmatprep.subr.mxu0 0.0
    %2619 = vmatpush1.msra.mxu0 %v2490
    %2620 = vmatprep.subr.mxu0 0.0
    %2621 = vmatpush2.msra.mxu0 0.0
    %2622 = vmatprep.subr.mxu0 0.0
    %2623 = vmatpush2.msra.mxu0 0.0
    %2624 = vmatprep.subr.mxu0 0.0
    %2625 = vmatpush2.msra.mxu0 0.0
    %2626 = vmatprep.subr.mxu0 0.0
    %2627 = vmatpush2.msra.mxu0 0.0
    %2628 = vmatprep.subr.mxu0 0.0
    %2629 = vmatpush2.msra.mxu0 0.0
    %2630 = vmatprep.subr.mxu0 0.0
    %2631 = vmatpush2.msra.mxu0 0.0
    %2632 = vmatprep.subr.mxu0 0.0
    %2633 = vmatpush2.msra.mxu0 0.0
    %2634 = vmatprep.subr.mxu0 0.0
    %2635 = vmatpush2.msra.mxu0 0.0
    %2636 = vmatprep.subr.mxu0 0.0
    %2637 = vmatpush2.msra.mxu0 0.0
    %2638 = vmatprep.subr.mxu0 0.0
    %2639 = vmatpush2.msra.mxu0 0.0
    %2640 = vmatprep.subr.mxu0 0.0
    %2641 = vmatpush2.msra.mxu0 0.0
    %2642 = vmatprep.subr.mxu0 0.0
    %2643 = vmatpush2.msra.mxu0 0.0
    %2644 = vmatprep.subr.mxu0 0.0
    %2645 = vmatpush2.msra.mxu0 0.0
    %2646 = vmatprep.subr.mxu0 0.0
    %2647 = vmatpush2.msra.mxu0 0.0
    %2648 = vmatprep.subr.mxu0 0.0
    %2649 = vmatpush2.msra.mxu0 0.0
    %2650 = vmatprep.subr.mxu0 0.0
    %2651 = vmatpush2.msra.mxu0 0.0
    %2652 = vmatprep.mubr.f32.mxu0 0.0
    %2653 = vmatmul.mubr.f32.gmra.mxu0 %v2586
    %v2654 = vpop.f32.mrf.mxu0
    %v2655 = vadd.f32 0.0, %v2654
    %v2656 = vpop.f32.mrf.mxu0
    %2657 = vdwg.mxu0
    %s2658 = scalar_lea.vmem %s7, 24
    %v2659 = vld [vmem:[%s2658] sm:$0xff]
    %v2661 = vsel %vm300, %v2655, 0
    %2663 = vmatprep.subr.mxu0 0.0
    %2664 = vmatpush1.msra.mxu0 0.0
    %2665 = vmatprep.subr.mxu0 0.0
    %2666 = vmatpush1.msra.mxu0 0.0
    %2667 = vmatprep.subr.mxu0 0.0
    %2668 = vmatpush1.msra.mxu0 0.0
    %2669 = vmatprep.subr.mxu0 0.0
    %2670 = vmatpush1.msra.mxu0 0.0
    %2671 = vmatprep.subr.mxu0 0.0
    %2672 = vmatpush1.msra.mxu0 0.0
    %2673 = vmatprep.subr.mxu0 0.0
    %2674 = vmatpush1.msra.mxu0 0.0
    %2675 = vmatprep.subr.mxu0 0.0
    %2676 = vmatpush1.msra.mxu0 0.0
    %2677 = vmatprep.subr.mxu0 0.0
    %2678 = vmatpush1.msra.mxu0 0.0
    %2679 = vmatprep.subr.mxu0 0.0
    %2680 = vmatpush1.msra.mxu0 0.0
    %2681 = vmatprep.subr.mxu0 0.0
    %2682 = vmatpush1.msra.mxu0 0.0
    %2683 = vmatprep.subr.mxu0 0.0
    %2684 = vmatpush1.msra.mxu0 0.0
    %2685 = vmatprep.subr.mxu0 0.0
    %2686 = vmatpush1.msra.mxu0 0.0
    %2687 = vmatprep.subr.mxu0 0.0
    %2688 = vmatpush1.msra.mxu0 0.0
    %2689 = vmatprep.subr.mxu0 0.0
    %2690 = vmatpush1.msra.mxu0 0.0
    %2691 = vmatprep.subr.mxu0 0.0
    %2692 = vmatpush1.msra.mxu0 0.0
    %2693 = vmatprep.subr.mxu0 0.0
    %2694 = vmatpush1.msra.mxu0 %v2659
    %2695 = vmatprep.subr.mxu0 0.0
    %2696 = vmatpush2.msra.mxu0 0.0
    %2697 = vmatprep.subr.mxu0 0.0
    %2698 = vmatpush2.msra.mxu0 0.0
    %2699 = vmatprep.subr.mxu0 0.0
    %2700 = vmatpush2.msra.mxu0 0.0
    %2701 = vmatprep.subr.mxu0 0.0
    %2702 = vmatpush2.msra.mxu0 0.0
    %2703 = vmatprep.subr.mxu0 0.0
    %2704 = vmatpush2.msra.mxu0 0.0
    %2705 = vmatprep.subr.mxu0 0.0
    %2706 = vmatpush2.msra.mxu0 0.0
    %2707 = vmatprep.subr.mxu0 0.0
    %2708 = vmatpush2.msra.mxu0 0.0
    %2709 = vmatprep.subr.mxu0 0.0
    %2710 = vmatpush2.msra.mxu0 0.0
    %2711 = vmatprep.subr.mxu0 0.0
    %2712 = vmatpush2.msra.mxu0 0.0
    %2713 = vmatprep.subr.mxu0 0.0
    %2714 = vmatpush2.msra.mxu0 0.0
    %2715 = vmatprep.subr.mxu0 0.0
    %2716 = vmatpush2.msra.mxu0 0.0
    %2717 = vmatprep.subr.mxu0 0.0
    %2718 = vmatpush2.msra.mxu0 0.0
    %2719 = vmatprep.subr.mxu0 0.0
    %2720 = vmatpush2.msra.mxu0 0.0
    %2721 = vmatprep.subr.mxu0 0.0
    %2722 = vmatpush2.msra.mxu0 0.0
    %2723 = vmatprep.subr.mxu0 0.0
    %2724 = vmatpush2.msra.mxu0 0.0
    %2725 = vmatprep.subr.mxu0 0.0
    %2726 = vmatpush2.msra.mxu0 0.0
    %2727 = vmatprep.mubr.f32.mxu0 0.0
    %2728 = vmatmul.mubr.f32.gmra.mxu0 %v2661
    %v2729 = vpop.f32.mrf.mxu0
    %v2730 = vadd.f32 0.0, %v2729
    %v2731 = vpop.f32.mrf.mxu0
    %2732 = vdwg.mxu0
    %v2733 = vadd.f32 %v1999, %v2730
    %v2735 = vsel %vm300, %v2319, 0
    %v2738 = vsel %vm300, %v2407, 0
    %2740 = vmatprep.subr.mxu0 0.0
    %2741 = vmatpush1.xpose.msra.mxu0 0.0
    %2742 = vmatprep.subr.mxu0 0.0
    %2743 = vmatpush1.xpose.msra.mxu0 0.0
    %2744 = vmatprep.subr.mxu0 0.0
    %2745 = vmatpush1.xpose.msra.mxu0 0.0
    %2746 = vmatprep.subr.mxu0 0.0
    %2747 = vmatpush1.xpose.msra.mxu0 0.0
    %2748 = vmatprep.subr.mxu0 0.0
    %2749 = vmatpush1.xpose.msra.mxu0 0.0
    %2750 = vmatprep.subr.mxu0 0.0
    %2751 = vmatpush1.xpose.msra.mxu0 0.0
    %2752 = vmatprep.subr.mxu0 0.0
    %2753 = vmatpush1.xpose.msra.mxu0 0.0
    %2754 = vmatprep.subr.mxu0 0.0
    %2755 = vmatpush1.xpose.msra.mxu0 0.0
    %2756 = vmatprep.subr.mxu0 0.0
    %2757 = vmatpush1.xpose.msra.mxu0 0.0
    %2758 = vmatprep.subr.mxu0 0.0
    %2759 = vmatpush1.xpose.msra.mxu0 0.0
    %2760 = vmatprep.subr.mxu0 0.0
    %2761 = vmatpush1.xpose.msra.mxu0 0.0
    %2762 = vmatprep.subr.mxu0 0.0
    %2763 = vmatpush1.xpose.msra.mxu0 0.0
    %2764 = vmatprep.subr.mxu0 0.0
    %2765 = vmatpush1.xpose.msra.mxu0 0.0
    %2766 = vmatprep.subr.mxu0 0.0
    %2767 = vmatpush1.xpose.msra.mxu0 0.0
    %2768 = vmatprep.subr.mxu0 0.0
    %2769 = vmatpush1.xpose.msra.mxu0 0.0
    %2770 = vmatprep.subr.mxu0 0.0
    %2771 = vmatpush1.xpose.msra.mxu0 %v2738
    %2772 = vmatprep.subr.mxu0 0.0
    %2773 = vmatpush2.xpose.msra.mxu0 0.0
    %2774 = vmatprep.subr.mxu0 0.0
    %2775 = vmatpush2.xpose.msra.mxu0 0.0
    %2776 = vmatprep.subr.mxu0 0.0
    %2777 = vmatpush2.xpose.msra.mxu0 0.0
    %2778 = vmatprep.subr.mxu0 0.0
    %2779 = vmatpush2.xpose.msra.mxu0 0.0
    %2780 = vmatprep.subr.mxu0 0.0
    %2781 = vmatpush2.xpose.msra.mxu0 0.0
    %2782 = vmatprep.subr.mxu0 0.0
    %2783 = vmatpush2.xpose.msra.mxu0 0.0
    %2784 = vmatprep.subr.mxu0 0.0
    %2785 = vmatpush2.xpose.msra.mxu0 0.0
    %2786 = vmatprep.subr.mxu0 0.0
    %2787 = vmatpush2.xpose.msra.mxu0 0.0
    %2788 = vmatprep.subr.mxu0 0.0
    %2789 = vmatpush2.xpose.msra.mxu0 0.0
    %2790 = vmatprep.subr.mxu0 0.0
    %2791 = vmatpush2.xpose.msra.mxu0 0.0
    %2792 = vmatprep.subr.mxu0 0.0
    %2793 = vmatpush2.xpose.msra.mxu0 0.0
    %2794 = vmatprep.subr.mxu0 0.0
    %2795 = vmatpush2.xpose.msra.mxu0 0.0
    %2796 = vmatprep.subr.mxu0 0.0
    %2797 = vmatpush2.xpose.msra.mxu0 0.0
    %2798 = vmatprep.subr.mxu0 0.0
    %2799 = vmatpush2.xpose.msra.mxu0 0.0
    %2800 = vmatprep.subr.mxu0 0.0
    %2801 = vmatpush2.xpose.msra.mxu0 0.0
    %2802 = vmatprep.subr.mxu0 0.0
    %2803 = vmatpush2.xpose.msra.mxu0 0.0
    %2804 = vmatprep.mubr.f32.mxu0 0.0
    %2805 = vmatmul.mubr.f32.gmra.mxu0 %v2735
    %v2806 = vpop.f32.mrf.mxu0
    %v2807 = vadd.f32 0.0, %v2806
    %v2808 = vpop.f32.mrf.mxu0
    %2809 = vdwg.mxu0
    %v2810 = vsel %vm300, %v2807, -inf
    %2811 = vmax.xlane.f32.xlu0 %v2810
    %v2812 = vpop.xlane.xlu0 %2811
    %v2813 = vsub.f32 %v2807, %v2812
    %v2814 = vmul.f32 %v2813, 1.442695
    %v2815 = vpow.pop %v2814
    %v2816 = vsel %vm300, %v2815, 0.0
    %2817 = vadd.xlane.f32.xlu0 %v2816
    %v2818 = vpop.xlane.xlu0 %2817
    %v2819 = vrcp.pop %v2818
    %v2820 = vmul.f32 %v2815, %v2819
    %v2822 = vsel %vm300, %v2820, 0
    %2824 = vmatprep.subr.mxu0 0.0
    %2825 = vmatpush1.msra.mxu0 0.0
    %2826 = vmatprep.subr.mxu0 0.0
    %2827 = vmatpush1.msra.mxu0 0.0
    %2828 = vmatprep.subr.mxu0 0.0
    %2829 = vmatpush1.msra.mxu0 0.0
    %2830 = vmatprep.subr.mxu0 0.0
    %2831 = vmatpush1.msra.mxu0 0.0
    %2832 = vmatprep.subr.mxu0 0.0
    %2833 = vmatpush1.msra.mxu0 0.0
    %2834 = vmatprep.subr.mxu0 0.0
    %2835 = vmatpush1.msra.mxu0 0.0
    %2836 = vmatprep.subr.mxu0 0.0
    %2837 = vmatpush1.msra.mxu0 0.0
    %2838 = vmatprep.subr.mxu0 0.0
    %2839 = vmatpush1.msra.mxu0 0.0
    %2840 = vmatprep.subr.mxu0 0.0
    %2841 = vmatpush1.msra.mxu0 0.0
    %2842 = vmatprep.subr.mxu0 0.0
    %2843 = vmatpush1.msra.mxu0 0.0
    %2844 = vmatprep.subr.mxu0 0.0
    %2845 = vmatpush1.msra.mxu0 0.0
    %2846 = vmatprep.subr.mxu0 0.0
    %2847 = vmatpush1.msra.mxu0 0.0
    %2848 = vmatprep.subr.mxu0 0.0
    %2849 = vmatpush1.msra.mxu0 0.0
    %2850 = vmatprep.subr.mxu0 0.0
    %2851 = vmatpush1.msra.mxu0 0.0
    %2852 = vmatprep.subr.mxu0 0.0
    %2853 = vmatpush1.msra.mxu0 0.0
    %2854 = vmatprep.subr.mxu0 0.0
    %2855 = vmatpush1.msra.mxu0 %v2495
    %2856 = vmatprep.subr.mxu0 0.0
    %2857 = vmatpush2.msra.mxu0 0.0
    %2858 = vmatprep.subr.mxu0 0.0
    %2859 = vmatpush2.msra.mxu0 0.0
    %2860 = vmatprep.subr.mxu0 0.0
    %2861 = vmatpush2.msra.mxu0 0.0
    %2862 = vmatprep.subr.mxu0 0.0
    %2863 = vmatpush2.msra.mxu0 0.0
    %2864 = vmatprep.subr.mxu0 0.0
    %2865 = vmatpush2.msra.mxu0 0.0
    %2866 = vmatprep.subr.mxu0 0.0
    %2867 = vmatpush2.msra.mxu0 0.0
    %2868 = vmatprep.subr.mxu0 0.0
    %2869 = vmatpush2.msra.mxu0 0.0
    %2870 = vmatprep.subr.mxu0 0.0
    %2871 = vmatpush2.msra.mxu0 0.0
    %2872 = vmatprep.subr.mxu0 0.0
    %2873 = vmatpush2.msra.mxu0 0.0
    %2874 = vmatprep.subr.mxu0 0.0
    %2875 = vmatpush2.msra.mxu0 0.0
    %2876 = vmatprep.subr.mxu0 0.0
    %2877 = vmatpush2.msra.mxu0 0.0
    %2878 = vmatprep.subr.mxu0 0.0
    %2879 = vmatpush2.msra.mxu0 0.0
    %2880 = vmatprep.subr.mxu0 0.0
    %2881 = vmatpush2.msra.mxu0 0.0
    %2882 = vmatprep.subr.mxu0 0.0
    %2883 = vmatpush2.msra.mxu0 0.0
    %2884 = vmatprep.subr.mxu0 0.0
    %2885 = vmatpush2.msra.mxu0 0.0
    %2886 = vmatprep.subr.mxu0 0.0
    %2887 = vmatpush2.msra.mxu0 0.0
    %2888 = vmatprep.mubr.f32.mxu0 0.0
    %2889 = vmatmul.mubr.f32.gmra.mxu0 %v2822
    %v2890 = vpop.f32.mrf.mxu0
    %v2891 = vadd.f32 0.0, %v2890
    %v2892 = vpop.f32.mrf.mxu0
    %2893 = vdwg.mxu0
    %v2895 = vsel %vm300, %v2891, 0
    %2897 = vmatprep.subr.mxu0 0.0
    %2898 = vmatpush1.msra.mxu0 0.0
    %2899 = vmatprep.subr.mxu0 0.0
    %2900 = vmatpush1.msra.mxu0 0.0
    %2901 = vmatprep.subr.mxu0 0.0
    %2902 = vmatpush1.msra.mxu0 0.0
    %2903 = vmatprep.subr.mxu0 0.0
    %2904 = vmatpush1.msra.mxu0 0.0
    %2905 = vmatprep.subr.mxu0 0.0
    %2906 = vmatpush1.msra.mxu0 0.0
    %2907 = vmatprep.subr.mxu0 0.0
    %2908 = vmatpush1.msra.mxu0 0.0
    %2909 = vmatprep.subr.mxu0 0.0
    %2910 = vmatpush1.msra.mxu0 0.0
    %2911 = vmatprep.subr.mxu0 0.0
    %2912 = vmatpush1.msra.mxu0 0.0
    %2913 = vmatprep.subr.mxu0 0.0
    %2914 = vmatpush1.msra.mxu0 0.0
    %2915 = vmatprep.subr.mxu0 0.0
    %2916 = vmatpush1.msra.mxu0 0.0
    %2917 = vmatprep.subr.mxu0 0.0
    %2918 = vmatpush1.msra.mxu0 0.0
    %2919 = vmatprep.subr.mxu0 0.0
    %2920 = vmatpush1.msra.mxu0 0.0
    %2921 = vmatprep.subr.mxu0 0.0
    %2922 = vmatpush1.msra.mxu0 0.0
    %2923 = vmatprep.subr.mxu0 0.0
    %2924 = vmatpush1.msra.mxu0 0.0
    %2925 = vmatprep.subr.mxu0 0.0
    %2926 = vmatpush1.msra.mxu0 0.0
    %2927 = vmatprep.subr.mxu0 0.0
    %2928 = vmatpush1.msra.mxu0 %v2659
    %2929 = vmatprep.subr.mxu0 0.0
    %2930 = vmatpush2.msra.mxu0 0.0
    %2931 = vmatprep.subr.mxu0 0.0
    %2932 = vmatpush2.msra.mxu0 0.0
    %2933 = vmatprep.subr.mxu0 0.0
    %2934 = vmatpush2.msra.mxu0 0.0
    %2935 = vmatprep.subr.mxu0 0.0
    %2936 = vmatpush2.msra.mxu0 0.0
    %2937 = vmatprep.subr.mxu0 0.0
    %2938 = vmatpush2.msra.mxu0 0.0
    %2939 = vmatprep.subr.mxu0 0.0
    %2940 = vmatpush2.msra.mxu0 0.0
    %2941 = vmatprep.subr.mxu0 0.0
    %2942 = vmatpush2.msra.mxu0 0.0
    %2943 = vmatprep.subr.mxu0 0.0
    %2944 = vmatpush2.msra.mxu0 0.0
    %2945 = vmatprep.subr.mxu0 0.0
    %2946 = vmatpush2.msra.mxu0 0.0
    %2947 = vmatprep.subr.mxu0 0.0
    %2948 = vmatpush2.msra.mxu0 0.0
    %2949 = vmatprep.subr.mxu0 0.0
    %2950 = vmatpush2.msra.mxu0 0.0
    %2951 = vmatprep.subr.mxu0 0.0
    %2952 = vmatpush2.msra.mxu0 0.0
    %2953 = vmatprep.subr.mxu0 0.0
    %2954 = vmatpush2.msra.mxu0 0.0
    %2955 = vmatprep.subr.mxu0 0.0
    %2956 = vmatpush2.msra.mxu0 0.0
    %2957 = vmatprep.subr.mxu0 0.0
    %2958 = vmatpush2.msra.mxu0 0.0
    %2959 = vmatprep.subr.mxu0 0.0
    %2960 = vmatpush2.msra.mxu0 0.0
    %2961 = vmatprep.mubr.f32.mxu0 0.0
    %2962 = vmatmul.mubr.f32.gmra.mxu0 %v2895
    %v2963 = vpop.f32.mrf.mxu0
    %v2964 = vadd.f32 0.0, %v2963
    %v2965 = vpop.f32.mrf.mxu0
    %2966 = vdwg.mxu0
    %v2967 = vadd.f32 %v2233, %v2964
    %v2968 = vld [vmem:[%s8] sm:$0x1]
    %v2970 = vlaneseq
    %v2971 = vshrl.u32 %v2970, 7
    %v2972 = vsub.s32 0, %v2971
    %v2973 = vrot.slane %v2968, %v2972
    %v2975 = vadd.f32 %v2733, %v2973
    %2976 = vst.msk [vmem:[#allocation2] sm:$0xff] %vm46, %v2975
    %v2977 = vadd.f32 %v2967, %v2973
    %2978 = vst.msk [vmem:[#allocation2 + $0x8] sm:$0xff] %vm46, %v2977
    // Predicated region
    $region38: #{tpu_custom_call.1} parent=1 // pred_check
      _
    $region39: #{tpu_custom_call.1} parent=1 // pred_check_branch
      %2980 = sbr.rel (0) target = $region41
    $region40: #{tpu_custom_call.1} parent=1 // pred_region
      %s2982 = ssub.s32 256, 256
      %2983 = vsyncadd [#allocation3], %s2982
      %s2984 = sshll.u32 [#allocation2], 4
      %s2985 = int_to_ptr.vmem [resolvable:$true] %s2984
      %2990 = dma.vmem_to_hbm [thread:$0]  %s2985, 256, %s9, [#allocation3], 128, 128, 8
    $region41: #{tpu_custom_call.1} parent=1 // pred_fallthru
      _
    // Predicated region
    $region42: #{tpu_custom_call.1} parent=1 // pred_check
      _
    $region43: #{tpu_custom_call.1} parent=1 // pred_check_branch
      %2992 = sbr.rel (0) target = $region45
    $region44: #{tpu_custom_call.1} parent=1 // pred_region
      %2993 = dma.done [#allocation3], 256
    $region45: #{tpu_custom_call.1} parent=1 // pred_fallthru
      _
    %2994 = vsyncpa [#allocation3], 1

</llo_original>
